<compile_context>
chip_gen: v7x
topology: tpu7x:2x2x1
jax: 0.10.0
libtpu: 0.0.40
codegen_flags: <defaults>
</compile_context>

<pallas_src>
import math

import jax
import jax.numpy as jnp
from jax import lax
from jax.experimental import pallas as pl
from jax.experimental.pallas import tpu as pltpu

# ---------------- config (small shapes consistent with the module) ----------------
B, S, H = 2, 8, 32          # batch, sequence, hidden_size
NUM_HEADS = 4
HEAD_DIM = H // NUM_HEADS
MLP_DIM = 64
NUM_LAYERS = 2
K_RANK = 8                  # config.K
RKR_SCALE = 0.1             # config.rkr_scale
LN_EPS = 1e-6
ATTN_SCALE = 1.0 / math.sqrt(HEAD_DIM)
M = B * S                   # matmul row dimension (batch folded into rows)


# ---------------- in-kernel helpers ----------------
def _layer_norm(x, w_row, b_row):
    # w_row / b_row are (1, H) rows -> broadcast against (M, H) with no relayout.
    mu = jnp.mean(x, axis=-1, keepdims=True)
    var = jnp.mean((x - mu) ** 2, axis=-1, keepdims=True)
    return (x - mu) * lax.rsqrt(var + LN_EPS) * w_row + b_row


def _gelu_exact(x):
    # torch.nn.functional.gelu default (erf formulation)
    return 0.5 * x * (1.0 + lax.erf(x * (1.0 / math.sqrt(2.0))))


def _softmax_lastdim(x):
    m = jnp.max(x, axis=-1, keepdims=True)
    e = jnp.exp(x - m)
    # EUP approximate reciprocal instead of a VPU divide.
    return e * pl.reciprocal(jnp.sum(e, axis=-1, keepdims=True), approx=True)


def _to_heads(t2d):
    """(M, H) -> (B*NUM_HEADS, S, HEAD_DIM).

    Only last-two-dim swaps (native batched 2-D transposes) and reshapes that
    split/merge leading dims or split the sublane dim at a multiple of 8 —
    no per-head lane extracts, no general 4-D permutes."""
    t = jnp.swapaxes(t2d.reshape(B, S, H), 1, 2)                      # (B, H, S)
    t = jnp.swapaxes(t.reshape(B * NUM_HEADS, HEAD_DIM, S), 1, 2)     # (B*NH, S, HD)
    return t


def _from_heads(tg):
    """(B*NUM_HEADS, S, HEAD_DIM) -> (M, H). Inverse of _to_heads (no concat)."""
    t = jnp.swapaxes(tg, 1, 2).reshape(B, H, S)                       # (B, H, S)
    return jnp.swapaxes(t, 1, 2).reshape(M, H)                        # (M, H)


# ---------------- the fused encoder kernel (single invocation, no grid) ----------------
def encoder_kernel(x_ref,       # (M, H)       hidden states, batch folded into rows
                   wqkv_ref,    # (L, H, 3H)   pre-transposed (in,out), gates+scale folded
                   bqkv_ref,    # (L, 1, 3H)
                   wout_ref,    # (L, H, H)    pre-transposed, gate folded
                   w1_ref,      # (L, H, MLP)  pre-transposed, gate folded
                   b1_ref,      # (L, 1, MLP)
                   w2_ref,      # (L, MLP, H)  pre-transposed, gate folded
                   vec_ref,     # (L, 6, H) = [ln1w, ln1b, ln2w, ln2b, b_out, b_fc2]
                   enc_ref,     # (2, H)    = [encoder_norm w, encoder_norm b]
                   out_ref):    # (M, H)
    x = x_ref[...]                                              # (M, H)

    for l in range(NUM_LAYERS):                                 # static -> unrolled
        lv = vec_ref[l]                                         # (6, H)

        # ---------------- attention sub-block ----------------
        h = x
        xn = _layer_norm(x, lv[0:1, :], lv[1:2, :])

        # Fused Q/K/V projection: one (M, H) @ (H, 3H) matmul.
        # SFG gates and the 1/sqrt(head_dim) score scale are folded in already.
        qkv = jnp.dot(xn, wqkv_ref[l],
                      preferred_element_type=jnp.float32) + bqkv_ref[l]

        # Contiguous 32-lane slices at 0 / H / 2H only.
        qg = _to_heads(qkv[:, 0:H])
        kg = _to_heads(qkv[:, H:2 * H])
        vg = _to_heads(qkv[:, 2 * H:3 * H])

        # Batched-head attention: g = B*NUM_HEADS batch dim, single einsum each.
        s = jnp.einsum('gqd,gkd->gqk', qg, kg,
                       preferred_element_type=jnp.float32)      # (B*NH, S, S)
        p = _softmax_lastdim(s)
        c = jnp.einsum('gqk,gkd->gqd', p, vg,
                       preferred_element_type=jnp.float32)      # (B*NH, S, HD)
        ctx = _from_heads(c)                                    # (M, H)

        attn_out = jnp.dot(ctx, wout_ref[l],
                           preferred_element_type=jnp.float32) + lv[4:5, :]
        x = attn_out + h

        # ---------------- MLP sub-block ----------------
        h = x
        xn = _layer_norm(x, lv[2:3, :], lv[3:4, :])
        y = jnp.dot(xn, w1_ref[l],
                    preferred_element_type=jnp.float32) + b1_ref[l]
        y = _gelu_exact(y)
        y = jnp.dot(y, w2_ref[l],
                    preferred_element_type=jnp.float32) + lv[5:6, :]
        x = y + h

    # ---------------- final encoder LayerNorm ----------------
    enc = enc_ref[...]
    out_ref[...] = _layer_norm(x, enc[0:1, :], enc[1:2, :])


# ---------------- wrapper ----------------
def encoder_pallas(x, packed):
    # Reshapes done in XLA (free layout plumbing), kernel sees a flat (M, H) block.
    x2 = jnp.reshape(x, (M, H))

    # Advisory cost estimate for XLA scheduling around the custom call.
    mm_flops = (2 * M * H * (3 * H)                          # fused QKV
                + 2 * (B * NUM_HEADS) * S * S * HEAD_DIM * 2  # scores + ctx
                + 2 * M * H * H                               # attn out proj
                + 2 * M * H * MLP_DIM + 2 * M * MLP_DIM * H)  # fc1 + fc2
    flops = NUM_LAYERS * mm_flops
    transc = NUM_LAYERS * (B * NUM_HEADS * S * S      # exp in softmax
                           + M * MLP_DIM              # erf in gelu
                           + 3 * M) + M               # rsqrt / recip
    n_bytes = 4 * (int(x2.size) + sum(int(p.size) for p in packed) + M * H)

    out2 = pl.pallas_call(
        encoder_kernel,
        out_shape=jax.ShapeDtypeStruct((M, H), jnp.float32),
        in_specs=[pl.BlockSpec(memory_space=pltpu.MemorySpace.VMEM)] * (1 + len(packed)),
        out_specs=pl.BlockSpec(memory_space=pltpu.MemorySpace.VMEM),
        cost_estimate=pl.CostEstimate(flops=flops, transcendentals=transc,
                                      bytes_accessed=n_bytes),
    )(x2, *packed)
    return jnp.reshape(out2, (B, S, H))


# ---------------- deterministic parameter construction (glue) ----------------
def _rg_fc_params(key, h_out, h_in):
    """Effective RG_FC weight for task==0: W_eff = W + unc_LM @ unc_RM."""
    k1, k2, k3, k4 = jax.random.split(key, 4)
    base = jax.random.normal(k1, (h_out, h_in), jnp.float32) / math.sqrt(h_in)
    bias = jax.random.normal(k2, (h_out,), jnp.float32) * 0.02
    lm = jax.random.normal(k3, (h_out, K_RANK), jnp.float32) * RKR_SCALE
    rm = jax.random.normal(k4, (K_RANK, h_in), jnp.float32) * RKR_SCALE
    return base + lm @ rm, bias      # RG composition (parameter setup glue)


def init_raw_params(key):
    """Raw (un-folded) module parameters, (out,in) torch layout, per-layer stacks."""
    names = ('ln1w', 'ln1b', 'ln2w', 'ln2b',
             'wq', 'bq', 'wk', 'bk', 'wv', 'bv', 'wo', 'bo',
             'fq', 'fk', 'fv', 'fo',
             'w1', 'b1', 'f1', 'w2', 'b2', 'f2')
    acc = {n: [] for n in names}
    layer_keys = jax.random.split(key, NUM_LAYERS)
    for l in range(NUM_LAYERS):
        ks = jax.random.split(layer_keys[l], 12)
        wq, bq = _rg_fc_params(ks[0], H, H)
        wk, bk = _rg_fc_params(ks[1], H, H)
        wv, bv = _rg_fc_params(ks[2], H, H)
        wo, bo = _rg_fc_params(ks[3], H, H)
        w1, b1 = _rg_fc_params(ks[4], MLP_DIM, H)
        w2, b2 = _rg_fc_params(ks[5], H, MLP_DIM)
        # SFG_FC gates (init is ones in the module; perturb to exercise the fold —
        # the reference applies them explicitly so semantics are verified exactly).
        fq = 1.0 + 0.05 * jax.random.normal(ks[6], (H,), jnp.float32)
        fk = 1.0 + 0.05 * jax.random.normal(ks[7], (H,), jnp.float32)
        fv = 1.0 + 0.05 * jax.random.normal(ks[8], (H,), jnp.float32)
        fo = 1.0 + 0.05 * jax.random.normal(ks[9], (H,), jnp.float32)
        f1 = 1.0 + 0.05 * jax.random.normal(ks[10], (MLP_DIM,), jnp.float32)
        f2 = 1.0 + 0.05 * jax.random.normal(ks[11], (H,), jnp.float32)
        acc['ln1w'].append(jnp.ones((H,), jnp.float32))
        acc['ln1b'].append(jnp.zeros((H,), jnp.float32))
        acc['ln2w'].append(jnp.ones((H,), jnp.float32))
        acc['ln2b'].append(jnp.zeros((H,), jnp.float32))
        for n, v in (('wq', wq), ('bq', bq), ('wk', wk), ('bk', bk),
                     ('wv', wv), ('bv', bv), ('wo', wo), ('bo', bo),
                     ('fq', fq), ('fk', fk), ('fv', fv), ('fo', fo),
                     ('w1', w1), ('b1', b1), ('f1', f1),
                     ('w2', w2), ('b2', b2), ('f2', f2)):
            acc[n].append(v)
    p = {n: jnp.stack(v) for n, v in acc.items()}
    p['encw'] = jnp.ones((H,), jnp.float32)    # encoder_norm weight
    p['encb'] = jnp.zeros((H,), jnp.float32)   # encoder_norm bias
    return p


def fold_and_pack(p):
    """Fold SFG gates + attention scale into weights/biases, pre-transpose to
    (in,out), fuse Q/K/V, and pack everything into 8 kernel inputs.
    (f32 kept everywhere for exactness at these tiny sizes; cast weights to bf16
     here when scaling the batch up on v6e/v7x.)"""
    wq_f = (p['fq'] * ATTN_SCALE)[:, :, None] * p['wq']   # (L,H,H) (out,in)
    bq_f = (p['fq'] * ATTN_SCALE) * p['bq']
    wk_f = p['fk'][:, :, None] * p['wk']
    bk_f = p['fk'] * p['bk']
    wv_f = p['fv'][:, :, None] * p['wv']
    bv_f = p['fv'] * p['bv']
    wo_f = p['fo'][:, :, None] * p['wo']
    bo_f = p['fo'] * p['bo']
    w1_f = p['f1'][:, :, None] * p['w1']
    b1_f = p['f1'] * p['b1']
    w2_f = p['f2'][:, :, None] * p['w2']
    b2_f = p['f2'] * p['b2']

    wqkv = jnp.concatenate([jnp.swapaxes(wq_f, 1, 2),
                            jnp.swapaxes(wk_f, 1, 2),
                            jnp.swapaxes(wv_f, 1, 2)], axis=2)        # (L, H, 3H)
    bqkv = jnp.concatenate([bq_f, bk_f, bv_f], axis=1)[:, None, :]    # (L, 1, 3H)
    wout = jnp.swapaxes(wo_f, 1, 2)                                   # (L, H, H)
    w1t = jnp.swapaxes(w1_f, 1, 2)                                    # (L, H, MLP)
    b1r = b1_f[:, None, :]                                            # (L, 1, MLP)
    w2t = jnp.swapaxes(w2_f, 1, 2)                                    # (L, MLP, H)
    vecs = jnp.stack([p['ln1w'], p['ln1b'], p['ln2w'], p['ln2b'],
                      bo_f, b2_f], axis=1)                            # (L, 6, H)
    enc = jnp.stack([p['encw'], p['encb']], axis=0)                   # (2, H)
    return (wqkv, bqkv, wout, w1t, b1r, w2t, vecs, enc)


# ---------------- pure-JAX reference (literal module forward, un-folded params) ----------------
def encoder_ref(x, p):
    def ln(t, w, b):
        mu = t.mean(-1, keepdims=True)
        var = ((t - mu) ** 2).mean(-1, keepdims=True)
        return (t - mu) / jnp.sqrt(var + LN_EPS) * w + b

    for l in range(NUM_LAYERS):
        h = x
        xn = ln(x, p['ln1w'][l], p['ln1b'][l])
        q = (xn @ p['wq'][l].T + p['bq'][l]) * p['fq'][l]
        k = (xn @ p['wk'][l].T + p['bk'][l]) * p['fk'][l]
        v = (xn @ p['wv'][l].T + p['bv'][l]) * p['fv'][l]
        qh = q.reshape(B, S, NUM_HEADS, HEAD_DIM).transpose(0, 2, 1, 3)
        kh = k.reshape(B, S, NUM_HEADS, HEAD_DIM).transpose(0, 2, 1, 3)
        vh = v.reshape(B, S, NUM_HEADS, HEAD_DIM).transpose(0, 2, 1, 3)
        scores = jnp.einsum('bhqd,bhkd->bhqk', qh, kh) * ATTN_SCALE
        probs = jax.nn.softmax(scores, axis=-1)
        ctx = jnp.einsum('bhqk,bhkd->bhqd', probs, vh)
        ctx = ctx.transpose(0, 2, 1, 3).reshape(B, S, H)
        attn_out = (ctx @ p['wo'][l].T + p['bo'][l]) * p['fo'][l]
        x = attn_out + h

        h = x
        xn = ln(x, p['ln2w'][l], p['ln2b'][l])
        y = (xn @ p['w1'][l].T + p['b1'][l]) * p['f1'][l]
        y = jax.nn.gelu(y, approximate=False)
        y = (y @ p['w2'][l].T + p['b2'][l]) * p['f2'][l]
        x = y + h

    return ln(x, p['encw'], p['encb'])


if __name__ == "__main__":
    key = jax.random.PRNGKey(0)
    kx, kp = jax.random.split(key)
    x = jax.random.normal(kx, (B, S, H), jnp.float32)

    raw = init_raw_params(kp)        # parameters as the module defines them
    packed = fold_and_pack(raw)      # host-side algebraic folds + packing (glue)

    encoded = jax.block_until_ready(encoder_pallas(x, packed))
    ref = jax.block_until_ready(encoder_ref(x, raw))

    assert encoded.shape == (B, S, H)
    assert bool(jnp.all(jnp.isfinite(encoded)))
    max_err = float(jnp.max(jnp.abs(encoded - ref)))
    assert jnp.allclose(encoded, ref, atol=2e-2, rtol=2e-2), max_err

    print("KERNEL_OK")
</pallas_src>

<mosaic_0001>
module attributes {stable_mosaic.version = 11 : i64} {
  func.func @encoder_kernel(%arg0: memref<16x32xf32, #tpu.memory_space<vmem>>, %arg1: memref<2x32x96xf32, #tpu.memory_space<vmem>>, %arg2: memref<2x1x96xf32, #tpu.memory_space<vmem>>, %arg3: memref<2x32x32xf32, #tpu.memory_space<vmem>>, %arg4: memref<2x32x64xf32, #tpu.memory_space<vmem>>, %arg5: memref<2x1x64xf32, #tpu.memory_space<vmem>>, %arg6: memref<2x64x32xf32, #tpu.memory_space<vmem>>, %arg7: memref<2x6x32xf32, #tpu.memory_space<vmem>>, %arg8: memref<2x32xf32, #tpu.memory_space<vmem>>, %arg9: memref<16x32xf32, #tpu.memory_space<vmem>>) attributes {dimension_semantics = [], scalar_prefetch = 0 : i64, scratch_operands = 0 : i64, tpu.core_type = #tpu.core_type<tc>} {
    %c0 = arith.constant 0 : index
    %c0_0 = arith.constant 0 : index
    %0 = vector.load %arg0[%c0, %c0_0] : memref<16x32xf32, #tpu.memory_space<vmem>>, vector<16x32xf32>
    %c0_1 = arith.constant 0 : index
    %c0_2 = arith.constant 0 : index
    %c0_3 = arith.constant 0 : index
    %1 = vector.load %arg7[%c0_1, %c0_2, %c0_3] : memref<2x6x32xf32, #tpu.memory_space<vmem>>, vector<1x6x32xf32>
    %2 = vector.shape_cast %1 : vector<1x6x32xf32> to vector<6x32xf32>
    %3 = vector.extract_strided_slice %2 {offsets = [0, 0], sizes = [1, 32], strides = [1, 1]} : vector<6x32xf32> to vector<1x32xf32>
    %4 = vector.extract_strided_slice %2 {offsets = [1, 0], sizes = [1, 32], strides = [1, 1]} : vector<6x32xf32> to vector<1x32xf32>
    %cst = arith.constant dense<0.000000e+00> : vector<16xf32>
    %5 = vector.multi_reduction <add>, %0, %cst [1] : vector<16x32xf32> to vector<16xf32>
    %6 = vector.shape_cast %5 : vector<16xf32> to vector<16x1xf32>
    %cst_4 = arith.constant 3.200000e+01 : f32
    %7 = vector.broadcast %cst_4 : f32 to vector<16x1xf32>
    %8 = arith.divf %6, %7 : vector<16x1xf32>
    %9 = vector.broadcast %8 : vector<16x1xf32> to vector<16x32xf32>
    %10 = arith.subf %0, %9 : vector<16x32xf32>
    %11 = arith.mulf %10, %10 : vector<16x32xf32>
    %cst_5 = arith.constant dense<0.000000e+00> : vector<16xf32>
    %12 = vector.multi_reduction <add>, %11, %cst_5 [1] : vector<16x32xf32> to vector<16xf32>
    %13 = vector.shape_cast %12 : vector<16xf32> to vector<16x1xf32>
    %cst_6 = arith.constant 3.200000e+01 : f32
    %14 = vector.broadcast %cst_6 : f32 to vector<16x1xf32>
    %15 = arith.divf %13, %14 : vector<16x1xf32>
    %16 = vector.broadcast %8 : vector<16x1xf32> to vector<16x32xf32>
    %17 = arith.subf %0, %16 : vector<16x32xf32>
    %cst_7 = arith.constant 9.99999997E-7 : f32
    %18 = vector.broadcast %cst_7 : f32 to vector<16x1xf32>
    %19 = arith.addf %15, %18 : vector<16x1xf32>
    %20 = math.rsqrt %19 : vector<16x1xf32>
    %21 = vector.broadcast %20 : vector<16x1xf32> to vector<16x32xf32>
    %22 = arith.mulf %17, %21 : vector<16x32xf32>
    %23 = vector.broadcast %3 : vector<1x32xf32> to vector<16x32xf32>
    %24 = arith.mulf %22, %23 : vector<16x32xf32>
    %25 = vector.broadcast %4 : vector<1x32xf32> to vector<16x32xf32>
    %26 = arith.addf %24, %25 : vector<16x32xf32>
    %c0_8 = arith.constant 0 : index
    %c0_9 = arith.constant 0 : index
    %c0_10 = arith.constant 0 : index
    %27 = vector.load %arg1[%c0_8, %c0_9, %c0_10] : memref<2x32x96xf32, #tpu.memory_space<vmem>>, vector<1x32x96xf32>
    %28 = vector.shape_cast %27 : vector<1x32x96xf32> to vector<32x96xf32>
    %cst_11 = arith.constant dense<0.000000e+00> : vector<16x96xf32>
    %29 = tpu.matmul %26, %28, %cst_11 {dimension_numbers = #tpu.dot_dimension_numbers<[1], [0], [0], [1], [0, 0, 1, 1], [], []>} : vector<16x32xf32>, vector<32x96xf32>, vector<16x96xf32> -> vector<16x96xf32>
    %c0_12 = arith.constant 0 : index
    %c0_13 = arith.constant 0 : index
    %c0_14 = arith.constant 0 : index
    %30 = vector.load %arg2[%c0_12, %c0_13, %c0_14] : memref<2x1x96xf32, #tpu.memory_space<vmem>>, vector<1x1x96xf32>
    %31 = vector.shape_cast %30 : vector<1x1x96xf32> to vector<1x96xf32>
    %32 = vector.broadcast %31 : vector<1x96xf32> to vector<16x96xf32>
    %33 = arith.addf %29, %32 : vector<16x96xf32>
    %34 = vector.extract_strided_slice %33 {offsets = [0, 0], sizes = [16, 32], strides = [1, 1]} : vector<16x96xf32> to vector<16x32xf32>
    %35 = vector.shape_cast %34 : vector<16x32xf32> to vector<2x8x32xf32>
    %36 = tpu.transpose %35, [0, 2, 1] : vector<2x8x32xf32> -> vector<2x32x8xf32>
    %37 = vector.shape_cast %36 : vector<2x32x8xf32> to vector<8x8x8xf32>
    %38 = tpu.transpose %37, [0, 2, 1] : vector<8x8x8xf32> -> vector<8x8x8xf32>
    %39 = vector.extract_strided_slice %33 {offsets = [0, 32], sizes = [16, 32], strides = [1, 1]} : vector<16x96xf32> to vector<16x32xf32>
    %40 = vector.shape_cast %39 : vector<16x32xf32> to vector<2x8x32xf32>
    %41 = tpu.transpose %40, [0, 2, 1] : vector<2x8x32xf32> -> vector<2x32x8xf32>
    %42 = vector.shape_cast %41 : vector<2x32x8xf32> to vector<8x8x8xf32>
    %43 = tpu.transpose %42, [0, 2, 1] : vector<8x8x8xf32> -> vector<8x8x8xf32>
    %44 = vector.extract_strided_slice %33 {offsets = [0, 64], sizes = [16, 32], strides = [1, 1]} : vector<16x96xf32> to vector<16x32xf32>
    %45 = vector.shape_cast %44 : vector<16x32xf32> to vector<2x8x32xf32>
    %46 = tpu.transpose %45, [0, 2, 1] : vector<2x8x32xf32> -> vector<2x32x8xf32>
    %47 = vector.shape_cast %46 : vector<2x32x8xf32> to vector<8x8x8xf32>
    %48 = tpu.transpose %47, [0, 2, 1] : vector<8x8x8xf32> -> vector<8x8x8xf32>
    "tpu.trace_start"() <{level = 10 : i32, message = "gqd,gkd->gqk"}> : () -> ()
    %cst_15 = arith.constant dense<0.000000e+00> : vector<8x8x8xf32>
    %49 = tpu.matmul %38, %43, %cst_15 {dimension_numbers = #tpu.dot_dimension_numbers<[2], [2], [1], [1], [0, 0, 0, 1, 1, 1], [0], [0]>} : vector<8x8x8xf32>, vector<8x8x8xf32>, vector<8x8x8xf32> -> vector<8x8x8xf32>
    "tpu.trace_stop"() : () -> ()
    %cst_16 = arith.constant dense<0xFF800000> : vector<8x8xf32>
    %50 = vector.multi_reduction <maximumf>, %49, %cst_16 [2] : vector<8x8x8xf32> to vector<8x8xf32>
    %51 = vector.shape_cast %50 : vector<8x8xf32> to vector<8x8x1xf32>
    %52 = vector.broadcast %51 : vector<8x8x1xf32> to vector<8x8x8xf32>
    %53 = arith.subf %49, %52 : vector<8x8x8xf32>
    %54 = math.exp %53 : vector<8x8x8xf32>
    %cst_17 = arith.constant dense<0.000000e+00> : vector<8x8xf32>
    %55 = vector.multi_reduction <add>, %54, %cst_17 [2] : vector<8x8x8xf32> to vector<8x8xf32>
    %56 = vector.shape_cast %55 : vector<8x8xf32> to vector<8x8x1xf32>
    %57 = tpu.reciprocal %56 {approx = true} : vector<8x8x1xf32> -> vector<8x8x1xf32>
    %58 = vector.broadcast %57 : vector<8x8x1xf32> to vector<8x8x8xf32>
    %59 = arith.mulf %54, %58 : vector<8x8x8xf32>
    "tpu.trace_start"() <{level = 10 : i32, message = "gqk,gkd->gqd"}> : () -> ()
    %cst_18 = arith.constant dense<0.000000e+00> : vector<8x8x8xf32>
    %60 = tpu.matmul %59, %48, %cst_18 {dimension_numbers = #tpu.dot_dimension_numbers<[2], [1], [1], [2], [0, 0, 0, 1, 1, 2], [0], [0]>} : vector<8x8x8xf32>, vector<8x8x8xf32>, vector<8x8x8xf32> -> vector<8x8x8xf32>
    "tpu.trace_stop"() : () -> ()
    %61 = tpu.transpose %60, [0, 2, 1] : vector<8x8x8xf32> -> vector<8x8x8xf32>
    %62 = vector.shape_cast %61 : vector<8x8x8xf32> to vector<2x32x8xf32>
    %63 = tpu.transpose %62, [0, 2, 1] : vector<2x32x8xf32> -> vector<2x8x32xf32>
    %64 = vector.shape_cast %63 : vector<2x8x32xf32> to vector<16x32xf32>
    %c0_19 = arith.constant 0 : index
    %c0_20 = arith.constant 0 : index
    %c0_21 = arith.constant 0 : index
    %65 = vector.load %arg3[%c0_19, %c0_20, %c0_21] : memref<2x32x32xf32, #tpu.memory_space<vmem>>, vector<1x32x32xf32>
    %66 = vector.shape_cast %65 : vector<1x32x32xf32> to vector<32x32xf32>
    %cst_22 = arith.constant dense<0.000000e+00> : vector<16x32xf32>
    %67 = tpu.matmul %64, %66, %cst_22 {dimension_numbers = #tpu.dot_dimension_numbers<[1], [0], [0], [1], [0, 0, 1, 1], [], []>} : vector<16x32xf32>, vector<32x32xf32>, vector<16x32xf32> -> vector<16x32xf32>
    %68 = vector.extract_strided_slice %2 {offsets = [4, 0], sizes = [1, 32], strides = [1, 1]} : vector<6x32xf32> to vector<1x32xf32>
    %69 = vector.broadcast %68 : vector<1x32xf32> to vector<16x32xf32>
    %70 = arith.addf %67, %69 : vector<16x32xf32>
    %71 = arith.addf %70, %0 : vector<16x32xf32>
    %72 = vector.extract_strided_slice %2 {offsets = [2, 0], sizes = [1, 32], strides = [1, 1]} : vector<6x32xf32> to vector<1x32xf32>
    %73 = vector.extract_strided_slice %2 {offsets = [3, 0], sizes = [1, 32], strides = [1, 1]} : vector<6x32xf32> to vector<1x32xf32>
    %cst_23 = arith.constant dense<0.000000e+00> : vector<16xf32>
    %74 = vector.multi_reduction <add>, %71, %cst_23 [1] : vector<16x32xf32> to vector<16xf32>
    %75 = vector.shape_cast %74 : vector<16xf32> to vector<16x1xf32>
    %cst_24 = arith.constant 3.200000e+01 : f32
    %76 = vector.broadcast %cst_24 : f32 to vector<16x1xf32>
    %77 = arith.divf %75, %76 : vector<16x1xf32>
    %78 = vector.broadcast %77 : vector<16x1xf32> to vector<16x32xf32>
    %79 = arith.subf %71, %78 : vector<16x32xf32>
    %80 = arith.mulf %79, %79 : vector<16x32xf32>
    %cst_25 = arith.constant dense<0.000000e+00> : vector<16xf32>
    %81 = vector.multi_reduction <add>, %80, %cst_25 [1] : vector<16x32xf32> to vector<16xf32>
    %82 = vector.shape_cast %81 : vector<16xf32> to vector<16x1xf32>
    %cst_26 = arith.constant 3.200000e+01 : f32
    %83 = vector.broadcast %cst_26 : f32 to vector<16x1xf32>
    %84 = arith.divf %82, %83 : vector<16x1xf32>
    %85 = vector.broadcast %77 : vector<16x1xf32> to vector<16x32xf32>
    %86 = arith.subf %71, %85 : vector<16x32xf32>
    %cst_27 = arith.constant 9.99999997E-7 : f32
    %87 = vector.broadcast %cst_27 : f32 to vector<16x1xf32>
    %88 = arith.addf %84, %87 : vector<16x1xf32>
    %89 = math.rsqrt %88 : vector<16x1xf32>
    %90 = vector.broadcast %89 : vector<16x1xf32> to vector<16x32xf32>
    %91 = arith.mulf %86, %90 : vector<16x32xf32>
    %92 = vector.broadcast %72 : vector<1x32xf32> to vector<16x32xf32>
    %93 = arith.mulf %91, %92 : vector<16x32xf32>
    %94 = vector.broadcast %73 : vector<1x32xf32> to vector<16x32xf32>
    %95 = arith.addf %93, %94 : vector<16x32xf32>
    %c0_28 = arith.constant 0 : index
    %c0_29 = arith.constant 0 : index
    %c0_30 = arith.constant 0 : index
    %96 = vector.load %arg4[%c0_28, %c0_29, %c0_30] : memref<2x32x64xf32, #tpu.memory_space<vmem>>, vector<1x32x64xf32>
    %97 = vector.shape_cast %96 : vector<1x32x64xf32> to vector<32x64xf32>
    %cst_31 = arith.constant dense<0.000000e+00> : vector<16x64xf32>
    %98 = tpu.matmul %95, %97, %cst_31 {dimension_numbers = #tpu.dot_dimension_numbers<[1], [0], [0], [1], [0, 0, 1, 1], [], []>} : vector<16x32xf32>, vector<32x64xf32>, vector<16x64xf32> -> vector<16x64xf32>
    %c0_32 = arith.constant 0 : index
    %c0_33 = arith.constant 0 : index
    %c0_34 = arith.constant 0 : index
    %99 = vector.load %arg5[%c0_32, %c0_33, %c0_34] : memref<2x1x64xf32, #tpu.memory_space<vmem>>, vector<1x1x64xf32>
    %100 = vector.shape_cast %99 : vector<1x1x64xf32> to vector<1x64xf32>
    %101 = vector.broadcast %100 : vector<1x64xf32> to vector<16x64xf32>
    %102 = arith.addf %98, %101 : vector<16x64xf32>
    %cst_35 = arith.constant 5.000000e-01 : f32
    %103 = vector.broadcast %cst_35 : f32 to vector<16x64xf32>
    %104 = arith.mulf %103, %102 : vector<16x64xf32>
    %cst_36 = arith.constant 0.707106769 : f32
    %105 = vector.broadcast %cst_36 : f32 to vector<16x64xf32>
    %106 = arith.mulf %102, %105 : vector<16x64xf32>
    %107 = math.erf %106 : vector<16x64xf32>
    %cst_37 = arith.constant 1.000000e+00 : f32
    %108 = vector.broadcast %cst_37 : f32 to vector<16x64xf32>
    %109 = arith.addf %108, %107 : vector<16x64xf32>
    %110 = arith.mulf %104, %109 : vector<16x64xf32>
    %c0_38 = arith.constant 0 : index
    %c0_39 = arith.constant 0 : index
    %c0_40 = arith.constant 0 : index
    %111 = vector.load %arg6[%c0_38, %c0_39, %c0_40] : memref<2x64x32xf32, #tpu.memory_space<vmem>>, vector<1x64x32xf32>
    %112 = vector.shape_cast %111 : vector<1x64x32xf32> to vector<64x32xf32>
    %cst_41 = arith.constant dense<0.000000e+00> : vector<16x32xf32>
    %113 = tpu.matmul %110, %112, %cst_41 {dimension_numbers = #tpu.dot_dimension_numbers<[1], [0], [0], [1], [0, 0, 1, 1], [], []>} : vector<16x64xf32>, vector<64x32xf32>, vector<16x32xf32> -> vector<16x32xf32>
    %114 = vector.extract_strided_slice %2 {offsets = [5, 0], sizes = [1, 32], strides = [1, 1]} : vector<6x32xf32> to vector<1x32xf32>
    %115 = vector.broadcast %114 : vector<1x32xf32> to vector<16x32xf32>
    %116 = arith.addf %113, %115 : vector<16x32xf32>
    %117 = arith.addf %116, %71 : vector<16x32xf32>
    %c1 = arith.constant 1 : index
    %c0_42 = arith.constant 0 : index
    %c0_43 = arith.constant 0 : index
    %118 = vector.load %arg7[%c1, %c0_42, %c0_43] : memref<2x6x32xf32, #tpu.memory_space<vmem>>, vector<1x6x32xf32>
    %119 = vector.shape_cast %118 : vector<1x6x32xf32> to vector<6x32xf32>
    %120 = vector.extract_strided_slice %119 {offsets = [0, 0], sizes = [1, 32], strides = [1, 1]} : vector<6x32xf32> to vector<1x32xf32>
    %121 = vector.extract_strided_slice %119 {offsets = [1, 0], sizes = [1, 32], strides = [1, 1]} : vector<6x32xf32> to vector<1x32xf32>
    %cst_44 = arith.constant dense<0.000000e+00> : vector<16xf32>
    %122 = vector.multi_reduction <add>, %117, %cst_44 [1] : vector<16x32xf32> to vector<16xf32>
    %123 = vector.shape_cast %122 : vector<16xf32> to vector<16x1xf32>
    %cst_45 = arith.constant 3.200000e+01 : f32
    %124 = vector.broadcast %cst_45 : f32 to vector<16x1xf32>
    %125 = arith.divf %123, %124 : vector<16x1xf32>
    %126 = vector.broadcast %125 : vector<16x1xf32> to vector<16x32xf32>
    %127 = arith.subf %117, %126 : vector<16x32xf32>
    %128 = arith.mulf %127, %127 : vector<16x32xf32>
    %cst_46 = arith.constant dense<0.000000e+00> : vector<16xf32>
    %129 = vector.multi_reduction <add>, %128, %cst_46 [1] : vector<16x32xf32> to vector<16xf32>
    %130 = vector.shape_cast %129 : vector<16xf32> to vector<16x1xf32>
    %cst_47 = arith.constant 3.200000e+01 : f32
    %131 = vector.broadcast %cst_47 : f32 to vector<16x1xf32>
    %132 = arith.divf %130, %131 : vector<16x1xf32>
    %133 = vector.broadcast %125 : vector<16x1xf32> to vector<16x32xf32>
    %134 = arith.subf %117, %133 : vector<16x32xf32>
    %cst_48 = arith.constant 9.99999997E-7 : f32
    %135 = vector.broadcast %cst_48 : f32 to vector<16x1xf32>
    %136 = arith.addf %132, %135 : vector<16x1xf32>
    %137 = math.rsqrt %136 : vector<16x1xf32>
    %138 = vector.broadcast %137 : vector<16x1xf32> to vector<16x32xf32>
    %139 = arith.mulf %134, %138 : vector<16x32xf32>
    %140 = vector.broadcast %120 : vector<1x32xf32> to vector<16x32xf32>
    %141 = arith.mulf %139, %140 : vector<16x32xf32>
    %142 = vector.broadcast %121 : vector<1x32xf32> to vector<16x32xf32>
    %143 = arith.addf %141, %142 : vector<16x32xf32>
    %c1_49 = arith.constant 1 : index
    %c0_50 = arith.constant 0 : index
    %c0_51 = arith.constant 0 : index
    %144 = vector.load %arg1[%c1_49, %c0_50, %c0_51] : memref<2x32x96xf32, #tpu.memory_space<vmem>>, vector<1x32x96xf32>
    %145 = vector.shape_cast %144 : vector<1x32x96xf32> to vector<32x96xf32>
    %cst_52 = arith.constant dense<0.000000e+00> : vector<16x96xf32>
    %146 = tpu.matmul %143, %145, %cst_52 {dimension_numbers = #tpu.dot_dimension_numbers<[1], [0], [0], [1], [0, 0, 1, 1], [], []>} : vector<16x32xf32>, vector<32x96xf32>, vector<16x96xf32> -> vector<16x96xf32>
    %c1_53 = arith.constant 1 : index
    %c0_54 = arith.constant 0 : index
    %c0_55 = arith.constant 0 : index
    %147 = vector.load %arg2[%c1_53, %c0_54, %c0_55] : memref<2x1x96xf32, #tpu.memory_space<vmem>>, vector<1x1x96xf32>
    %148 = vector.shape_cast %147 : vector<1x1x96xf32> to vector<1x96xf32>
    %149 = vector.broadcast %148 : vector<1x96xf32> to vector<16x96xf32>
    %150 = arith.addf %146, %149 : vector<16x96xf32>
    %151 = vector.extract_strided_slice %150 {offsets = [0, 0], sizes = [16, 32], strides = [1, 1]} : vector<16x96xf32> to vector<16x32xf32>
    %152 = vector.shape_cast %151 : vector<16x32xf32> to vector<2x8x32xf32>
    %153 = tpu.transpose %152, [0, 2, 1] : vector<2x8x32xf32> -> vector<2x32x8xf32>
    %154 = vector.shape_cast %153 : vector<2x32x8xf32> to vector<8x8x8xf32>
    %155 = tpu.transpose %154, [0, 2, 1] : vector<8x8x8xf32> -> vector<8x8x8xf32>
    %156 = vector.extract_strided_slice %150 {offsets = [0, 32], sizes = [16, 32], strides = [1, 1]} : vector<16x96xf32> to vector<16x32xf32>
    %157 = vector.shape_cast %156 : vector<16x32xf32> to vector<2x8x32xf32>
    %158 = tpu.transpose %157, [0, 2, 1] : vector<2x8x32xf32> -> vector<2x32x8xf32>
    %159 = vector.shape_cast %158 : vector<2x32x8xf32> to vector<8x8x8xf32>
    %160 = tpu.transpose %159, [0, 2, 1] : vector<8x8x8xf32> -> vector<8x8x8xf32>
    %161 = vector.extract_strided_slice %150 {offsets = [0, 64], sizes = [16, 32], strides = [1, 1]} : vector<16x96xf32> to vector<16x32xf32>
    %162 = vector.shape_cast %161 : vector<16x32xf32> to vector<2x8x32xf32>
    %163 = tpu.transpose %162, [0, 2, 1] : vector<2x8x32xf32> -> vector<2x32x8xf32>
    %164 = vector.shape_cast %163 : vector<2x32x8xf32> to vector<8x8x8xf32>
    %165 = tpu.transpose %164, [0, 2, 1] : vector<8x8x8xf32> -> vector<8x8x8xf32>
    "tpu.trace_start"() <{level = 10 : i32, message = "gqd,gkd->gqk"}> : () -> ()
    %cst_56 = arith.constant dense<0.000000e+00> : vector<8x8x8xf32>
    %166 = tpu.matmul %155, %160, %cst_56 {dimension_numbers = #tpu.dot_dimension_numbers<[2], [2], [1], [1], [0, 0, 0, 1, 1, 1], [0], [0]>} : vector<8x8x8xf32>, vector<8x8x8xf32>, vector<8x8x8xf32> -> vector<8x8x8xf32>
    "tpu.trace_stop"() : () -> ()
    %cst_57 = arith.constant dense<0xFF800000> : vector<8x8xf32>
    %167 = vector.multi_reduction <maximumf>, %166, %cst_57 [2] : vector<8x8x8xf32> to vector<8x8xf32>
    %168 = vector.shape_cast %167 : vector<8x8xf32> to vector<8x8x1xf32>
    %169 = vector.broadcast %168 : vector<8x8x1xf32> to vector<8x8x8xf32>
    %170 = arith.subf %166, %169 : vector<8x8x8xf32>
    %171 = math.exp %170 : vector<8x8x8xf32>
    %cst_58 = arith.constant dense<0.000000e+00> : vector<8x8xf32>
    %172 = vector.multi_reduction <add>, %171, %cst_58 [2] : vector<8x8x8xf32> to vector<8x8xf32>
    %173 = vector.shape_cast %172 : vector<8x8xf32> to vector<8x8x1xf32>
    %174 = tpu.reciprocal %173 {approx = true} : vector<8x8x1xf32> -> vector<8x8x1xf32>
    %175 = vector.broadcast %174 : vector<8x8x1xf32> to vector<8x8x8xf32>
    %176 = arith.mulf %171, %175 : vector<8x8x8xf32>
    "tpu.trace_start"() <{level = 10 : i32, message = "gqk,gkd->gqd"}> : () -> ()
    %cst_59 = arith.constant dense<0.000000e+00> : vector<8x8x8xf32>
    %177 = tpu.matmul %176, %165, %cst_59 {dimension_numbers = #tpu.dot_dimension_numbers<[2], [1], [1], [2], [0, 0, 0, 1, 1, 2], [0], [0]>} : vector<8x8x8xf32>, vector<8x8x8xf32>, vector<8x8x8xf32> -> vector<8x8x8xf32>
    "tpu.trace_stop"() : () -> ()
    %178 = tpu.transpose %177, [0, 2, 1] : vector<8x8x8xf32> -> vector<8x8x8xf32>
    %179 = vector.shape_cast %178 : vector<8x8x8xf32> to vector<2x32x8xf32>
    %180 = tpu.transpose %179, [0, 2, 1] : vector<2x32x8xf32> -> vector<2x8x32xf32>
    %181 = vector.shape_cast %180 : vector<2x8x32xf32> to vector<16x32xf32>
    %c1_60 = arith.constant 1 : index
    %c0_61 = arith.constant 0 : index
    %c0_62 = arith.constant 0 : index
    %182 = vector.load %arg3[%c1_60, %c0_61, %c0_62] : memref<2x32x32xf32, #tpu.memory_space<vmem>>, vector<1x32x32xf32>
    %183 = vector.shape_cast %182 : vector<1x32x32xf32> to vector<32x32xf32>
    %cst_63 = arith.constant dense<0.000000e+00> : vector<16x32xf32>
    %184 = tpu.matmul %181, %183, %cst_63 {dimension_numbers = #tpu.dot_dimension_numbers<[1], [0], [0], [1], [0, 0, 1, 1], [], []>} : vector<16x32xf32>, vector<32x32xf32>, vector<16x32xf32> -> vector<16x32xf32>
    %185 = vector.extract_strided_slice %119 {offsets = [4, 0], sizes = [1, 32], strides = [1, 1]} : vector<6x32xf32> to vector<1x32xf32>
    %186 = vector.broadcast %185 : vector<1x32xf32> to vector<16x32xf32>
    %187 = arith.addf %184, %186 : vector<16x32xf32>
    %188 = arith.addf %187, %117 : vector<16x32xf32>
    %189 = vector.extract_strided_slice %119 {offsets = [2, 0], sizes = [1, 32], strides = [1, 1]} : vector<6x32xf32> to vector<1x32xf32>
    %190 = vector.extract_strided_slice %119 {offsets = [3, 0], sizes = [1, 32], strides = [1, 1]} : vector<6x32xf32> to vector<1x32xf32>
    %cst_64 = arith.constant dense<0.000000e+00> : vector<16xf32>
    %191 = vector.multi_reduction <add>, %188, %cst_64 [1] : vector<16x32xf32> to vector<16xf32>
    %192 = vector.shape_cast %191 : vector<16xf32> to vector<16x1xf32>
    %cst_65 = arith.constant 3.200000e+01 : f32
    %193 = vector.broadcast %cst_65 : f32 to vector<16x1xf32>
    %194 = arith.divf %192, %193 : vector<16x1xf32>
    %195 = vector.broadcast %194 : vector<16x1xf32> to vector<16x32xf32>
    %196 = arith.subf %188, %195 : vector<16x32xf32>
    %197 = arith.mulf %196, %196 : vector<16x32xf32>
    %cst_66 = arith.constant dense<0.000000e+00> : vector<16xf32>
    %198 = vector.multi_reduction <add>, %197, %cst_66 [1] : vector<16x32xf32> to vector<16xf32>
    %199 = vector.shape_cast %198 : vector<16xf32> to vector<16x1xf32>
    %cst_67 = arith.constant 3.200000e+01 : f32
    %200 = vector.broadcast %cst_67 : f32 to vector<16x1xf32>
    %201 = arith.divf %199, %200 : vector<16x1xf32>
    %202 = vector.broadcast %194 : vector<16x1xf32> to vector<16x32xf32>
    %203 = arith.subf %188, %202 : vector<16x32xf32>
    %cst_68 = arith.constant 9.99999997E-7 : f32
    %204 = vector.broadcast %cst_68 : f32 to vector<16x1xf32>
    %205 = arith.addf %201, %204 : vector<16x1xf32>
    %206 = math.rsqrt %205 : vector<16x1xf32>
    %207 = vector.broadcast %206 : vector<16x1xf32> to vector<16x32xf32>
    %208 = arith.mulf %203, %207 : vector<16x32xf32>
    %209 = vector.broadcast %189 : vector<1x32xf32> to vector<16x32xf32>
    %210 = arith.mulf %208, %209 : vector<16x32xf32>
    %211 = vector.broadcast %190 : vector<1x32xf32> to vector<16x32xf32>
    %212 = arith.addf %210, %211 : vector<16x32xf32>
    %c1_69 = arith.constant 1 : index
    %c0_70 = arith.constant 0 : index
    %c0_71 = arith.constant 0 : index
    %213 = vector.load %arg4[%c1_69, %c0_70, %c0_71] : memref<2x32x64xf32, #tpu.memory_space<vmem>>, vector<1x32x64xf32>
    %214 = vector.shape_cast %213 : vector<1x32x64xf32> to vector<32x64xf32>
    %cst_72 = arith.constant dense<0.000000e+00> : vector<16x64xf32>
    %215 = tpu.matmul %212, %214, %cst_72 {dimension_numbers = #tpu.dot_dimension_numbers<[1], [0], [0], [1], [0, 0, 1, 1], [], []>} : vector<16x32xf32>, vector<32x64xf32>, vector<16x64xf32> -> vector<16x64xf32>
    %c1_73 = arith.constant 1 : index
    %c0_74 = arith.constant 0 : index
    %c0_75 = arith.constant 0 : index
    %216 = vector.load %arg5[%c1_73, %c0_74, %c0_75] : memref<2x1x64xf32, #tpu.memory_space<vmem>>, vector<1x1x64xf32>
    %217 = vector.shape_cast %216 : vector<1x1x64xf32> to vector<1x64xf32>
    %218 = vector.broadcast %217 : vector<1x64xf32> to vector<16x64xf32>
    %219 = arith.addf %215, %218 : vector<16x64xf32>
    %cst_76 = arith.constant 5.000000e-01 : f32
    %220 = vector.broadcast %cst_76 : f32 to vector<16x64xf32>
    %221 = arith.mulf %220, %219 : vector<16x64xf32>
    %cst_77 = arith.constant 0.707106769 : f32
    %222 = vector.broadcast %cst_77 : f32 to vector<16x64xf32>
    %223 = arith.mulf %219, %222 : vector<16x64xf32>
    %224 = math.erf %223 : vector<16x64xf32>
    %cst_78 = arith.constant 1.000000e+00 : f32
    %225 = vector.broadcast %cst_78 : f32 to vector<16x64xf32>
    %226 = arith.addf %225, %224 : vector<16x64xf32>
    %227 = arith.mulf %221, %226 : vector<16x64xf32>
    %c1_79 = arith.constant 1 : index
    %c0_80 = arith.constant 0 : index
    %c0_81 = arith.constant 0 : index
    %228 = vector.load %arg6[%c1_79, %c0_80, %c0_81] : memref<2x64x32xf32, #tpu.memory_space<vmem>>, vector<1x64x32xf32>
    %229 = vector.shape_cast %228 : vector<1x64x32xf32> to vector<64x32xf32>
    %cst_82 = arith.constant dense<0.000000e+00> : vector<16x32xf32>
    %230 = tpu.matmul %227, %229, %cst_82 {dimension_numbers = #tpu.dot_dimension_numbers<[1], [0], [0], [1], [0, 0, 1, 1], [], []>} : vector<16x64xf32>, vector<64x32xf32>, vector<16x32xf32> -> vector<16x32xf32>
    %231 = vector.extract_strided_slice %119 {offsets = [5, 0], sizes = [1, 32], strides = [1, 1]} : vector<6x32xf32> to vector<1x32xf32>
    %232 = vector.broadcast %231 : vector<1x32xf32> to vector<16x32xf32>
    %233 = arith.addf %230, %232 : vector<16x32xf32>
    %234 = arith.addf %233, %188 : vector<16x32xf32>
    %c0_83 = arith.constant 0 : index
    %c0_84 = arith.constant 0 : index
    %235 = vector.load %arg8[%c0_83, %c0_84] : memref<2x32xf32, #tpu.memory_space<vmem>>, vector<2x32xf32>
    %236 = vector.extract_strided_slice %235 {offsets = [0, 0], sizes = [1, 32], strides = [1, 1]} : vector<2x32xf32> to vector<1x32xf32>
    %237 = vector.extract_strided_slice %235 {offsets = [1, 0], sizes = [1, 32], strides = [1, 1]} : vector<2x32xf32> to vector<1x32xf32>
    %cst_85 = arith.constant dense<0.000000e+00> : vector<16xf32>
    %238 = vector.multi_reduction <add>, %234, %cst_85 [1] : vector<16x32xf32> to vector<16xf32>
    %239 = vector.shape_cast %238 : vector<16xf32> to vector<16x1xf32>
    %cst_86 = arith.constant 3.200000e+01 : f32
    %240 = vector.broadcast %cst_86 : f32 to vector<16x1xf32>
    %241 = arith.divf %239, %240 : vector<16x1xf32>
    %242 = vector.broadcast %241 : vector<16x1xf32> to vector<16x32xf32>
    %243 = arith.subf %234, %242 : vector<16x32xf32>
    %244 = arith.mulf %243, %243 : vector<16x32xf32>
    %cst_87 = arith.constant dense<0.000000e+00> : vector<16xf32>
    %245 = vector.multi_reduction <add>, %244, %cst_87 [1] : vector<16x32xf32> to vector<16xf32>
    %246 = vector.shape_cast %245 : vector<16xf32> to vector<16x1xf32>
    %cst_88 = arith.constant 3.200000e+01 : f32
    %247 = vector.broadcast %cst_88 : f32 to vector<16x1xf32>
    %248 = arith.divf %246, %247 : vector<16x1xf32>
    %249 = vector.broadcast %241 : vector<16x1xf32> to vector<16x32xf32>
    %250 = arith.subf %234, %249 : vector<16x32xf32>
    %cst_89 = arith.constant 9.99999997E-7 : f32
    %251 = vector.broadcast %cst_89 : f32 to vector<16x1xf32>
    %252 = arith.addf %248, %251 : vector<16x1xf32>
    %253 = math.rsqrt %252 : vector<16x1xf32>
    %254 = vector.broadcast %253 : vector<16x1xf32> to vector<16x32xf32>
    %255 = arith.mulf %250, %254 : vector<16x32xf32>
    %256 = vector.broadcast %236 : vector<1x32xf32> to vector<16x32xf32>
    %257 = arith.mulf %255, %256 : vector<16x32xf32>
    %258 = vector.broadcast %237 : vector<1x32xf32> to vector<16x32xf32>
    %259 = arith.addf %257, %258 : vector<16x32xf32>
    %c0_90 = arith.constant 0 : index
    %c0_91 = arith.constant 0 : index
    %260 = vector.load %arg9[%c0_90, %c0_91] : memref<16x32xf32, #tpu.memory_space<vmem>>, vector<16x32xf32>
    tpu.vector_store %arg9[%c0_90, %c0_91], %259 {strides = array<i32>} : memref<16x32xf32, #tpu.memory_space<vmem>>, vector<16x32xf32>,
    return
  }
}

</mosaic_0001>

<llo_original>
// kernel: tpu_custom_call.1
$region0: #{tpu_custom_call.1}
  #allocation0 [shape = 'u32[]', space=smem, size = 0x4, offset = 0x4, fixed_abs, tag = 'smem constant byte address 0x4 - core index']
  #allocation1 [shape = 'u32[144,128]{1,0:T(1,128)}', space=vmem, size = 0x12000, scoped, tag = 'internal scratch']
  %s0 = inlined_call_operand.vmem [shape: f32[16,32], index: 0, kind: input, shape index: {}]
  %s1 = inlined_call_operand.vmem [shape: f32[2,32,96], index: 1, kind: input, shape index: {}]
  %s2 = inlined_call_operand.vmem [shape: f32[2,1,96], index: 2, kind: input, shape index: {}]
  %s3 = inlined_call_operand.vmem [shape: f32[2,32,32], index: 3, kind: input, shape index: {}]
  %s4 = inlined_call_operand.vmem [shape: f32[2,32,64], index: 4, kind: input, shape index: {}]
  %s5 = inlined_call_operand.vmem [shape: f32[2,1,64], index: 5, kind: input, shape index: {}]
  %s6 = inlined_call_operand.vmem [shape: f32[2,64,32], index: 6, kind: input, shape index: {}]
  %s7 = inlined_call_operand.vmem [shape: f32[2,6,32], index: 7, kind: input, shape index: {}]
  %s8 = inlined_call_operand.vmem [shape: f32[2,32], index: 8, kind: input, shape index: {}]
  %s9 = inlined_call_operand.hbm [shape: f32[16,32], index: 9, kind: output, shape index: {}]
  %s10 = sld [smem:[#allocation0]]
  $region46: #{tpu_custom_call.1} parent=0
    _
  %s12 = ssub.s32 1, %s10
  %s13 = scalar_select 0, %s12, %s10
  $region1: #{tpu_custom_call.1} parent=0
    #allocation2 [shape = 'u8[8192]{0}', space=vmem, size = 0x2000, scoped, tag = 'output window, operand 0, single buffered']
    #allocation3 [shape = 's32[1]{0}', space=sflag, size = 0x4, scoped, tag = 'scoped memory for tpu_custom_call.1']
    %14 = vsyncpa [#allocation3], 0
    // Predicated region
    $region2: #{tpu_custom_call.1} parent=1 // pred_check
      _
    $region3: #{tpu_custom_call.1} parent=1 // pred_check_branch
      %16 = sbr.rel (0) target = $region5
    $region4: #{tpu_custom_call.1} parent=1 // pred_region
      _
    $region5: #{tpu_custom_call.1} parent=1 // pred_fallthru
      _
    // Predicated region
    $region6: #{tpu_custom_call.1} parent=1 // pred_check
      _
    $region7: #{tpu_custom_call.1} parent=1 // pred_check_branch
      %18 = sbr.rel (0) target = $region9
    $region8: #{tpu_custom_call.1} parent=1 // pred_region
      _
    $region9: #{tpu_custom_call.1} parent=1 // pred_fallthru
      _
    // Predicated region
    $region10: #{tpu_custom_call.1} parent=1 // pred_check
      _
    $region11: #{tpu_custom_call.1} parent=1 // pred_check_branch
      %20 = sbr.rel (0) target = $region13
    $region12: #{tpu_custom_call.1} parent=1 // pred_region
      _
    $region13: #{tpu_custom_call.1} parent=1 // pred_fallthru
      _
    // Predicated region
    $region14: #{tpu_custom_call.1} parent=1 // pred_check
      _
    $region15: #{tpu_custom_call.1} parent=1 // pred_check_branch
      %22 = sbr.rel (0) target = $region17
    $region16: #{tpu_custom_call.1} parent=1 // pred_region
      _
    $region17: #{tpu_custom_call.1} parent=1 // pred_fallthru
      _
    // Predicated region
    $region18: #{tpu_custom_call.1} parent=1 // pred_check
      _
    $region19: #{tpu_custom_call.1} parent=1 // pred_check_branch
      %24 = sbr.rel (0) target = $region21
    $region20: #{tpu_custom_call.1} parent=1 // pred_region
      _
    $region21: #{tpu_custom_call.1} parent=1 // pred_fallthru
      _
    // Predicated region
    $region22: #{tpu_custom_call.1} parent=1 // pred_check
      _
    $region23: #{tpu_custom_call.1} parent=1 // pred_check_branch
      %26 = sbr.rel (0) target = $region25
    $region24: #{tpu_custom_call.1} parent=1 // pred_region
      _
    $region25: #{tpu_custom_call.1} parent=1 // pred_fallthru
      _
    // Predicated region
    $region26: #{tpu_custom_call.1} parent=1 // pred_check
      _
    $region27: #{tpu_custom_call.1} parent=1 // pred_check_branch
      %28 = sbr.rel (0) target = $region29
    $region28: #{tpu_custom_call.1} parent=1 // pred_region
      _
    $region29: #{tpu_custom_call.1} parent=1 // pred_fallthru
      _
    // Predicated region
    $region30: #{tpu_custom_call.1} parent=1 // pred_check
      _
    $region31: #{tpu_custom_call.1} parent=1 // pred_check_branch
      %30 = sbr.rel (0) target = $region33
    $region32: #{tpu_custom_call.1} parent=1 // pred_region
      _
    $region33: #{tpu_custom_call.1} parent=1 // pred_fallthru
      _
    // Predicated region
    $region34: #{tpu_custom_call.1} parent=1 // pred_check
      _
    $region35: #{tpu_custom_call.1} parent=1 // pred_check_branch
      %32 = sbr.rel (0) target = $region37
    $region36: #{tpu_custom_call.1} parent=1 // pred_region
      _
    $region37: #{tpu_custom_call.1} parent=1 // pred_fallthru
      _
    %v33 = vld [vmem:[%s0] sm:$0xff]
    %v34 = vld [vmem:[%s0 + $0x8] sm:$0xff]
    %v35 = vld [vmem:[%s7] sm:$0x3f]
    %vm36 = vcmask 261120
    %v37 = vsel %vm36, %v33, 0.0
    %38 = vadd.xlane.f32.xlu0 %v37
    %v39 = vpop.xlane.xlu0 %38
    %v40 = vsel %vm36, %v34, 0.0
    %41 = vadd.xlane.f32.xlu0 %v40
    %v42 = vpop.xlane.xlu0 %41
    %v43 = vrcp.pop 32.0
    %v44 = vmul.f32 %v39, %v43
    %v45 = vmul.f32 %v42, %v43
    %v46 = vsub.f32 %v33, %v44
    %v47 = vsub.f32 %v34, %v45
    %v48 = vmul.f32 %v46, %v46
    %v49 = vmul.f32 %v47, %v47
    %v50 = vsel %vm36, %v48, 0.0
    %51 = vadd.xlane.f32.xlu0 %v50
    %v52 = vpop.xlane.xlu0 %51
    %v53 = vsel %vm36, %v49, 0.0
    %54 = vadd.xlane.f32.xlu0 %v53
    %v55 = vpop.xlane.xlu0 %54
    %v56 = vmul.f32 %v52, %v43
    %v57 = vmul.f32 %v55, %v43
    %v58 = vadd.f32 %v56, 1e-06
    %v59 = vadd.f32 %v57, 1e-06
    %v60 = vrsqrt.pop %v58
    %v61 = vrsqrt.pop %v59
    %v62 = vmul.f32 %v46, %v60
    %v63 = vmul.f32 %v47, %v61
    %v64 = vlaneseq
    %v65 = vshrl.u32 %v64, 7
    %v66 = vsub.s32 0, %v65
    %v67 = vrot.slane %v35, %v66
    %v68 = vmul.f32 %v62, %v67
    %v69 = vmul.f32 %v63, %v67
    %v70 = vlaneseq
    %v71 = vshrl.u32 %v70, 7
    %v72 = vsub.s32 1, %v71
    %v73 = vrot.slane %v35, %v72
    %v74 = vadd.f32 %v68, %v73
    %v75 = vadd.f32 %v69, %v73
    %v76 = vld [vmem:[%s1] sm:$0xff]
    %v77 = vld [vmem:[%s1 + $0x8] sm:$0xff]
    %v78 = vld [vmem:[%s1 + $0x10] sm:$0xff]
    %v79 = vld [vmem:[%s1 + $0x18] sm:$0xff]
    %v80 = vld [vmem:[%s2] sm:$0x1]
    %v82 = vlaneseq
    %v83 = vshrl.u32 %v82, 7
    %v84 = vsub.s32 0, %v83
    %v85 = vrot.slane %v80, %v84
    %v88 = vsel %vm36, %v74, 0
    %v91 = vsel %vm36, %v75, 0
    %93 = vmatprep.subr.mxu0 0.0
    %94 = vmatpush1.msra.mxu0 %v76
    %95 = vmatprep.subr.mxu0 0.0
    %96 = vmatpush1.msra.mxu0 %v77
    %97 = vmatprep.subr.mxu0 0.0
    %98 = vmatpush1.msra.mxu0 %v78
    %99 = vmatprep.subr.mxu0 0.0
    %100 = vmatpush1.msra.mxu0 %v79
    %101 = vmatprep.subr.mxu0 0.0
    %102 = vmatpush1.msra.mxu0 0.0
    %103 = vmatprep.subr.mxu0 0.0
    %104 = vmatpush1.msra.mxu0 0.0
    %105 = vmatprep.subr.mxu0 0.0
    %106 = vmatpush1.msra.mxu0 0.0
    %107 = vmatprep.subr.mxu0 0.0
    %108 = vmatpush1.msra.mxu0 0.0
    %109 = vmatprep.subr.mxu0 0.0
    %110 = vmatpush1.msra.mxu0 0.0
    %111 = vmatprep.subr.mxu0 0.0
    %112 = vmatpush1.msra.mxu0 0.0
    %113 = vmatprep.subr.mxu0 0.0
    %114 = vmatpush1.msra.mxu0 0.0
    %115 = vmatprep.subr.mxu0 0.0
    %116 = vmatpush1.msra.mxu0 0.0
    %117 = vmatprep.subr.mxu0 0.0
    %118 = vmatpush1.msra.mxu0 0.0
    %119 = vmatprep.subr.mxu0 0.0
    %120 = vmatpush1.msra.mxu0 0.0
    %121 = vmatprep.subr.mxu0 0.0
    %122 = vmatpush1.msra.mxu0 0.0
    %123 = vmatprep.subr.mxu0 0.0
    %124 = vmatpush1.msra.mxu0 0.0
    %125 = vmatprep.subr.mxu0 0.0
    %126 = vmatpush1.msra.mxu0 0.0
    %127 = vmatprep.subr.mxu0 0.0
    %128 = vmatpush1.msra.mxu0 0.0
    %129 = vmatprep.subr.mxu0 0.0
    %130 = vmatpush1.msra.mxu0 0.0
    %131 = vmatprep.subr.mxu0 0.0
    %132 = vmatpush1.msra.mxu0 0.0
    %133 = vmatprep.subr.mxu0 0.0
    %134 = vmatpush1.msra.mxu0 0.0
    %135 = vmatprep.subr.mxu0 0.0
    %136 = vmatpush1.msra.mxu0 0.0
    %137 = vmatprep.subr.mxu0 0.0
    %138 = vmatpush1.msra.mxu0 0.0
    %139 = vmatprep.subr.mxu0 0.0
    %140 = vmatpush1.msra.mxu0 0.0
    %141 = vmatprep.subr.mxu0 0.0
    %142 = vmatpush1.msra.mxu0 0.0
    %143 = vmatprep.subr.mxu0 0.0
    %144 = vmatpush1.msra.mxu0 0.0
    %145 = vmatprep.subr.mxu0 0.0
    %146 = vmatpush1.msra.mxu0 0.0
    %147 = vmatprep.subr.mxu0 0.0
    %148 = vmatpush1.msra.mxu0 0.0
    %149 = vmatprep.subr.mxu0 0.0
    %150 = vmatpush1.msra.mxu0 0.0
    %151 = vmatprep.subr.mxu0 0.0
    %152 = vmatpush1.msra.mxu0 0.0
    %153 = vmatprep.subr.mxu0 0.0
    %154 = vmatpush1.msra.mxu0 0.0
    %155 = vmatprep.subr.mxu0 0.0
    %156 = vmatpush1.msra.mxu0 0.0
    %157 = vmatprep.mubr.f32.mxu0 0.0
    %158 = vmatmul.mubr.f32.gmra.mrb[0].mxu0 %v88
    %v159 = vpop.f32.mrb[0].mxu0
    %v160 = vadd.f32 %v85, %v159
    %v161 = vpop.f32.mrb[0].mxu0
    %162 = vmatprep.mubr.f32.mxu0 0.0
    %163 = vmatmul.mubr.f32.gmra.mrb[0].mxu0 %v91
    %v164 = vpop.f32.mrb[0].mxu0
    %v165 = vadd.f32 %v85, %v164
    %v166 = vpop.f32.mrb[0].mxu0
    %167 = vdwg.mxu0
    %168 = vxpose.xlu0.b32.start [1/16] %v160, 128
    %169 = vxpose.xlu0.b32.cont [2/16] 0.0, 128
    %170 = vxpose.xlu0.b32.cont [3/16] 0.0, 128
    %171 = vxpose.xlu0.b32.cont [4/16] 0.0, 128
    %172 = vxpose.xlu0.b32.cont [5/16] 0.0, 128
    %173 = vxpose.xlu0.b32.cont [6/16] 0.0, 128
    %174 = vxpose.xlu0.b32.cont [7/16] 0.0, 128
    %175 = vxpose.xlu0.b32.cont [8/16] 0.0, 128
    %176 = vxpose.xlu0.b32.cont [9/16] 0.0, 128
    %177 = vxpose.xlu0.b32.cont [10/16] 0.0, 128
    %178 = vxpose.xlu0.b32.cont [11/16] 0.0, 128
    %179 = vxpose.xlu0.b32.cont [12/16] 0.0, 128
    %180 = vxpose.xlu0.b32.cont [13/16] 0.0, 128
    %181 = vxpose.xlu0.b32.cont [14/16] 0.0, 128
    %182 = vxpose.xlu0.b32.cont [15/16] 0.0, 128
    %183 = vxpose.xlu0.b32.end [16/16] 0.0, 128
    %v184 = vpop.trf.xlu0
    %v185 = vpop.trf.xlu0
    %v186 = vpop.trf.xlu0
    %v187 = vpop.trf.xlu0
    %v188 = vpop.trf.xlu0
    %v189 = vpop.trf.xlu0
    %v190 = vpop.trf.xlu0
    %v191 = vpop.trf.xlu0
    %v192 = vpop.trf.xlu0
    %v193 = vpop.trf.xlu0
    %v194 = vpop.trf.xlu0
    %v195 = vpop.trf.xlu0
    %v196 = vpop.trf.xlu0
    %v197 = vpop.trf.xlu0
    %v198 = vpop.trf.xlu0
    %v199 = vpop.trf.xlu0
    %200 = vxpose.xlu0.b32.start [1/16] %v165, 128
    %201 = vxpose.xlu0.b32.cont [2/16] 0.0, 128
    %202 = vxpose.xlu0.b32.cont [3/16] 0.0, 128
    %203 = vxpose.xlu0.b32.cont [4/16] 0.0, 128
    %204 = vxpose.xlu0.b32.cont [5/16] 0.0, 128
    %205 = vxpose.xlu0.b32.cont [6/16] 0.0, 128
    %206 = vxpose.xlu0.b32.cont [7/16] 0.0, 128
    %207 = vxpose.xlu0.b32.cont [8/16] 0.0, 128
    %208 = vxpose.xlu0.b32.cont [9/16] 0.0, 128
    %209 = vxpose.xlu0.b32.cont [10/16] 0.0, 128
    %210 = vxpose.xlu0.b32.cont [11/16] 0.0, 128
    %211 = vxpose.xlu0.b32.cont [12/16] 0.0, 128
    %212 = vxpose.xlu0.b32.cont [13/16] 0.0, 128
    %213 = vxpose.xlu0.b32.cont [14/16] 0.0, 128
    %214 = vxpose.xlu0.b32.cont [15/16] 0.0, 128
    %215 = vxpose.xlu0.b32.end [16/16] 0.0, 128
    %v216 = vpop.trf.xlu0
    %v217 = vpop.trf.xlu0
    %v218 = vpop.trf.xlu0
    %v219 = vpop.trf.xlu0
    %v220 = vpop.trf.xlu0
    %v221 = vpop.trf.xlu0
    %v222 = vpop.trf.xlu0
    %v223 = vpop.trf.xlu0
    %v224 = vpop.trf.xlu0
    %v225 = vpop.trf.xlu0
    %v226 = vpop.trf.xlu0
    %v227 = vpop.trf.xlu0
    %v228 = vpop.trf.xlu0
    %v229 = vpop.trf.xlu0
    %v230 = vpop.trf.xlu0
    %v231 = vpop.trf.xlu0
    %232 = vxpose.xlu0.b32.start [1/16] %v184, 128
    %233 = vxpose.xlu0.b32.cont [2/16] 0.0, 128
    %234 = vxpose.xlu0.b32.cont [3/16] 0.0, 128
    %235 = vxpose.xlu0.b32.cont [4/16] 0.0, 128
    %236 = vxpose.xlu0.b32.cont [5/16] 0.0, 128
    %237 = vxpose.xlu0.b32.cont [6/16] 0.0, 128
    %238 = vxpose.xlu0.b32.cont [7/16] 0.0, 128
    %239 = vxpose.xlu0.b32.cont [8/16] 0.0, 128
    %240 = vxpose.xlu0.b32.cont [9/16] 0.0, 128
    %241 = vxpose.xlu0.b32.cont [10/16] 0.0, 128
    %242 = vxpose.xlu0.b32.cont [11/16] 0.0, 128
    %243 = vxpose.xlu0.b32.cont [12/16] 0.0, 128
    %244 = vxpose.xlu0.b32.cont [13/16] 0.0, 128
    %245 = vxpose.xlu0.b32.cont [14/16] 0.0, 128
    %246 = vxpose.xlu0.b32.cont [15/16] 0.0, 128
    %247 = vxpose.xlu0.b32.end [16/16] 0.0, 128
    %v248 = vpop.trf.xlu0
    %v249 = vpop.trf.xlu0
    %v250 = vpop.trf.xlu0
    %v251 = vpop.trf.xlu0
    %v252 = vpop.trf.xlu0
    %v253 = vpop.trf.xlu0
    %v254 = vpop.trf.xlu0
    %v255 = vpop.trf.xlu0
    %v256 = vpop.trf.xlu0
    %v257 = vpop.trf.xlu0
    %v258 = vpop.trf.xlu0
    %v259 = vpop.trf.xlu0
    %v260 = vpop.trf.xlu0
    %v261 = vpop.trf.xlu0
    %v262 = vpop.trf.xlu0
    %v263 = vpop.trf.xlu0
    %264 = vxpose.xlu0.b32.start [1/16] %v185, 128
    %265 = vxpose.xlu0.b32.cont [2/16] 0.0, 128
    %266 = vxpose.xlu0.b32.cont [3/16] 0.0, 128
    %267 = vxpose.xlu0.b32.cont [4/16] 0.0, 128
    %268 = vxpose.xlu0.b32.cont [5/16] 0.0, 128
    %269 = vxpose.xlu0.b32.cont [6/16] 0.0, 128
    %270 = vxpose.xlu0.b32.cont [7/16] 0.0, 128
    %271 = vxpose.xlu0.b32.cont [8/16] 0.0, 128
    %272 = vxpose.xlu0.b32.cont [9/16] 0.0, 128
    %273 = vxpose.xlu0.b32.cont [10/16] 0.0, 128
    %274 = vxpose.xlu0.b32.cont [11/16] 0.0, 128
    %275 = vxpose.xlu0.b32.cont [12/16] 0.0, 128
    %276 = vxpose.xlu0.b32.cont [13/16] 0.0, 128
    %277 = vxpose.xlu0.b32.cont [14/16] 0.0, 128
    %278 = vxpose.xlu0.b32.cont [15/16] 0.0, 128
    %279 = vxpose.xlu0.b32.end [16/16] 0.0, 128
    %v280 = vpop.trf.xlu0
    %v281 = vpop.trf.xlu0
    %v282 = vpop.trf.xlu0
    %v283 = vpop.trf.xlu0
    %v284 = vpop.trf.xlu0
    %v285 = vpop.trf.xlu0
    %v286 = vpop.trf.xlu0
    %v287 = vpop.trf.xlu0
    %v288 = vpop.trf.xlu0
    %v289 = vpop.trf.xlu0
    %v290 = vpop.trf.xlu0
    %v291 = vpop.trf.xlu0
    %v292 = vpop.trf.xlu0
    %v293 = vpop.trf.xlu0
    %v294 = vpop.trf.xlu0
    %v295 = vpop.trf.xlu0
    %296 = vxpose.xlu0.b32.start [1/16] %v186, 128
    %297 = vxpose.xlu0.b32.cont [2/16] 0.0, 128
    %298 = vxpose.xlu0.b32.cont [3/16] 0.0, 128
    %299 = vxpose.xlu0.b32.cont [4/16] 0.0, 128
    %300 = vxpose.xlu0.b32.cont [5/16] 0.0, 128
    %301 = vxpose.xlu0.b32.cont [6/16] 0.0, 128
    %302 = vxpose.xlu0.b32.cont [7/16] 0.0, 128
    %303 = vxpose.xlu0.b32.cont [8/16] 0.0, 128
    %304 = vxpose.xlu0.b32.cont [9/16] 0.0, 128
    %305 = vxpose.xlu0.b32.cont [10/16] 0.0, 128
    %306 = vxpose.xlu0.b32.cont [11/16] 0.0, 128
    %307 = vxpose.xlu0.b32.cont [12/16] 0.0, 128
    %308 = vxpose.xlu0.b32.cont [13/16] 0.0, 128
    %309 = vxpose.xlu0.b32.cont [14/16] 0.0, 128
    %310 = vxpose.xlu0.b32.cont [15/16] 0.0, 128
    %311 = vxpose.xlu0.b32.end [16/16] 0.0, 128
    %v312 = vpop.trf.xlu0
    %v313 = vpop.trf.xlu0
    %v314 = vpop.trf.xlu0
    %v315 = vpop.trf.xlu0
    %v316 = vpop.trf.xlu0
    %v317 = vpop.trf.xlu0
    %v318 = vpop.trf.xlu0
    %v319 = vpop.trf.xlu0
    %v320 = vpop.trf.xlu0
    %v321 = vpop.trf.xlu0
    %v322 = vpop.trf.xlu0
    %v323 = vpop.trf.xlu0
    %v324 = vpop.trf.xlu0
    %v325 = vpop.trf.xlu0
    %v326 = vpop.trf.xlu0
    %v327 = vpop.trf.xlu0
    %328 = vxpose.xlu0.b32.start [1/16] %v187, 128
    %329 = vxpose.xlu0.b32.cont [2/16] 0.0, 128
    %330 = vxpose.xlu0.b32.cont [3/16] 0.0, 128
    %331 = vxpose.xlu0.b32.cont [4/16] 0.0, 128
    %332 = vxpose.xlu0.b32.cont [5/16] 0.0, 128
    %333 = vxpose.xlu0.b32.cont [6/16] 0.0, 128
    %334 = vxpose.xlu0.b32.cont [7/16] 0.0, 128
    %335 = vxpose.xlu0.b32.cont [8/16] 0.0, 128
    %336 = vxpose.xlu0.b32.cont [9/16] 0.0, 128
    %337 = vxpose.xlu0.b32.cont [10/16] 0.0, 128
    %338 = vxpose.xlu0.b32.cont [11/16] 0.0, 128
    %339 = vxpose.xlu0.b32.cont [12/16] 0.0, 128
    %340 = vxpose.xlu0.b32.cont [13/16] 0.0, 128
    %341 = vxpose.xlu0.b32.cont [14/16] 0.0, 128
    %342 = vxpose.xlu0.b32.cont [15/16] 0.0, 128
    %343 = vxpose.xlu0.b32.end [16/16] 0.0, 128
    %v344 = vpop.trf.xlu0
    %v345 = vpop.trf.xlu0
    %v346 = vpop.trf.xlu0
    %v347 = vpop.trf.xlu0
    %v348 = vpop.trf.xlu0
    %v349 = vpop.trf.xlu0
    %v350 = vpop.trf.xlu0
    %v351 = vpop.trf.xlu0
    %v352 = vpop.trf.xlu0
    %v353 = vpop.trf.xlu0
    %v354 = vpop.trf.xlu0
    %v355 = vpop.trf.xlu0
    %v356 = vpop.trf.xlu0
    %v357 = vpop.trf.xlu0
    %v358 = vpop.trf.xlu0
    %v359 = vpop.trf.xlu0
    %360 = vxpose.xlu0.b32.start [1/16] %v216, 128
    %361 = vxpose.xlu0.b32.cont [2/16] 0.0, 128
    %362 = vxpose.xlu0.b32.cont [3/16] 0.0, 128
    %363 = vxpose.xlu0.b32.cont [4/16] 0.0, 128
    %364 = vxpose.xlu0.b32.cont [5/16] 0.0, 128
    %365 = vxpose.xlu0.b32.cont [6/16] 0.0, 128
    %366 = vxpose.xlu0.b32.cont [7/16] 0.0, 128
    %367 = vxpose.xlu0.b32.cont [8/16] 0.0, 128
    %368 = vxpose.xlu0.b32.cont [9/16] 0.0, 128
    %369 = vxpose.xlu0.b32.cont [10/16] 0.0, 128
    %370 = vxpose.xlu0.b32.cont [11/16] 0.0, 128
    %371 = vxpose.xlu0.b32.cont [12/16] 0.0, 128
    %372 = vxpose.xlu0.b32.cont [13/16] 0.0, 128
    %373 = vxpose.xlu0.b32.cont [14/16] 0.0, 128
    %374 = vxpose.xlu0.b32.cont [15/16] 0.0, 128
    %375 = vxpose.xlu0.b32.end [16/16] 0.0, 128
    %v376 = vpop.trf.xlu0
    %v377 = vpop.trf.xlu0
    %v378 = vpop.trf.xlu0
    %v379 = vpop.trf.xlu0
    %v380 = vpop.trf.xlu0
    %v381 = vpop.trf.xlu0
    %v382 = vpop.trf.xlu0
    %v383 = vpop.trf.xlu0
    %v384 = vpop.trf.xlu0
    %v385 = vpop.trf.xlu0
    %v386 = vpop.trf.xlu0
    %v387 = vpop.trf.xlu0
    %v388 = vpop.trf.xlu0
    %v389 = vpop.trf.xlu0
    %v390 = vpop.trf.xlu0
    %v391 = vpop.trf.xlu0
    %392 = vxpose.xlu0.b32.start [1/16] %v217, 128
    %393 = vxpose.xlu0.b32.cont [2/16] 0.0, 128
    %394 = vxpose.xlu0.b32.cont [3/16] 0.0, 128
    %395 = vxpose.xlu0.b32.cont [4/16] 0.0, 128
    %396 = vxpose.xlu0.b32.cont [5/16] 0.0, 128
    %397 = vxpose.xlu0.b32.cont [6/16] 0.0, 128
    %398 = vxpose.xlu0.b32.cont [7/16] 0.0, 128
    %399 = vxpose.xlu0.b32.cont [8/16] 0.0, 128
    %400 = vxpose.xlu0.b32.cont [9/16] 0.0, 128
    %401 = vxpose.xlu0.b32.cont [10/16] 0.0, 128
    %402 = vxpose.xlu0.b32.cont [11/16] 0.0, 128
    %403 = vxpose.xlu0.b32.cont [12/16] 0.0, 128
    %404 = vxpose.xlu0.b32.cont [13/16] 0.0, 128
    %405 = vxpose.xlu0.b32.cont [14/16] 0.0, 128
    %406 = vxpose.xlu0.b32.cont [15/16] 0.0, 128
    %407 = vxpose.xlu0.b32.end [16/16] 0.0, 128
    %v408 = vpop.trf.xlu0
    %v409 = vpop.trf.xlu0
    %v410 = vpop.trf.xlu0
    %v411 = vpop.trf.xlu0
    %v412 = vpop.trf.xlu0
    %v413 = vpop.trf.xlu0
    %v414 = vpop.trf.xlu0
    %v415 = vpop.trf.xlu0
    %v416 = vpop.trf.xlu0
    %v417 = vpop.trf.xlu0
    %v418 = vpop.trf.xlu0
    %v419 = vpop.trf.xlu0
    %v420 = vpop.trf.xlu0
    %v421 = vpop.trf.xlu0
    %v422 = vpop.trf.xlu0
    %v423 = vpop.trf.xlu0
    %424 = vxpose.xlu0.b32.start [1/16] %v218, 128
    %425 = vxpose.xlu0.b32.cont [2/16] 0.0, 128
    %426 = vxpose.xlu0.b32.cont [3/16] 0.0, 128
    %427 = vxpose.xlu0.b32.cont [4/16] 0.0, 128
    %428 = vxpose.xlu0.b32.cont [5/16] 0.0, 128
    %429 = vxpose.xlu0.b32.cont [6/16] 0.0, 128
    %430 = vxpose.xlu0.b32.cont [7/16] 0.0, 128
    %431 = vxpose.xlu0.b32.cont [8/16] 0.0, 128
    %432 = vxpose.xlu0.b32.cont [9/16] 0.0, 128
    %433 = vxpose.xlu0.b32.cont [10/16] 0.0, 128
    %434 = vxpose.xlu0.b32.cont [11/16] 0.0, 128
    %435 = vxpose.xlu0.b32.cont [12/16] 0.0, 128
    %436 = vxpose.xlu0.b32.cont [13/16] 0.0, 128
    %437 = vxpose.xlu0.b32.cont [14/16] 0.0, 128
    %438 = vxpose.xlu0.b32.cont [15/16] 0.0, 128
    %439 = vxpose.xlu0.b32.end [16/16] 0.0, 128
    %v440 = vpop.trf.xlu0
    %v441 = vpop.trf.xlu0
    %v442 = vpop.trf.xlu0
    %v443 = vpop.trf.xlu0
    %v444 = vpop.trf.xlu0
    %v445 = vpop.trf.xlu0
    %v446 = vpop.trf.xlu0
    %v447 = vpop.trf.xlu0
    %v448 = vpop.trf.xlu0
    %v449 = vpop.trf.xlu0
    %v450 = vpop.trf.xlu0
    %v451 = vpop.trf.xlu0
    %v452 = vpop.trf.xlu0
    %v453 = vpop.trf.xlu0
    %v454 = vpop.trf.xlu0
    %v455 = vpop.trf.xlu0
    %456 = vxpose.xlu0.b32.start [1/16] %v219, 128
    %457 = vxpose.xlu0.b32.cont [2/16] 0.0, 128
    %458 = vxpose.xlu0.b32.cont [3/16] 0.0, 128
    %459 = vxpose.xlu0.b32.cont [4/16] 0.0, 128
    %460 = vxpose.xlu0.b32.cont [5/16] 0.0, 128
    %461 = vxpose.xlu0.b32.cont [6/16] 0.0, 128
    %462 = vxpose.xlu0.b32.cont [7/16] 0.0, 128
    %463 = vxpose.xlu0.b32.cont [8/16] 0.0, 128
    %464 = vxpose.xlu0.b32.cont [9/16] 0.0, 128
    %465 = vxpose.xlu0.b32.cont [10/16] 0.0, 128
    %466 = vxpose.xlu0.b32.cont [11/16] 0.0, 128
    %467 = vxpose.xlu0.b32.cont [12/16] 0.0, 128
    %468 = vxpose.xlu0.b32.cont [13/16] 0.0, 128
    %469 = vxpose.xlu0.b32.cont [14/16] 0.0, 128
    %470 = vxpose.xlu0.b32.cont [15/16] 0.0, 128
    %471 = vxpose.xlu0.b32.end [16/16] 0.0, 128
    %v472 = vpop.trf.xlu0
    %v473 = vpop.trf.xlu0
    %v474 = vpop.trf.xlu0
    %v475 = vpop.trf.xlu0
    %v476 = vpop.trf.xlu0
    %v477 = vpop.trf.xlu0
    %v478 = vpop.trf.xlu0
    %v479 = vpop.trf.xlu0
    %v480 = vpop.trf.xlu0
    %v481 = vpop.trf.xlu0
    %v482 = vpop.trf.xlu0
    %v483 = vpop.trf.xlu0
    %v484 = vpop.trf.xlu0
    %v485 = vpop.trf.xlu0
    %v486 = vpop.trf.xlu0
    %v487 = vpop.trf.xlu0
    %490 = vrot.lane.b32.xlu0 %v160, 96
    %v491 = vpop.permute.xlu0 %490
    %492 = vrot.lane.b32.xlu0 %v165, 96
    %v493 = vpop.permute.xlu0 %492
    %496 = vxpose.xlu0.b32.start [1/16] %v491, 128
    %497 = vxpose.xlu0.b32.cont [2/16] 0.0, 128
    %498 = vxpose.xlu0.b32.cont [3/16] 0.0, 128
    %499 = vxpose.xlu0.b32.cont [4/16] 0.0, 128
    %500 = vxpose.xlu0.b32.cont [5/16] 0.0, 128
    %501 = vxpose.xlu0.b32.cont [6/16] 0.0, 128
    %502 = vxpose.xlu0.b32.cont [7/16] 0.0, 128
    %503 = vxpose.xlu0.b32.cont [8/16] 0.0, 128
    %504 = vxpose.xlu0.b32.cont [9/16] 0.0, 128
    %505 = vxpose.xlu0.b32.cont [10/16] 0.0, 128
    %506 = vxpose.xlu0.b32.cont [11/16] 0.0, 128
    %507 = vxpose.xlu0.b32.cont [12/16] 0.0, 128
    %508 = vxpose.xlu0.b32.cont [13/16] 0.0, 128
    %509 = vxpose.xlu0.b32.cont [14/16] 0.0, 128
    %510 = vxpose.xlu0.b32.cont [15/16] 0.0, 128
    %511 = vxpose.xlu0.b32.end [16/16] 0.0, 128
    %v512 = vpop.trf.xlu0
    %v513 = vpop.trf.xlu0
    %v514 = vpop.trf.xlu0
    %v515 = vpop.trf.xlu0
    %v516 = vpop.trf.xlu0
    %v517 = vpop.trf.xlu0
    %v518 = vpop.trf.xlu0
    %v519 = vpop.trf.xlu0
    %v520 = vpop.trf.xlu0
    %v521 = vpop.trf.xlu0
    %v522 = vpop.trf.xlu0
    %v523 = vpop.trf.xlu0
    %v524 = vpop.trf.xlu0
    %v525 = vpop.trf.xlu0
    %v526 = vpop.trf.xlu0
    %v527 = vpop.trf.xlu0
    %528 = vxpose.xlu0.b32.start [1/16] %v493, 128
    %529 = vxpose.xlu0.b32.cont [2/16] 0.0, 128
    %530 = vxpose.xlu0.b32.cont [3/16] 0.0, 128
    %531 = vxpose.xlu0.b32.cont [4/16] 0.0, 128
    %532 = vxpose.xlu0.b32.cont [5/16] 0.0, 128
    %533 = vxpose.xlu0.b32.cont [6/16] 0.0, 128
    %534 = vxpose.xlu0.b32.cont [7/16] 0.0, 128
    %535 = vxpose.xlu0.b32.cont [8/16] 0.0, 128
    %536 = vxpose.xlu0.b32.cont [9/16] 0.0, 128
    %537 = vxpose.xlu0.b32.cont [10/16] 0.0, 128
    %538 = vxpose.xlu0.b32.cont [11/16] 0.0, 128
    %539 = vxpose.xlu0.b32.cont [12/16] 0.0, 128
    %540 = vxpose.xlu0.b32.cont [13/16] 0.0, 128
    %541 = vxpose.xlu0.b32.cont [14/16] 0.0, 128
    %542 = vxpose.xlu0.b32.cont [15/16] 0.0, 128
    %543 = vxpose.xlu0.b32.end [16/16] 0.0, 128
    %v544 = vpop.trf.xlu0
    %v545 = vpop.trf.xlu0
    %v546 = vpop.trf.xlu0
    %v547 = vpop.trf.xlu0
    %v548 = vpop.trf.xlu0
    %v549 = vpop.trf.xlu0
    %v550 = vpop.trf.xlu0
    %v551 = vpop.trf.xlu0
    %v552 = vpop.trf.xlu0
    %v553 = vpop.trf.xlu0
    %v554 = vpop.trf.xlu0
    %v555 = vpop.trf.xlu0
    %v556 = vpop.trf.xlu0
    %v557 = vpop.trf.xlu0
    %v558 = vpop.trf.xlu0
    %v559 = vpop.trf.xlu0
    %560 = vrot.lane.b32.xlu0 %v160, 64
    %v561 = vpop.permute.xlu0 %560
    %562 = vrot.lane.b32.xlu0 %v165, 64
    %v563 = vpop.permute.xlu0 %562
    %566 = vxpose.xlu0.b32.start [1/16] %v561, 128
    %567 = vxpose.xlu0.b32.cont [2/16] 0.0, 128
    %568 = vxpose.xlu0.b32.cont [3/16] 0.0, 128
    %569 = vxpose.xlu0.b32.cont [4/16] 0.0, 128
    %570 = vxpose.xlu0.b32.cont [5/16] 0.0, 128
    %571 = vxpose.xlu0.b32.cont [6/16] 0.0, 128
    %572 = vxpose.xlu0.b32.cont [7/16] 0.0, 128
    %573 = vxpose.xlu0.b32.cont [8/16] 0.0, 128
    %574 = vxpose.xlu0.b32.cont [9/16] 0.0, 128
    %575 = vxpose.xlu0.b32.cont [10/16] 0.0, 128
    %576 = vxpose.xlu0.b32.cont [11/16] 0.0, 128
    %577 = vxpose.xlu0.b32.cont [12/16] 0.0, 128
    %578 = vxpose.xlu0.b32.cont [13/16] 0.0, 128
    %579 = vxpose.xlu0.b32.cont [14/16] 0.0, 128
    %580 = vxpose.xlu0.b32.cont [15/16] 0.0, 128
    %581 = vxpose.xlu0.b32.end [16/16] 0.0, 128
    %v582 = vpop.trf.xlu0
    %v583 = vpop.trf.xlu0
    %v584 = vpop.trf.xlu0
    %v585 = vpop.trf.xlu0
    %v586 = vpop.trf.xlu0
    %v587 = vpop.trf.xlu0
    %v588 = vpop.trf.xlu0
    %v589 = vpop.trf.xlu0
    %v590 = vpop.trf.xlu0
    %v591 = vpop.trf.xlu0
    %v592 = vpop.trf.xlu0
    %v593 = vpop.trf.xlu0
    %v594 = vpop.trf.xlu0
    %v595 = vpop.trf.xlu0
    %v596 = vpop.trf.xlu0
    %v597 = vpop.trf.xlu0
    %598 = vxpose.xlu0.b32.start [1/16] %v563, 128
    %599 = vxpose.xlu0.b32.cont [2/16] 0.0, 128
    %600 = vxpose.xlu0.b32.cont [3/16] 0.0, 128
    %601 = vxpose.xlu0.b32.cont [4/16] 0.0, 128
    %602 = vxpose.xlu0.b32.cont [5/16] 0.0, 128
    %603 = vxpose.xlu0.b32.cont [6/16] 0.0, 128
    %604 = vxpose.xlu0.b32.cont [7/16] 0.0, 128
    %605 = vxpose.xlu0.b32.cont [8/16] 0.0, 128
    %606 = vxpose.xlu0.b32.cont [9/16] 0.0, 128
    %607 = vxpose.xlu0.b32.cont [10/16] 0.0, 128
    %608 = vxpose.xlu0.b32.cont [11/16] 0.0, 128
    %609 = vxpose.xlu0.b32.cont [12/16] 0.0, 128
    %610 = vxpose.xlu0.b32.cont [13/16] 0.0, 128
    %611 = vxpose.xlu0.b32.cont [14/16] 0.0, 128
    %612 = vxpose.xlu0.b32.cont [15/16] 0.0, 128
    %613 = vxpose.xlu0.b32.end [16/16] 0.0, 128
    %v614 = vpop.trf.xlu0
    %v615 = vpop.trf.xlu0
    %v616 = vpop.trf.xlu0
    %v617 = vpop.trf.xlu0
    %v618 = vpop.trf.xlu0
    %v619 = vpop.trf.xlu0
    %v620 = vpop.trf.xlu0
    %v621 = vpop.trf.xlu0
    %v622 = vpop.trf.xlu0
    %v623 = vpop.trf.xlu0
    %v624 = vpop.trf.xlu0
    %v625 = vpop.trf.xlu0
    %v626 = vpop.trf.xlu0
    %v627 = vpop.trf.xlu0
    %v628 = vpop.trf.xlu0
    %v629 = vpop.trf.xlu0
    %vm630 = vcmask 64512
    %v632 = vsel %vm630, %v248, 0
    %634 = vmatprep.subr.mxu0 0.0
    %635 = vmatpush1.msra.mxu0 %v512
    %636 = vmatprep.subr.mxu0 0.0
    %637 = vmatpush1.msra.mxu0 0.0
    %638 = vmatprep.subr.mxu0 0.0
    %639 = vmatpush1.msra.mxu0 0.0
    %640 = vmatprep.subr.mxu0 0.0
    %641 = vmatpush1.msra.mxu0 0.0
    %642 = vmatprep.subr.mxu0 0.0
    %643 = vmatpush1.msra.mxu0 0.0
    %644 = vmatprep.subr.mxu0 0.0
    %645 = vmatpush1.msra.mxu0 0.0
    %646 = vmatprep.subr.mxu0 0.0
    %647 = vmatpush1.msra.mxu0 0.0
    %648 = vmatprep.subr.mxu0 0.0
    %649 = vmatpush1.msra.mxu0 0.0
    %650 = vmatprep.subr.mxu0 0.0
    %651 = vmatpush1.msra.mxu0 0.0
    %652 = vmatprep.subr.mxu0 0.0
    %653 = vmatpush1.msra.mxu0 0.0
    %654 = vmatprep.subr.mxu0 0.0
    %655 = vmatpush1.msra.mxu0 0.0
    %656 = vmatprep.subr.mxu0 0.0
    %657 = vmatpush1.msra.mxu0 0.0
    %658 = vmatprep.subr.mxu0 0.0
    %659 = vmatpush1.msra.mxu0 0.0
    %660 = vmatprep.subr.mxu0 0.0
    %661 = vmatpush1.msra.mxu0 0.0
    %662 = vmatprep.subr.mxu0 0.0
    %663 = vmatpush1.msra.mxu0 0.0
    %664 = vmatprep.subr.mxu0 0.0
    %665 = vmatpush1.msra.mxu0 0.0
    %666 = vmatprep.subr.mxu0 0.0
    %667 = vmatpush1.msra.mxu0 0.0
    %668 = vmatprep.subr.mxu0 0.0
    %669 = vmatpush1.msra.mxu0 0.0
    %670 = vmatprep.subr.mxu0 0.0
    %671 = vmatpush1.msra.mxu0 0.0
    %672 = vmatprep.subr.mxu0 0.0
    %673 = vmatpush1.msra.mxu0 0.0
    %674 = vmatprep.subr.mxu0 0.0
    %675 = vmatpush1.msra.mxu0 0.0
    %676 = vmatprep.subr.mxu0 0.0
    %677 = vmatpush1.msra.mxu0 0.0
    %678 = vmatprep.subr.mxu0 0.0
    %679 = vmatpush1.msra.mxu0 0.0
    %680 = vmatprep.subr.mxu0 0.0
    %681 = vmatpush1.msra.mxu0 0.0
    %682 = vmatprep.subr.mxu0 0.0
    %683 = vmatpush1.msra.mxu0 0.0
    %684 = vmatprep.subr.mxu0 0.0
    %685 = vmatpush1.msra.mxu0 0.0
    %686 = vmatprep.subr.mxu0 0.0
    %687 = vmatpush1.msra.mxu0 0.0
    %688 = vmatprep.subr.mxu0 0.0
    %689 = vmatpush1.msra.mxu0 0.0
    %690 = vmatprep.subr.mxu0 0.0
    %691 = vmatpush1.msra.mxu0 0.0
    %692 = vmatprep.subr.mxu0 0.0
    %693 = vmatpush1.msra.mxu0 0.0
    %694 = vmatprep.subr.mxu0 0.0
    %695 = vmatpush1.msra.mxu0 0.0
    %696 = vmatprep.subr.mxu0 0.0
    %697 = vmatpush1.msra.mxu0 0.0
    %698 = vmatprep.mubr.f32.mxu0 0.0
    %699 = vmatmul.mubr.f32.gmra.mrb[0].mxu0 %v632
    %v700 = vpop.f32.mrb[0].mxu0
    %v701 = vadd.f32 0.0, %v700
    %v702 = vpop.f32.mrb[0].mxu0
    %703 = vdwg.mxu0
    %v705 = vsel %vm630, %v280, 0
    %707 = vmatprep.subr.mxu0 0.0
    %708 = vmatpush1.msra.mxu0 %v513
    %709 = vmatprep.subr.mxu0 0.0
    %710 = vmatpush1.msra.mxu0 0.0
    %711 = vmatprep.subr.mxu0 0.0
    %712 = vmatpush1.msra.mxu0 0.0
    %713 = vmatprep.subr.mxu0 0.0
    %714 = vmatpush1.msra.mxu0 0.0
    %715 = vmatprep.subr.mxu0 0.0
    %716 = vmatpush1.msra.mxu0 0.0
    %717 = vmatprep.subr.mxu0 0.0
    %718 = vmatpush1.msra.mxu0 0.0
    %719 = vmatprep.subr.mxu0 0.0
    %720 = vmatpush1.msra.mxu0 0.0
    %721 = vmatprep.subr.mxu0 0.0
    %722 = vmatpush1.msra.mxu0 0.0
    %723 = vmatprep.subr.mxu0 0.0
    %724 = vmatpush1.msra.mxu0 0.0
    %725 = vmatprep.subr.mxu0 0.0
    %726 = vmatpush1.msra.mxu0 0.0
    %727 = vmatprep.subr.mxu0 0.0
    %728 = vmatpush1.msra.mxu0 0.0
    %729 = vmatprep.subr.mxu0 0.0
    %730 = vmatpush1.msra.mxu0 0.0
    %731 = vmatprep.subr.mxu0 0.0
    %732 = vmatpush1.msra.mxu0 0.0
    %733 = vmatprep.subr.mxu0 0.0
    %734 = vmatpush1.msra.mxu0 0.0
    %735 = vmatprep.subr.mxu0 0.0
    %736 = vmatpush1.msra.mxu0 0.0
    %737 = vmatprep.subr.mxu0 0.0
    %738 = vmatpush1.msra.mxu0 0.0
    %739 = vmatprep.subr.mxu0 0.0
    %740 = vmatpush1.msra.mxu0 0.0
    %741 = vmatprep.subr.mxu0 0.0
    %742 = vmatpush1.msra.mxu0 0.0
    %743 = vmatprep.subr.mxu0 0.0
    %744 = vmatpush1.msra.mxu0 0.0
    %745 = vmatprep.subr.mxu0 0.0
    %746 = vmatpush1.msra.mxu0 0.0
    %747 = vmatprep.subr.mxu0 0.0
    %748 = vmatpush1.msra.mxu0 0.0
    %749 = vmatprep.subr.mxu0 0.0
    %750 = vmatpush1.msra.mxu0 0.0
    %751 = vmatprep.subr.mxu0 0.0
    %752 = vmatpush1.msra.mxu0 0.0
    %753 = vmatprep.subr.mxu0 0.0
    %754 = vmatpush1.msra.mxu0 0.0
    %755 = vmatprep.subr.mxu0 0.0
    %756 = vmatpush1.msra.mxu0 0.0
    %757 = vmatprep.subr.mxu0 0.0
    %758 = vmatpush1.msra.mxu0 0.0
    %759 = vmatprep.subr.mxu0 0.0
    %760 = vmatpush1.msra.mxu0 0.0
    %761 = vmatprep.subr.mxu0 0.0
    %762 = vmatpush1.msra.mxu0 0.0
    %763 = vmatprep.subr.mxu0 0.0
    %764 = vmatpush1.msra.mxu0 0.0
    %765 = vmatprep.subr.mxu0 0.0
    %766 = vmatpush1.msra.mxu0 0.0
    %767 = vmatprep.subr.mxu0 0.0
    %768 = vmatpush1.msra.mxu0 0.0
    %769 = vmatprep.subr.mxu0 0.0
    %770 = vmatpush1.msra.mxu0 0.0
    %771 = vmatprep.mubr.f32.mxu0 0.0
    %772 = vmatmul.mubr.f32.gmra.mrb[0].mxu0 %v705
    %v773 = vpop.f32.mrb[0].mxu0
    %v774 = vadd.f32 0.0, %v773
    %v775 = vpop.f32.mrb[0].mxu0
    %776 = vdwg.mxu0
    %v778 = vsel %vm630, %v312, 0
    %780 = vmatprep.subr.mxu0 0.0
    %781 = vmatpush1.msra.mxu0 %v514
    %782 = vmatprep.subr.mxu0 0.0
    %783 = vmatpush1.msra.mxu0 0.0
    %784 = vmatprep.subr.mxu0 0.0
    %785 = vmatpush1.msra.mxu0 0.0
    %786 = vmatprep.subr.mxu0 0.0
    %787 = vmatpush1.msra.mxu0 0.0
    %788 = vmatprep.subr.mxu0 0.0
    %789 = vmatpush1.msra.mxu0 0.0
    %790 = vmatprep.subr.mxu0 0.0
    %791 = vmatpush1.msra.mxu0 0.0
    %792 = vmatprep.subr.mxu0 0.0
    %793 = vmatpush1.msra.mxu0 0.0
    %794 = vmatprep.subr.mxu0 0.0
    %795 = vmatpush1.msra.mxu0 0.0
    %796 = vmatprep.subr.mxu0 0.0
    %797 = vmatpush1.msra.mxu0 0.0
    %798 = vmatprep.subr.mxu0 0.0
    %799 = vmatpush1.msra.mxu0 0.0
    %800 = vmatprep.subr.mxu0 0.0
    %801 = vmatpush1.msra.mxu0 0.0
    %802 = vmatprep.subr.mxu0 0.0
    %803 = vmatpush1.msra.mxu0 0.0
    %804 = vmatprep.subr.mxu0 0.0
    %805 = vmatpush1.msra.mxu0 0.0
    %806 = vmatprep.subr.mxu0 0.0
    %807 = vmatpush1.msra.mxu0 0.0
    %808 = vmatprep.subr.mxu0 0.0
    %809 = vmatpush1.msra.mxu0 0.0
    %810 = vmatprep.subr.mxu0 0.0
    %811 = vmatpush1.msra.mxu0 0.0
    %812 = vmatprep.subr.mxu0 0.0
    %813 = vmatpush1.msra.mxu0 0.0
    %814 = vmatprep.subr.mxu0 0.0
    %815 = vmatpush1.msra.mxu0 0.0
    %816 = vmatprep.subr.mxu0 0.0
    %817 = vmatpush1.msra.mxu0 0.0
    %818 = vmatprep.subr.mxu0 0.0
    %819 = vmatpush1.msra.mxu0 0.0
    %820 = vmatprep.subr.mxu0 0.0
    %821 = vmatpush1.msra.mxu0 0.0
    %822 = vmatprep.subr.mxu0 0.0
    %823 = vmatpush1.msra.mxu0 0.0
    %824 = vmatprep.subr.mxu0 0.0
    %825 = vmatpush1.msra.mxu0 0.0
    %826 = vmatprep.subr.mxu0 0.0
    %827 = vmatpush1.msra.mxu0 0.0
    %828 = vmatprep.subr.mxu0 0.0
    %829 = vmatpush1.msra.mxu0 0.0
    %830 = vmatprep.subr.mxu0 0.0
    %831 = vmatpush1.msra.mxu0 0.0
    %832 = vmatprep.subr.mxu0 0.0
    %833 = vmatpush1.msra.mxu0 0.0
    %834 = vmatprep.subr.mxu0 0.0
    %835 = vmatpush1.msra.mxu0 0.0
    %836 = vmatprep.subr.mxu0 0.0
    %837 = vmatpush1.msra.mxu0 0.0
    %838 = vmatprep.subr.mxu0 0.0
    %839 = vmatpush1.msra.mxu0 0.0
    %840 = vmatprep.subr.mxu0 0.0
    %841 = vmatpush1.msra.mxu0 0.0
    %842 = vmatprep.subr.mxu0 0.0
    %843 = vmatpush1.msra.mxu0 0.0
    %844 = vmatprep.mubr.f32.mxu0 0.0
    %845 = vmatmul.mubr.f32.gmra.mrb[0].mxu0 %v778
    %v846 = vpop.f32.mrb[0].mxu0
    %v847 = vadd.f32 0.0, %v846
    %v848 = vpop.f32.mrb[0].mxu0
    %849 = vdwg.mxu0
    %v851 = vsel %vm630, %v344, 0
    %853 = vmatprep.subr.mxu0 0.0
    %854 = vmatpush1.msra.mxu0 %v515
    %855 = vmatprep.subr.mxu0 0.0
    %856 = vmatpush1.msra.mxu0 0.0
    %857 = vmatprep.subr.mxu0 0.0
    %858 = vmatpush1.msra.mxu0 0.0
    %859 = vmatprep.subr.mxu0 0.0
    %860 = vmatpush1.msra.mxu0 0.0
    %861 = vmatprep.subr.mxu0 0.0
    %862 = vmatpush1.msra.mxu0 0.0
    %863 = vmatprep.subr.mxu0 0.0
    %864 = vmatpush1.msra.mxu0 0.0
    %865 = vmatprep.subr.mxu0 0.0
    %866 = vmatpush1.msra.mxu0 0.0
    %867 = vmatprep.subr.mxu0 0.0
    %868 = vmatpush1.msra.mxu0 0.0
    %869 = vmatprep.subr.mxu0 0.0
    %870 = vmatpush1.msra.mxu0 0.0
    %871 = vmatprep.subr.mxu0 0.0
    %872 = vmatpush1.msra.mxu0 0.0
    %873 = vmatprep.subr.mxu0 0.0
    %874 = vmatpush1.msra.mxu0 0.0
    %875 = vmatprep.subr.mxu0 0.0
    %876 = vmatpush1.msra.mxu0 0.0
    %877 = vmatprep.subr.mxu0 0.0
    %878 = vmatpush1.msra.mxu0 0.0
    %879 = vmatprep.subr.mxu0 0.0
    %880 = vmatpush1.msra.mxu0 0.0
    %881 = vmatprep.subr.mxu0 0.0
    %882 = vmatpush1.msra.mxu0 0.0
    %883 = vmatprep.subr.mxu0 0.0
    %884 = vmatpush1.msra.mxu0 0.0
    %885 = vmatprep.subr.mxu0 0.0
    %886 = vmatpush1.msra.mxu0 0.0
    %887 = vmatprep.subr.mxu0 0.0
    %888 = vmatpush1.msra.mxu0 0.0
    %889 = vmatprep.subr.mxu0 0.0
    %890 = vmatpush1.msra.mxu0 0.0
    %891 = vmatprep.subr.mxu0 0.0
    %892 = vmatpush1.msra.mxu0 0.0
    %893 = vmatprep.subr.mxu0 0.0
    %894 = vmatpush1.msra.mxu0 0.0
    %895 = vmatprep.subr.mxu0 0.0
    %896 = vmatpush1.msra.mxu0 0.0
    %897 = vmatprep.subr.mxu0 0.0
    %898 = vmatpush1.msra.mxu0 0.0
    %899 = vmatprep.subr.mxu0 0.0
    %900 = vmatpush1.msra.mxu0 0.0
    %901 = vmatprep.subr.mxu0 0.0
    %902 = vmatpush1.msra.mxu0 0.0
    %903 = vmatprep.subr.mxu0 0.0
    %904 = vmatpush1.msra.mxu0 0.0
    %905 = vmatprep.subr.mxu0 0.0
    %906 = vmatpush1.msra.mxu0 0.0
    %907 = vmatprep.subr.mxu0 0.0
    %908 = vmatpush1.msra.mxu0 0.0
    %909 = vmatprep.subr.mxu0 0.0
    %910 = vmatpush1.msra.mxu0 0.0
    %911 = vmatprep.subr.mxu0 0.0
    %912 = vmatpush1.msra.mxu0 0.0
    %913 = vmatprep.subr.mxu0 0.0
    %914 = vmatpush1.msra.mxu0 0.0
    %915 = vmatprep.subr.mxu0 0.0
    %916 = vmatpush1.msra.mxu0 0.0
    %917 = vmatprep.mubr.f32.mxu0 0.0
    %918 = vmatmul.mubr.f32.gmra.mrb[0].mxu0 %v851
    %v919 = vpop.f32.mrb[0].mxu0
    %v920 = vadd.f32 0.0, %v919
    %v921 = vpop.f32.mrb[0].mxu0
    %922 = vdwg.mxu0
    %v924 = vsel %vm630, %v376, 0
    %926 = vmatprep.subr.mxu0 0.0
    %927 = vmatpush1.msra.mxu0 %v544
    %928 = vmatprep.subr.mxu0 0.0
    %929 = vmatpush1.msra.mxu0 0.0
    %930 = vmatprep.subr.mxu0 0.0
    %931 = vmatpush1.msra.mxu0 0.0
    %932 = vmatprep.subr.mxu0 0.0
    %933 = vmatpush1.msra.mxu0 0.0
    %934 = vmatprep.subr.mxu0 0.0
    %935 = vmatpush1.msra.mxu0 0.0
    %936 = vmatprep.subr.mxu0 0.0
    %937 = vmatpush1.msra.mxu0 0.0
    %938 = vmatprep.subr.mxu0 0.0
    %939 = vmatpush1.msra.mxu0 0.0
    %940 = vmatprep.subr.mxu0 0.0
    %941 = vmatpush1.msra.mxu0 0.0
    %942 = vmatprep.subr.mxu0 0.0
    %943 = vmatpush1.msra.mxu0 0.0
    %944 = vmatprep.subr.mxu0 0.0
    %945 = vmatpush1.msra.mxu0 0.0
    %946 = vmatprep.subr.mxu0 0.0
    %947 = vmatpush1.msra.mxu0 0.0
    %948 = vmatprep.subr.mxu0 0.0
    %949 = vmatpush1.msra.mxu0 0.0
    %950 = vmatprep.subr.mxu0 0.0
    %951 = vmatpush1.msra.mxu0 0.0
    %952 = vmatprep.subr.mxu0 0.0
    %953 = vmatpush1.msra.mxu0 0.0
    %954 = vmatprep.subr.mxu0 0.0
    %955 = vmatpush1.msra.mxu0 0.0
    %956 = vmatprep.subr.mxu0 0.0
    %957 = vmatpush1.msra.mxu0 0.0
    %958 = vmatprep.subr.mxu0 0.0
    %959 = vmatpush1.msra.mxu0 0.0
    %960 = vmatprep.subr.mxu0 0.0
    %961 = vmatpush1.msra.mxu0 0.0
    %962 = vmatprep.subr.mxu0 0.0
    %963 = vmatpush1.msra.mxu0 0.0
    %964 = vmatprep.subr.mxu0 0.0
    %965 = vmatpush1.msra.mxu0 0.0
    %966 = vmatprep.subr.mxu0 0.0
    %967 = vmatpush1.msra.mxu0 0.0
    %968 = vmatprep.subr.mxu0 0.0
    %969 = vmatpush1.msra.mxu0 0.0
    %970 = vmatprep.subr.mxu0 0.0
    %971 = vmatpush1.msra.mxu0 0.0
    %972 = vmatprep.subr.mxu0 0.0
    %973 = vmatpush1.msra.mxu0 0.0
    %974 = vmatprep.subr.mxu0 0.0
    %975 = vmatpush1.msra.mxu0 0.0
    %976 = vmatprep.subr.mxu0 0.0
    %977 = vmatpush1.msra.mxu0 0.0
    %978 = vmatprep.subr.mxu0 0.0
    %979 = vmatpush1.msra.mxu0 0.0
    %980 = vmatprep.subr.mxu0 0.0
    %981 = vmatpush1.msra.mxu0 0.0
    %982 = vmatprep.subr.mxu0 0.0
    %983 = vmatpush1.msra.mxu0 0.0
    %984 = vmatprep.subr.mxu0 0.0
    %985 = vmatpush1.msra.mxu0 0.0
    %986 = vmatprep.subr.mxu0 0.0
    %987 = vmatpush1.msra.mxu0 0.0
    %988 = vmatprep.subr.mxu0 0.0
    %989 = vmatpush1.msra.mxu0 0.0
    %990 = vmatprep.mubr.f32.mxu0 0.0
    %991 = vmatmul.mubr.f32.gmra.mrb[0].mxu0 %v924
    %v992 = vpop.f32.mrb[0].mxu0
    %v993 = vadd.f32 0.0, %v992
    %v994 = vpop.f32.mrb[0].mxu0
    %995 = vdwg.mxu0
    %v997 = vsel %vm630, %v408, 0
    %999 = vmatprep.subr.mxu0 0.0
    %1000 = vmatpush1.msra.mxu0 %v545
    %1001 = vmatprep.subr.mxu0 0.0
    %1002 = vmatpush1.msra.mxu0 0.0
    %1003 = vmatprep.subr.mxu0 0.0
    %1004 = vmatpush1.msra.mxu0 0.0
    %1005 = vmatprep.subr.mxu0 0.0
    %1006 = vmatpush1.msra.mxu0 0.0
    %1007 = vmatprep.subr.mxu0 0.0
    %1008 = vmatpush1.msra.mxu0 0.0
    %1009 = vmatprep.subr.mxu0 0.0
    %1010 = vmatpush1.msra.mxu0 0.0
    %1011 = vmatprep.subr.mxu0 0.0
    %1012 = vmatpush1.msra.mxu0 0.0
    %1013 = vmatprep.subr.mxu0 0.0
    %1014 = vmatpush1.msra.mxu0 0.0
    %1015 = vmatprep.subr.mxu0 0.0
    %1016 = vmatpush1.msra.mxu0 0.0
    %1017 = vmatprep.subr.mxu0 0.0
    %1018 = vmatpush1.msra.mxu0 0.0
    %1019 = vmatprep.subr.mxu0 0.0
    %1020 = vmatpush1.msra.mxu0 0.0
    %1021 = vmatprep.subr.mxu0 0.0
    %1022 = vmatpush1.msra.mxu0 0.0
    %1023 = vmatprep.subr.mxu0 0.0
    %1024 = vmatpush1.msra.mxu0 0.0
    %1025 = vmatprep.subr.mxu0 0.0
    %1026 = vmatpush1.msra.mxu0 0.0
    %1027 = vmatprep.subr.mxu0 0.0
    %1028 = vmatpush1.msra.mxu0 0.0
    %1029 = vmatprep.subr.mxu0 0.0
    %1030 = vmatpush1.msra.mxu0 0.0
    %1031 = vmatprep.subr.mxu0 0.0
    %1032 = vmatpush1.msra.mxu0 0.0
    %1033 = vmatprep.subr.mxu0 0.0
    %1034 = vmatpush1.msra.mxu0 0.0
    %1035 = vmatprep.subr.mxu0 0.0
    %1036 = vmatpush1.msra.mxu0 0.0
    %1037 = vmatprep.subr.mxu0 0.0
    %1038 = vmatpush1.msra.mxu0 0.0
    %1039 = vmatprep.subr.mxu0 0.0
    %1040 = vmatpush1.msra.mxu0 0.0
    %1041 = vmatprep.subr.mxu0 0.0
    %1042 = vmatpush1.msra.mxu0 0.0
    %1043 = vmatprep.subr.mxu0 0.0
    %1044 = vmatpush1.msra.mxu0 0.0
    %1045 = vmatprep.subr.mxu0 0.0
    %1046 = vmatpush1.msra.mxu0 0.0
    %1047 = vmatprep.subr.mxu0 0.0
    %1048 = vmatpush1.msra.mxu0 0.0
    %1049 = vmatprep.subr.mxu0 0.0
    %1050 = vmatpush1.msra.mxu0 0.0
    %1051 = vmatprep.subr.mxu0 0.0
    %1052 = vmatpush1.msra.mxu0 0.0
    %1053 = vmatprep.subr.mxu0 0.0
    %1054 = vmatpush1.msra.mxu0 0.0
    %1055 = vmatprep.subr.mxu0 0.0
    %1056 = vmatpush1.msra.mxu0 0.0
    %1057 = vmatprep.subr.mxu0 0.0
    %1058 = vmatpush1.msra.mxu0 0.0
    %1059 = vmatprep.subr.mxu0 0.0
    %1060 = vmatpush1.msra.mxu0 0.0
    %1061 = vmatprep.subr.mxu0 0.0
    %1062 = vmatpush1.msra.mxu0 0.0
    %1063 = vmatprep.mubr.f32.mxu0 0.0
    %1064 = vmatmul.mubr.f32.gmra.mrb[0].mxu0 %v997
    %v1065 = vpop.f32.mrb[0].mxu0
    %v1066 = vadd.f32 0.0, %v1065
    %v1067 = vpop.f32.mrb[0].mxu0
    %1068 = vdwg.mxu0
    %v1070 = vsel %vm630, %v440, 0
    %1072 = vmatprep.subr.mxu0 0.0
    %1073 = vmatpush1.msra.mxu0 %v546
    %1074 = vmatprep.subr.mxu0 0.0
    %1075 = vmatpush1.msra.mxu0 0.0
    %1076 = vmatprep.subr.mxu0 0.0
    %1077 = vmatpush1.msra.mxu0 0.0
    %1078 = vmatprep.subr.mxu0 0.0
    %1079 = vmatpush1.msra.mxu0 0.0
    %1080 = vmatprep.subr.mxu0 0.0
    %1081 = vmatpush1.msra.mxu0 0.0
    %1082 = vmatprep.subr.mxu0 0.0
    %1083 = vmatpush1.msra.mxu0 0.0
    %1084 = vmatprep.subr.mxu0 0.0
    %1085 = vmatpush1.msra.mxu0 0.0
    %1086 = vmatprep.subr.mxu0 0.0
    %1087 = vmatpush1.msra.mxu0 0.0
    %1088 = vmatprep.subr.mxu0 0.0
    %1089 = vmatpush1.msra.mxu0 0.0
    %1090 = vmatprep.subr.mxu0 0.0
    %1091 = vmatpush1.msra.mxu0 0.0
    %1092 = vmatprep.subr.mxu0 0.0
    %1093 = vmatpush1.msra.mxu0 0.0
    %1094 = vmatprep.subr.mxu0 0.0
    %1095 = vmatpush1.msra.mxu0 0.0
    %1096 = vmatprep.subr.mxu0 0.0
    %1097 = vmatpush1.msra.mxu0 0.0
    %1098 = vmatprep.subr.mxu0 0.0
    %1099 = vmatpush1.msra.mxu0 0.0
    %1100 = vmatprep.subr.mxu0 0.0
    %1101 = vmatpush1.msra.mxu0 0.0
    %1102 = vmatprep.subr.mxu0 0.0
    %1103 = vmatpush1.msra.mxu0 0.0
    %1104 = vmatprep.subr.mxu0 0.0
    %1105 = vmatpush1.msra.mxu0 0.0
    %1106 = vmatprep.subr.mxu0 0.0
    %1107 = vmatpush1.msra.mxu0 0.0
    %1108 = vmatprep.subr.mxu0 0.0
    %1109 = vmatpush1.msra.mxu0 0.0
    %1110 = vmatprep.subr.mxu0 0.0
    %1111 = vmatpush1.msra.mxu0 0.0
    %1112 = vmatprep.subr.mxu0 0.0
    %1113 = vmatpush1.msra.mxu0 0.0
    %1114 = vmatprep.subr.mxu0 0.0
    %1115 = vmatpush1.msra.mxu0 0.0
    %1116 = vmatprep.subr.mxu0 0.0
    %1117 = vmatpush1.msra.mxu0 0.0
    %1118 = vmatprep.subr.mxu0 0.0
    %1119 = vmatpush1.msra.mxu0 0.0
    %1120 = vmatprep.subr.mxu0 0.0
    %1121 = vmatpush1.msra.mxu0 0.0
    %1122 = vmatprep.subr.mxu0 0.0
    %1123 = vmatpush1.msra.mxu0 0.0
    %1124 = vmatprep.subr.mxu0 0.0
    %1125 = vmatpush1.msra.mxu0 0.0
    %1126 = vmatprep.subr.mxu0 0.0
    %1127 = vmatpush1.msra.mxu0 0.0
    %1128 = vmatprep.subr.mxu0 0.0
    %1129 = vmatpush1.msra.mxu0 0.0
    %1130 = vmatprep.subr.mxu0 0.0
    %1131 = vmatpush1.msra.mxu0 0.0
    %1132 = vmatprep.subr.mxu0 0.0
    %1133 = vmatpush1.msra.mxu0 0.0
    %1134 = vmatprep.subr.mxu0 0.0
    %1135 = vmatpush1.msra.mxu0 0.0
    %1136 = vmatprep.mubr.f32.mxu0 0.0
    %1137 = vmatmul.mubr.f32.gmra.mrb[0].mxu0 %v1070
    %v1138 = vpop.f32.mrb[0].mxu0
    %v1139 = vadd.f32 0.0, %v1138
    %v1140 = vpop.f32.mrb[0].mxu0
    %1141 = vdwg.mxu0
    %v1143 = vsel %vm630, %v472, 0
    %1145 = vmatprep.subr.mxu0 0.0
    %1146 = vmatpush1.msra.mxu0 %v547
    %1147 = vmatprep.subr.mxu0 0.0
    %1148 = vmatpush1.msra.mxu0 0.0
    %1149 = vmatprep.subr.mxu0 0.0
    %1150 = vmatpush1.msra.mxu0 0.0
    %1151 = vmatprep.subr.mxu0 0.0
    %1152 = vmatpush1.msra.mxu0 0.0
    %1153 = vmatprep.subr.mxu0 0.0
    %1154 = vmatpush1.msra.mxu0 0.0
    %1155 = vmatprep.subr.mxu0 0.0
    %1156 = vmatpush1.msra.mxu0 0.0
    %1157 = vmatprep.subr.mxu0 0.0
    %1158 = vmatpush1.msra.mxu0 0.0
    %1159 = vmatprep.subr.mxu0 0.0
    %1160 = vmatpush1.msra.mxu0 0.0
    %1161 = vmatprep.subr.mxu0 0.0
    %1162 = vmatpush1.msra.mxu0 0.0
    %1163 = vmatprep.subr.mxu0 0.0
    %1164 = vmatpush1.msra.mxu0 0.0
    %1165 = vmatprep.subr.mxu0 0.0
    %1166 = vmatpush1.msra.mxu0 0.0
    %1167 = vmatprep.subr.mxu0 0.0
    %1168 = vmatpush1.msra.mxu0 0.0
    %1169 = vmatprep.subr.mxu0 0.0
    %1170 = vmatpush1.msra.mxu0 0.0
    %1171 = vmatprep.subr.mxu0 0.0
    %1172 = vmatpush1.msra.mxu0 0.0
    %1173 = vmatprep.subr.mxu0 0.0
    %1174 = vmatpush1.msra.mxu0 0.0
    %1175 = vmatprep.subr.mxu0 0.0
    %1176 = vmatpush1.msra.mxu0 0.0
    %1177 = vmatprep.subr.mxu0 0.0
    %1178 = vmatpush1.msra.mxu0 0.0
    %1179 = vmatprep.subr.mxu0 0.0
    %1180 = vmatpush1.msra.mxu0 0.0
    %1181 = vmatprep.subr.mxu0 0.0
    %1182 = vmatpush1.msra.mxu0 0.0
    %1183 = vmatprep.subr.mxu0 0.0
    %1184 = vmatpush1.msra.mxu0 0.0
    %1185 = vmatprep.subr.mxu0 0.0
    %1186 = vmatpush1.msra.mxu0 0.0
    %1187 = vmatprep.subr.mxu0 0.0
    %1188 = vmatpush1.msra.mxu0 0.0
    %1189 = vmatprep.subr.mxu0 0.0
    %1190 = vmatpush1.msra.mxu0 0.0
    %1191 = vmatprep.subr.mxu0 0.0
    %1192 = vmatpush1.msra.mxu0 0.0
    %1193 = vmatprep.subr.mxu0 0.0
    %1194 = vmatpush1.msra.mxu0 0.0
    %1195 = vmatprep.subr.mxu0 0.0
    %1196 = vmatpush1.msra.mxu0 0.0
    %1197 = vmatprep.subr.mxu0 0.0
    %1198 = vmatpush1.msra.mxu0 0.0
    %1199 = vmatprep.subr.mxu0 0.0
    %1200 = vmatpush1.msra.mxu0 0.0
    %1201 = vmatprep.subr.mxu0 0.0
    %1202 = vmatpush1.msra.mxu0 0.0
    %1203 = vmatprep.subr.mxu0 0.0
    %1204 = vmatpush1.msra.mxu0 0.0
    %1205 = vmatprep.subr.mxu0 0.0
    %1206 = vmatpush1.msra.mxu0 0.0
    %1207 = vmatprep.subr.mxu0 0.0
    %1208 = vmatpush1.msra.mxu0 0.0
    %1209 = vmatprep.mubr.f32.mxu0 0.0
    %1210 = vmatmul.mubr.f32.gmra.mrb[0].mxu0 %v1143
    %v1211 = vpop.f32.mrb[0].mxu0
    %v1212 = vadd.f32 0.0, %v1211
    %v1213 = vpop.f32.mrb[0].mxu0
    %1214 = vdwg.mxu0
    %v1215 = vsel %vm630, %v701, -inf
    %1216 = vmax.xlane.f32.xlu0 %v1215
    %v1217 = vpop.xlane.xlu0 %1216
    %v1218 = vsel %vm630, %v774, -inf
    %1219 = vmax.xlane.f32.xlu0 %v1218
    %v1220 = vpop.xlane.xlu0 %1219
    %v1221 = vsel %vm630, %v847, -inf
    %1222 = vmax.xlane.f32.xlu0 %v1221
    %v1223 = vpop.xlane.xlu0 %1222
    %v1224 = vsel %vm630, %v920, -inf
    %1225 = vmax.xlane.f32.xlu0 %v1224
    %v1226 = vpop.xlane.xlu0 %1225
    %v1227 = vsel %vm630, %v993, -inf
    %1228 = vmax.xlane.f32.xlu0 %v1227
    %v1229 = vpop.xlane.xlu0 %1228
    %v1230 = vsel %vm630, %v1066, -inf
    %1231 = vmax.xlane.f32.xlu0 %v1230
    %v1232 = vpop.xlane.xlu0 %1231
    %v1233 = vsel %vm630, %v1139, -inf
    %1234 = vmax.xlane.f32.xlu0 %v1233
    %v1235 = vpop.xlane.xlu0 %1234
    %v1236 = vsel %vm630, %v1212, -inf
    %1237 = vmax.xlane.f32.xlu0 %v1236
    %v1238 = vpop.xlane.xlu0 %1237
    %v1239 = vsub.f32 %v701, %v1217
    %v1240 = vsub.f32 %v774, %v1220
    %v1241 = vsub.f32 %v847, %v1223
    %v1242 = vsub.f32 %v920, %v1226
    %v1243 = vsub.f32 %v993, %v1229
    %v1244 = vsub.f32 %v1066, %v1232
    %v1245 = vsub.f32 %v1139, %v1235
    %v1246 = vsub.f32 %v1212, %v1238
    %v1247 = vmul.f32 %v1239, 1.442695
    %v1248 = vpow.pop %v1247
    %v1249 = vmul.f32 %v1240, 1.442695
    %v1250 = vpow.pop %v1249
    %v1251 = vmul.f32 %v1241, 1.442695
    %v1252 = vpow.pop %v1251
    %v1253 = vmul.f32 %v1242, 1.442695
    %v1254 = vpow.pop %v1253
    %v1255 = vmul.f32 %v1243, 1.442695
    %v1256 = vpow.pop %v1255
    %v1257 = vmul.f32 %v1244, 1.442695
    %v1258 = vpow.pop %v1257
    %v1259 = vmul.f32 %v1245, 1.442695
    %v1260 = vpow.pop %v1259
    %v1261 = vmul.f32 %v1246, 1.442695
    %v1262 = vpow.pop %v1261
    %v1263 = vsel %vm630, %v1248, 0.0
    %1264 = vadd.xlane.f32.xlu0 %v1263
    %v1265 = vpop.xlane.xlu0 %1264
    %v1266 = vsel %vm630, %v1250, 0.0
    %1267 = vadd.xlane.f32.xlu0 %v1266
    %v1268 = vpop.xlane.xlu0 %1267
    %v1269 = vsel %vm630, %v1252, 0.0
    %1270 = vadd.xlane.f32.xlu0 %v1269
    %v1271 = vpop.xlane.xlu0 %1270
    %v1272 = vsel %vm630, %v1254, 0.0
    %1273 = vadd.xlane.f32.xlu0 %v1272
    %v1274 = vpop.xlane.xlu0 %1273
    %v1275 = vsel %vm630, %v1256, 0.0
    %1276 = vadd.xlane.f32.xlu0 %v1275
    %v1277 = vpop.xlane.xlu0 %1276
    %v1278 = vsel %vm630, %v1258, 0.0
    %1279 = vadd.xlane.f32.xlu0 %v1278
    %v1280 = vpop.xlane.xlu0 %1279
    %v1281 = vsel %vm630, %v1260, 0.0
    %1282 = vadd.xlane.f32.xlu0 %v1281
    %v1283 = vpop.xlane.xlu0 %1282
    %v1284 = vsel %vm630, %v1262, 0.0
    %1285 = vadd.xlane.f32.xlu0 %v1284
    %v1286 = vpop.xlane.xlu0 %1285
    %v1287 = vrcp.pop %v1265
    %v1288 = vrcp.pop %v1268
    %v1289 = vrcp.pop %v1271
    %v1290 = vrcp.pop %v1274
    %v1291 = vrcp.pop %v1277
    %v1292 = vrcp.pop %v1280
    %v1293 = vrcp.pop %v1283
    %v1294 = vrcp.pop %v1286
    %v1295 = vmul.f32 %v1248, %v1287
    %v1296 = vmul.f32 %v1250, %v1288
    %v1297 = vmul.f32 %v1252, %v1289
    %v1298 = vmul.f32 %v1254, %v1290
    %v1299 = vmul.f32 %v1256, %v1291
    %v1300 = vmul.f32 %v1258, %v1292
    %v1301 = vmul.f32 %v1260, %v1293
    %v1302 = vmul.f32 %v1262, %v1294
    %v1304 = vsel %vm630, %v1295, 0
    %v1307 = vsel %vm630, %v582, 0
    %1309 = vmatprep.subr.mxu0 0.0
    %1310 = vmatpush1.xpose.msra.mxu0 %v1307
    %1311 = vmatprep.subr.mxu0 0.0
    %1312 = vmatpush1.xpose.msra.mxu0 0.0
    %1313 = vmatprep.subr.mxu0 0.0
    %1314 = vmatpush1.xpose.msra.mxu0 0.0
    %1315 = vmatprep.subr.mxu0 0.0
    %1316 = vmatpush1.xpose.msra.mxu0 0.0
    %1317 = vmatprep.subr.mxu0 0.0
    %1318 = vmatpush1.xpose.msra.mxu0 0.0
    %1319 = vmatprep.subr.mxu0 0.0
    %1320 = vmatpush1.xpose.msra.mxu0 0.0
    %1321 = vmatprep.subr.mxu0 0.0
    %1322 = vmatpush1.xpose.msra.mxu0 0.0
    %1323 = vmatprep.subr.mxu0 0.0
    %1324 = vmatpush1.xpose.msra.mxu0 0.0
    %1325 = vmatprep.subr.mxu0 0.0
    %1326 = vmatpush1.xpose.msra.mxu0 0.0
    %1327 = vmatprep.subr.mxu0 0.0
    %1328 = vmatpush1.xpose.msra.mxu0 0.0
    %1329 = vmatprep.subr.mxu0 0.0
    %1330 = vmatpush1.xpose.msra.mxu0 0.0
    %1331 = vmatprep.subr.mxu0 0.0
    %1332 = vmatpush1.xpose.msra.mxu0 0.0
    %1333 = vmatprep.subr.mxu0 0.0
    %1334 = vmatpush1.xpose.msra.mxu0 0.0
    %1335 = vmatprep.subr.mxu0 0.0
    %1336 = vmatpush1.xpose.msra.mxu0 0.0
    %1337 = vmatprep.subr.mxu0 0.0
    %1338 = vmatpush1.xpose.msra.mxu0 0.0
    %1339 = vmatprep.subr.mxu0 0.0
    %1340 = vmatpush1.xpose.msra.mxu0 0.0
    %1341 = vmatprep.subr.mxu0 0.0
    %1342 = vmatpush1.xpose.msra.mxu0 0.0
    %1343 = vmatprep.subr.mxu0 0.0
    %1344 = vmatpush1.xpose.msra.mxu0 0.0
    %1345 = vmatprep.subr.mxu0 0.0
    %1346 = vmatpush1.xpose.msra.mxu0 0.0
    %1347 = vmatprep.subr.mxu0 0.0
    %1348 = vmatpush1.xpose.msra.mxu0 0.0
    %1349 = vmatprep.subr.mxu0 0.0
    %1350 = vmatpush1.xpose.msra.mxu0 0.0
    %1351 = vmatprep.subr.mxu0 0.0
    %1352 = vmatpush1.xpose.msra.mxu0 0.0
    %1353 = vmatprep.subr.mxu0 0.0
    %1354 = vmatpush1.xpose.msra.mxu0 0.0
    %1355 = vmatprep.subr.mxu0 0.0
    %1356 = vmatpush1.xpose.msra.mxu0 0.0
    %1357 = vmatprep.subr.mxu0 0.0
    %1358 = vmatpush1.xpose.msra.mxu0 0.0
    %1359 = vmatprep.subr.mxu0 0.0
    %1360 = vmatpush1.xpose.msra.mxu0 0.0
    %1361 = vmatprep.subr.mxu0 0.0
    %1362 = vmatpush1.xpose.msra.mxu0 0.0
    %1363 = vmatprep.subr.mxu0 0.0
    %1364 = vmatpush1.xpose.msra.mxu0 0.0
    %1365 = vmatprep.subr.mxu0 0.0
    %1366 = vmatpush1.xpose.msra.mxu0 0.0
    %1367 = vmatprep.subr.mxu0 0.0
    %1368 = vmatpush1.xpose.msra.mxu0 0.0
    %1369 = vmatprep.subr.mxu0 0.0
    %1370 = vmatpush1.xpose.msra.mxu0 0.0
    %1371 = vmatprep.subr.mxu0 0.0
    %1372 = vmatpush1.xpose.msra.mxu0 0.0
    %1373 = vmatprep.mubr.f32.mxu0 0.0
    %1374 = vmatmul.mubr.f32.gmra.mrb[0].mxu0 %v1304
    %v1375 = vpop.f32.mrb[0].mxu0
    %v1376 = vadd.f32 0.0, %v1375
    %v1377 = vpop.f32.mrb[0].mxu0
    %1378 = vdwg.mxu0
    %v1380 = vsel %vm630, %v1296, 0
    %v1383 = vsel %vm630, %v583, 0
    %1385 = vmatprep.subr.mxu0 0.0
    %1386 = vmatpush1.xpose.msra.mxu0 %v1383
    %1387 = vmatprep.subr.mxu0 0.0
    %1388 = vmatpush1.xpose.msra.mxu0 0.0
    %1389 = vmatprep.subr.mxu0 0.0
    %1390 = vmatpush1.xpose.msra.mxu0 0.0
    %1391 = vmatprep.subr.mxu0 0.0
    %1392 = vmatpush1.xpose.msra.mxu0 0.0
    %1393 = vmatprep.subr.mxu0 0.0
    %1394 = vmatpush1.xpose.msra.mxu0 0.0
    %1395 = vmatprep.subr.mxu0 0.0
    %1396 = vmatpush1.xpose.msra.mxu0 0.0
    %1397 = vmatprep.subr.mxu0 0.0
    %1398 = vmatpush1.xpose.msra.mxu0 0.0
    %1399 = vmatprep.subr.mxu0 0.0
    %1400 = vmatpush1.xpose.msra.mxu0 0.0
    %1401 = vmatprep.subr.mxu0 0.0
    %1402 = vmatpush1.xpose.msra.mxu0 0.0
    %1403 = vmatprep.subr.mxu0 0.0
    %1404 = vmatpush1.xpose.msra.mxu0 0.0
    %1405 = vmatprep.subr.mxu0 0.0
    %1406 = vmatpush1.xpose.msra.mxu0 0.0
    %1407 = vmatprep.subr.mxu0 0.0
    %1408 = vmatpush1.xpose.msra.mxu0 0.0
    %1409 = vmatprep.subr.mxu0 0.0
    %1410 = vmatpush1.xpose.msra.mxu0 0.0
    %1411 = vmatprep.subr.mxu0 0.0
    %1412 = vmatpush1.xpose.msra.mxu0 0.0
    %1413 = vmatprep.subr.mxu0 0.0
    %1414 = vmatpush1.xpose.msra.mxu0 0.0
    %1415 = vmatprep.subr.mxu0 0.0
    %1416 = vmatpush1.xpose.msra.mxu0 0.0
    %1417 = vmatprep.subr.mxu0 0.0
    %1418 = vmatpush1.xpose.msra.mxu0 0.0
    %1419 = vmatprep.subr.mxu0 0.0
    %1420 = vmatpush1.xpose.msra.mxu0 0.0
    %1421 = vmatprep.subr.mxu0 0.0
    %1422 = vmatpush1.xpose.msra.mxu0 0.0
    %1423 = vmatprep.subr.mxu0 0.0
    %1424 = vmatpush1.xpose.msra.mxu0 0.0
    %1425 = vmatprep.subr.mxu0 0.0
    %1426 = vmatpush1.xpose.msra.mxu0 0.0
    %1427 = vmatprep.subr.mxu0 0.0
    %1428 = vmatpush1.xpose.msra.mxu0 0.0
    %1429 = vmatprep.subr.mxu0 0.0
    %1430 = vmatpush1.xpose.msra.mxu0 0.0
    %1431 = vmatprep.subr.mxu0 0.0
    %1432 = vmatpush1.xpose.msra.mxu0 0.0
    %1433 = vmatprep.subr.mxu0 0.0
    %1434 = vmatpush1.xpose.msra.mxu0 0.0
    %1435 = vmatprep.subr.mxu0 0.0
    %1436 = vmatpush1.xpose.msra.mxu0 0.0
    %1437 = vmatprep.subr.mxu0 0.0
    %1438 = vmatpush1.xpose.msra.mxu0 0.0
    %1439 = vmatprep.subr.mxu0 0.0
    %1440 = vmatpush1.xpose.msra.mxu0 0.0
    %1441 = vmatprep.subr.mxu0 0.0
    %1442 = vmatpush1.xpose.msra.mxu0 0.0
    %1443 = vmatprep.subr.mxu0 0.0
    %1444 = vmatpush1.xpose.msra.mxu0 0.0
    %1445 = vmatprep.subr.mxu0 0.0
    %1446 = vmatpush1.xpose.msra.mxu0 0.0
    %1447 = vmatprep.subr.mxu0 0.0
    %1448 = vmatpush1.xpose.msra.mxu0 0.0
    %1449 = vmatprep.mubr.f32.mxu0 0.0
    %1450 = vmatmul.mubr.f32.gmra.mrb[0].mxu0 %v1380
    %v1451 = vpop.f32.mrb[0].mxu0
    %v1452 = vadd.f32 0.0, %v1451
    %v1453 = vpop.f32.mrb[0].mxu0
    %1454 = vdwg.mxu0
    %v1456 = vsel %vm630, %v1297, 0
    %v1459 = vsel %vm630, %v584, 0
    %1461 = vmatprep.subr.mxu0 0.0
    %1462 = vmatpush1.xpose.msra.mxu0 %v1459
    %1463 = vmatprep.subr.mxu0 0.0
    %1464 = vmatpush1.xpose.msra.mxu0 0.0
    %1465 = vmatprep.subr.mxu0 0.0
    %1466 = vmatpush1.xpose.msra.mxu0 0.0
    %1467 = vmatprep.subr.mxu0 0.0
    %1468 = vmatpush1.xpose.msra.mxu0 0.0
    %1469 = vmatprep.subr.mxu0 0.0
    %1470 = vmatpush1.xpose.msra.mxu0 0.0
    %1471 = vmatprep.subr.mxu0 0.0
    %1472 = vmatpush1.xpose.msra.mxu0 0.0
    %1473 = vmatprep.subr.mxu0 0.0
    %1474 = vmatpush1.xpose.msra.mxu0 0.0
    %1475 = vmatprep.subr.mxu0 0.0
    %1476 = vmatpush1.xpose.msra.mxu0 0.0
    %1477 = vmatprep.subr.mxu0 0.0
    %1478 = vmatpush1.xpose.msra.mxu0 0.0
    %1479 = vmatprep.subr.mxu0 0.0
    %1480 = vmatpush1.xpose.msra.mxu0 0.0
    %1481 = vmatprep.subr.mxu0 0.0
    %1482 = vmatpush1.xpose.msra.mxu0 0.0
    %1483 = vmatprep.subr.mxu0 0.0
    %1484 = vmatpush1.xpose.msra.mxu0 0.0
    %1485 = vmatprep.subr.mxu0 0.0
    %1486 = vmatpush1.xpose.msra.mxu0 0.0
    %1487 = vmatprep.subr.mxu0 0.0
    %1488 = vmatpush1.xpose.msra.mxu0 0.0
    %1489 = vmatprep.subr.mxu0 0.0
    %1490 = vmatpush1.xpose.msra.mxu0 0.0
    %1491 = vmatprep.subr.mxu0 0.0
    %1492 = vmatpush1.xpose.msra.mxu0 0.0
    %1493 = vmatprep.subr.mxu0 0.0
    %1494 = vmatpush1.xpose.msra.mxu0 0.0
    %1495 = vmatprep.subr.mxu0 0.0
    %1496 = vmatpush1.xpose.msra.mxu0 0.0
    %1497 = vmatprep.subr.mxu0 0.0
    %1498 = vmatpush1.xpose.msra.mxu0 0.0
    %1499 = vmatprep.subr.mxu0 0.0
    %1500 = vmatpush1.xpose.msra.mxu0 0.0
    %1501 = vmatprep.subr.mxu0 0.0
    %1502 = vmatpush1.xpose.msra.mxu0 0.0
    %1503 = vmatprep.subr.mxu0 0.0
    %1504 = vmatpush1.xpose.msra.mxu0 0.0
    %1505 = vmatprep.subr.mxu0 0.0
    %1506 = vmatpush1.xpose.msra.mxu0 0.0
    %1507 = vmatprep.subr.mxu0 0.0
    %1508 = vmatpush1.xpose.msra.mxu0 0.0
    %1509 = vmatprep.subr.mxu0 0.0
    %1510 = vmatpush1.xpose.msra.mxu0 0.0
    %1511 = vmatprep.subr.mxu0 0.0
    %1512 = vmatpush1.xpose.msra.mxu0 0.0
    %1513 = vmatprep.subr.mxu0 0.0
    %1514 = vmatpush1.xpose.msra.mxu0 0.0
    %1515 = vmatprep.subr.mxu0 0.0
    %1516 = vmatpush1.xpose.msra.mxu0 0.0
    %1517 = vmatprep.subr.mxu0 0.0
    %1518 = vmatpush1.xpose.msra.mxu0 0.0
    %1519 = vmatprep.subr.mxu0 0.0
    %1520 = vmatpush1.xpose.msra.mxu0 0.0
    %1521 = vmatprep.subr.mxu0 0.0
    %1522 = vmatpush1.xpose.msra.mxu0 0.0
    %1523 = vmatprep.subr.mxu0 0.0
    %1524 = vmatpush1.xpose.msra.mxu0 0.0
    %1525 = vmatprep.mubr.f32.mxu0 0.0
    %1526 = vmatmul.mubr.f32.gmra.mrb[0].mxu0 %v1456
    %v1527 = vpop.f32.mrb[0].mxu0
    %v1528 = vadd.f32 0.0, %v1527
    %v1529 = vpop.f32.mrb[0].mxu0
    %1530 = vdwg.mxu0
    %v1532 = vsel %vm630, %v1298, 0
    %v1535 = vsel %vm630, %v585, 0
    %1537 = vmatprep.subr.mxu0 0.0
    %1538 = vmatpush1.xpose.msra.mxu0 %v1535
    %1539 = vmatprep.subr.mxu0 0.0
    %1540 = vmatpush1.xpose.msra.mxu0 0.0
    %1541 = vmatprep.subr.mxu0 0.0
    %1542 = vmatpush1.xpose.msra.mxu0 0.0
    %1543 = vmatprep.subr.mxu0 0.0
    %1544 = vmatpush1.xpose.msra.mxu0 0.0
    %1545 = vmatprep.subr.mxu0 0.0
    %1546 = vmatpush1.xpose.msra.mxu0 0.0
    %1547 = vmatprep.subr.mxu0 0.0
    %1548 = vmatpush1.xpose.msra.mxu0 0.0
    %1549 = vmatprep.subr.mxu0 0.0
    %1550 = vmatpush1.xpose.msra.mxu0 0.0
    %1551 = vmatprep.subr.mxu0 0.0
    %1552 = vmatpush1.xpose.msra.mxu0 0.0
    %1553 = vmatprep.subr.mxu0 0.0
    %1554 = vmatpush1.xpose.msra.mxu0 0.0
    %1555 = vmatprep.subr.mxu0 0.0
    %1556 = vmatpush1.xpose.msra.mxu0 0.0
    %1557 = vmatprep.subr.mxu0 0.0
    %1558 = vmatpush1.xpose.msra.mxu0 0.0
    %1559 = vmatprep.subr.mxu0 0.0
    %1560 = vmatpush1.xpose.msra.mxu0 0.0
    %1561 = vmatprep.subr.mxu0 0.0
    %1562 = vmatpush1.xpose.msra.mxu0 0.0
    %1563 = vmatprep.subr.mxu0 0.0
    %1564 = vmatpush1.xpose.msra.mxu0 0.0
    %1565 = vmatprep.subr.mxu0 0.0
    %1566 = vmatpush1.xpose.msra.mxu0 0.0
    %1567 = vmatprep.subr.mxu0 0.0
    %1568 = vmatpush1.xpose.msra.mxu0 0.0
    %1569 = vmatprep.subr.mxu0 0.0
    %1570 = vmatpush1.xpose.msra.mxu0 0.0
    %1571 = vmatprep.subr.mxu0 0.0
    %1572 = vmatpush1.xpose.msra.mxu0 0.0
    %1573 = vmatprep.subr.mxu0 0.0
    %1574 = vmatpush1.xpose.msra.mxu0 0.0
    %1575 = vmatprep.subr.mxu0 0.0
    %1576 = vmatpush1.xpose.msra.mxu0 0.0
    %1577 = vmatprep.subr.mxu0 0.0
    %1578 = vmatpush1.xpose.msra.mxu0 0.0
    %1579 = vmatprep.subr.mxu0 0.0
    %1580 = vmatpush1.xpose.msra.mxu0 0.0
    %1581 = vmatprep.subr.mxu0 0.0
    %1582 = vmatpush1.xpose.msra.mxu0 0.0
    %1583 = vmatprep.subr.mxu0 0.0
    %1584 = vmatpush1.xpose.msra.mxu0 0.0
    %1585 = vmatprep.subr.mxu0 0.0
    %1586 = vmatpush1.xpose.msra.mxu0 0.0
    %1587 = vmatprep.subr.mxu0 0.0
    %1588 = vmatpush1.xpose.msra.mxu0 0.0
    %1589 = vmatprep.subr.mxu0 0.0
    %1590 = vmatpush1.xpose.msra.mxu0 0.0
    %1591 = vmatprep.subr.mxu0 0.0
    %1592 = vmatpush1.xpose.msra.mxu0 0.0
    %1593 = vmatprep.subr.mxu0 0.0
    %1594 = vmatpush1.xpose.msra.mxu0 0.0
    %1595 = vmatprep.subr.mxu0 0.0
    %1596 = vmatpush1.xpose.msra.mxu0 0.0
    %1597 = vmatprep.subr.mxu0 0.0
    %1598 = vmatpush1.xpose.msra.mxu0 0.0
    %1599 = vmatprep.subr.mxu0 0.0
    %1600 = vmatpush1.xpose.msra.mxu0 0.0
    %1601 = vmatprep.mubr.f32.mxu0 0.0
    %1602 = vmatmul.mubr.f32.gmra.mrb[0].mxu0 %v1532
    %v1603 = vpop.f32.mrb[0].mxu0
    %v1604 = vadd.f32 0.0, %v1603
    %v1605 = vpop.f32.mrb[0].mxu0
    %1606 = vdwg.mxu0
    %v1608 = vsel %vm630, %v1299, 0
    %v1611 = vsel %vm630, %v614, 0
    %1613 = vmatprep.subr.mxu0 0.0
    %1614 = vmatpush1.xpose.msra.mxu0 %v1611
    %1615 = vmatprep.subr.mxu0 0.0
    %1616 = vmatpush1.xpose.msra.mxu0 0.0
    %1617 = vmatprep.subr.mxu0 0.0
    %1618 = vmatpush1.xpose.msra.mxu0 0.0
    %1619 = vmatprep.subr.mxu0 0.0
    %1620 = vmatpush1.xpose.msra.mxu0 0.0
    %1621 = vmatprep.subr.mxu0 0.0
    %1622 = vmatpush1.xpose.msra.mxu0 0.0
    %1623 = vmatprep.subr.mxu0 0.0
    %1624 = vmatpush1.xpose.msra.mxu0 0.0
    %1625 = vmatprep.subr.mxu0 0.0
    %1626 = vmatpush1.xpose.msra.mxu0 0.0
    %1627 = vmatprep.subr.mxu0 0.0
    %1628 = vmatpush1.xpose.msra.mxu0 0.0
    %1629 = vmatprep.subr.mxu0 0.0
    %1630 = vmatpush1.xpose.msra.mxu0 0.0
    %1631 = vmatprep.subr.mxu0 0.0
    %1632 = vmatpush1.xpose.msra.mxu0 0.0
    %1633 = vmatprep.subr.mxu0 0.0
    %1634 = vmatpush1.xpose.msra.mxu0 0.0
    %1635 = vmatprep.subr.mxu0 0.0
    %1636 = vmatpush1.xpose.msra.mxu0 0.0
    %1637 = vmatprep.subr.mxu0 0.0
    %1638 = vmatpush1.xpose.msra.mxu0 0.0
    %1639 = vmatprep.subr.mxu0 0.0
    %1640 = vmatpush1.xpose.msra.mxu0 0.0
    %1641 = vmatprep.subr.mxu0 0.0
    %1642 = vmatpush1.xpose.msra.mxu0 0.0
    %1643 = vmatprep.subr.mxu0 0.0
    %1644 = vmatpush1.xpose.msra.mxu0 0.0
    %1645 = vmatprep.subr.mxu0 0.0
    %1646 = vmatpush1.xpose.msra.mxu0 0.0
    %1647 = vmatprep.subr.mxu0 0.0
    %1648 = vmatpush1.xpose.msra.mxu0 0.0
    %1649 = vmatprep.subr.mxu0 0.0
    %1650 = vmatpush1.xpose.msra.mxu0 0.0
    %1651 = vmatprep.subr.mxu0 0.0
    %1652 = vmatpush1.xpose.msra.mxu0 0.0
    %1653 = vmatprep.subr.mxu0 0.0
    %1654 = vmatpush1.xpose.msra.mxu0 0.0
    %1655 = vmatprep.subr.mxu0 0.0
    %1656 = vmatpush1.xpose.msra.mxu0 0.0
    %1657 = vmatprep.subr.mxu0 0.0
    %1658 = vmatpush1.xpose.msra.mxu0 0.0
    %1659 = vmatprep.subr.mxu0 0.0
    %1660 = vmatpush1.xpose.msra.mxu0 0.0
    %1661 = vmatprep.subr.mxu0 0.0
    %1662 = vmatpush1.xpose.msra.mxu0 0.0
    %1663 = vmatprep.subr.mxu0 0.0
    %1664 = vmatpush1.xpose.msra.mxu0 0.0
    %1665 = vmatprep.subr.mxu0 0.0
    %1666 = vmatpush1.xpose.msra.mxu0 0.0
    %1667 = vmatprep.subr.mxu0 0.0
    %1668 = vmatpush1.xpose.msra.mxu0 0.0
    %1669 = vmatprep.subr.mxu0 0.0
    %1670 = vmatpush1.xpose.msra.mxu0 0.0
    %1671 = vmatprep.subr.mxu0 0.0
    %1672 = vmatpush1.xpose.msra.mxu0 0.0
    %1673 = vmatprep.subr.mxu0 0.0
    %1674 = vmatpush1.xpose.msra.mxu0 0.0
    %1675 = vmatprep.subr.mxu0 0.0
    %1676 = vmatpush1.xpose.msra.mxu0 0.0
    %1677 = vmatprep.mubr.f32.mxu0 0.0
    %1678 = vmatmul.mubr.f32.gmra.mrb[0].mxu0 %v1608
    %v1679 = vpop.f32.mrb[0].mxu0
    %v1680 = vadd.f32 0.0, %v1679
    %v1681 = vpop.f32.mrb[0].mxu0
    %1682 = vdwg.mxu0
    %v1684 = vsel %vm630, %v1300, 0
    %v1687 = vsel %vm630, %v615, 0
    %1689 = vmatprep.subr.mxu0 0.0
    %1690 = vmatpush1.xpose.msra.mxu0 %v1687
    %1691 = vmatprep.subr.mxu0 0.0
    %1692 = vmatpush1.xpose.msra.mxu0 0.0
    %1693 = vmatprep.subr.mxu0 0.0
    %1694 = vmatpush1.xpose.msra.mxu0 0.0
    %1695 = vmatprep.subr.mxu0 0.0
    %1696 = vmatpush1.xpose.msra.mxu0 0.0
    %1697 = vmatprep.subr.mxu0 0.0
    %1698 = vmatpush1.xpose.msra.mxu0 0.0
    %1699 = vmatprep.subr.mxu0 0.0
    %1700 = vmatpush1.xpose.msra.mxu0 0.0
    %1701 = vmatprep.subr.mxu0 0.0
    %1702 = vmatpush1.xpose.msra.mxu0 0.0
    %1703 = vmatprep.subr.mxu0 0.0
    %1704 = vmatpush1.xpose.msra.mxu0 0.0
    %1705 = vmatprep.subr.mxu0 0.0
    %1706 = vmatpush1.xpose.msra.mxu0 0.0
    %1707 = vmatprep.subr.mxu0 0.0
    %1708 = vmatpush1.xpose.msra.mxu0 0.0
    %1709 = vmatprep.subr.mxu0 0.0
    %1710 = vmatpush1.xpose.msra.mxu0 0.0
    %1711 = vmatprep.subr.mxu0 0.0
    %1712 = vmatpush1.xpose.msra.mxu0 0.0
    %1713 = vmatprep.subr.mxu0 0.0
    %1714 = vmatpush1.xpose.msra.mxu0 0.0
    %1715 = vmatprep.subr.mxu0 0.0
    %1716 = vmatpush1.xpose.msra.mxu0 0.0
    %1717 = vmatprep.subr.mxu0 0.0
    %1718 = vmatpush1.xpose.msra.mxu0 0.0
    %1719 = vmatprep.subr.mxu0 0.0
    %1720 = vmatpush1.xpose.msra.mxu0 0.0
    %1721 = vmatprep.subr.mxu0 0.0
    %1722 = vmatpush1.xpose.msra.mxu0 0.0
    %1723 = vmatprep.subr.mxu0 0.0
    %1724 = vmatpush1.xpose.msra.mxu0 0.0
    %1725 = vmatprep.subr.mxu0 0.0
    %1726 = vmatpush1.xpose.msra.mxu0 0.0
    %1727 = vmatprep.subr.mxu0 0.0
    %1728 = vmatpush1.xpose.msra.mxu0 0.0
    %1729 = vmatprep.subr.mxu0 0.0
    %1730 = vmatpush1.xpose.msra.mxu0 0.0
    %1731 = vmatprep.subr.mxu0 0.0
    %1732 = vmatpush1.xpose.msra.mxu0 0.0
    %1733 = vmatprep.subr.mxu0 0.0
    %1734 = vmatpush1.xpose.msra.mxu0 0.0
    %1735 = vmatprep.subr.mxu0 0.0
    %1736 = vmatpush1.xpose.msra.mxu0 0.0
    %1737 = vmatprep.subr.mxu0 0.0
    %1738 = vmatpush1.xpose.msra.mxu0 0.0
    %1739 = vmatprep.subr.mxu0 0.0
    %1740 = vmatpush1.xpose.msra.mxu0 0.0
    %1741 = vmatprep.subr.mxu0 0.0
    %1742 = vmatpush1.xpose.msra.mxu0 0.0
    %1743 = vmatprep.subr.mxu0 0.0
    %1744 = vmatpush1.xpose.msra.mxu0 0.0
    %1745 = vmatprep.subr.mxu0 0.0
    %1746 = vmatpush1.xpose.msra.mxu0 0.0
    %1747 = vmatprep.subr.mxu0 0.0
    %1748 = vmatpush1.xpose.msra.mxu0 0.0
    %1749 = vmatprep.subr.mxu0 0.0
    %1750 = vmatpush1.xpose.msra.mxu0 0.0
    %1751 = vmatprep.subr.mxu0 0.0
    %1752 = vmatpush1.xpose.msra.mxu0 0.0
    %1753 = vmatprep.mubr.f32.mxu0 0.0
    %1754 = vmatmul.mubr.f32.gmra.mrb[0].mxu0 %v1684
    %v1755 = vpop.f32.mrb[0].mxu0
    %v1756 = vadd.f32 0.0, %v1755
    %v1757 = vpop.f32.mrb[0].mxu0
    %1758 = vdwg.mxu0
    %v1760 = vsel %vm630, %v1301, 0
    %v1763 = vsel %vm630, %v616, 0
    %1765 = vmatprep.subr.mxu0 0.0
    %1766 = vmatpush1.xpose.msra.mxu0 %v1763
    %1767 = vmatprep.subr.mxu0 0.0
    %1768 = vmatpush1.xpose.msra.mxu0 0.0
    %1769 = vmatprep.subr.mxu0 0.0
    %1770 = vmatpush1.xpose.msra.mxu0 0.0
    %1771 = vmatprep.subr.mxu0 0.0
    %1772 = vmatpush1.xpose.msra.mxu0 0.0
    %1773 = vmatprep.subr.mxu0 0.0
    %1774 = vmatpush1.xpose.msra.mxu0 0.0
    %1775 = vmatprep.subr.mxu0 0.0
    %1776 = vmatpush1.xpose.msra.mxu0 0.0
    %1777 = vmatprep.subr.mxu0 0.0
    %1778 = vmatpush1.xpose.msra.mxu0 0.0
    %1779 = vmatprep.subr.mxu0 0.0
    %1780 = vmatpush1.xpose.msra.mxu0 0.0
    %1781 = vmatprep.subr.mxu0 0.0
    %1782 = vmatpush1.xpose.msra.mxu0 0.0
    %1783 = vmatprep.subr.mxu0 0.0
    %1784 = vmatpush1.xpose.msra.mxu0 0.0
    %1785 = vmatprep.subr.mxu0 0.0
    %1786 = vmatpush1.xpose.msra.mxu0 0.0
    %1787 = vmatprep.subr.mxu0 0.0
    %1788 = vmatpush1.xpose.msra.mxu0 0.0
    %1789 = vmatprep.subr.mxu0 0.0
    %1790 = vmatpush1.xpose.msra.mxu0 0.0
    %1791 = vmatprep.subr.mxu0 0.0
    %1792 = vmatpush1.xpose.msra.mxu0 0.0
    %1793 = vmatprep.subr.mxu0 0.0
    %1794 = vmatpush1.xpose.msra.mxu0 0.0
    %1795 = vmatprep.subr.mxu0 0.0
    %1796 = vmatpush1.xpose.msra.mxu0 0.0
    %1797 = vmatprep.subr.mxu0 0.0
    %1798 = vmatpush1.xpose.msra.mxu0 0.0
    %1799 = vmatprep.subr.mxu0 0.0
    %1800 = vmatpush1.xpose.msra.mxu0 0.0
    %1801 = vmatprep.subr.mxu0 0.0
    %1802 = vmatpush1.xpose.msra.mxu0 0.0
    %1803 = vmatprep.subr.mxu0 0.0
    %1804 = vmatpush1.xpose.msra.mxu0 0.0
    %1805 = vmatprep.subr.mxu0 0.0
    %1806 = vmatpush1.xpose.msra.mxu0 0.0
    %1807 = vmatprep.subr.mxu0 0.0
    %1808 = vmatpush1.xpose.msra.mxu0 0.0
    %1809 = vmatprep.subr.mxu0 0.0
    %1810 = vmatpush1.xpose.msra.mxu0 0.0
    %1811 = vmatprep.subr.mxu0 0.0
    %1812 = vmatpush1.xpose.msra.mxu0 0.0
    %1813 = vmatprep.subr.mxu0 0.0
    %1814 = vmatpush1.xpose.msra.mxu0 0.0
    %1815 = vmatprep.subr.mxu0 0.0
    %1816 = vmatpush1.xpose.msra.mxu0 0.0
    %1817 = vmatprep.subr.mxu0 0.0
    %1818 = vmatpush1.xpose.msra.mxu0 0.0
    %1819 = vmatprep.subr.mxu0 0.0
    %1820 = vmatpush1.xpose.msra.mxu0 0.0
    %1821 = vmatprep.subr.mxu0 0.0
    %1822 = vmatpush1.xpose.msra.mxu0 0.0
    %1823 = vmatprep.subr.mxu0 0.0
    %1824 = vmatpush1.xpose.msra.mxu0 0.0
    %1825 = vmatprep.subr.mxu0 0.0
    %1826 = vmatpush1.xpose.msra.mxu0 0.0
    %1827 = vmatprep.subr.mxu0 0.0
    %1828 = vmatpush1.xpose.msra.mxu0 0.0
    %1829 = vmatprep.mubr.f32.mxu0 0.0
    %1830 = vmatmul.mubr.f32.gmra.mrb[0].mxu0 %v1760
    %v1831 = vpop.f32.mrb[0].mxu0
    %v1832 = vadd.f32 0.0, %v1831
    %v1833 = vpop.f32.mrb[0].mxu0
    %1834 = vdwg.mxu0
    %v1836 = vsel %vm630, %v1302, 0
    %v1839 = vsel %vm630, %v617, 0
    %1841 = vmatprep.subr.mxu0 0.0
    %1842 = vmatpush1.xpose.msra.mxu0 %v1839
    %1843 = vmatprep.subr.mxu0 0.0
    %1844 = vmatpush1.xpose.msra.mxu0 0.0
    %1845 = vmatprep.subr.mxu0 0.0
    %1846 = vmatpush1.xpose.msra.mxu0 0.0
    %1847 = vmatprep.subr.mxu0 0.0
    %1848 = vmatpush1.xpose.msra.mxu0 0.0
    %1849 = vmatprep.subr.mxu0 0.0
    %1850 = vmatpush1.xpose.msra.mxu0 0.0
    %1851 = vmatprep.subr.mxu0 0.0
    %1852 = vmatpush1.xpose.msra.mxu0 0.0
    %1853 = vmatprep.subr.mxu0 0.0
    %1854 = vmatpush1.xpose.msra.mxu0 0.0
    %1855 = vmatprep.subr.mxu0 0.0
    %1856 = vmatpush1.xpose.msra.mxu0 0.0
    %1857 = vmatprep.subr.mxu0 0.0
    %1858 = vmatpush1.xpose.msra.mxu0 0.0
    %1859 = vmatprep.subr.mxu0 0.0
    %1860 = vmatpush1.xpose.msra.mxu0 0.0
    %1861 = vmatprep.subr.mxu0 0.0
    %1862 = vmatpush1.xpose.msra.mxu0 0.0
    %1863 = vmatprep.subr.mxu0 0.0
    %1864 = vmatpush1.xpose.msra.mxu0 0.0
    %1865 = vmatprep.subr.mxu0 0.0
    %1866 = vmatpush1.xpose.msra.mxu0 0.0
    %1867 = vmatprep.subr.mxu0 0.0
    %1868 = vmatpush1.xpose.msra.mxu0 0.0
    %1869 = vmatprep.subr.mxu0 0.0
    %1870 = vmatpush1.xpose.msra.mxu0 0.0
    %1871 = vmatprep.subr.mxu0 0.0
    %1872 = vmatpush1.xpose.msra.mxu0 0.0
    %1873 = vmatprep.subr.mxu0 0.0
    %1874 = vmatpush1.xpose.msra.mxu0 0.0
    %1875 = vmatprep.subr.mxu0 0.0
    %1876 = vmatpush1.xpose.msra.mxu0 0.0
    %1877 = vmatprep.subr.mxu0 0.0
    %1878 = vmatpush1.xpose.msra.mxu0 0.0
    %1879 = vmatprep.subr.mxu0 0.0
    %1880 = vmatpush1.xpose.msra.mxu0 0.0
    %1881 = vmatprep.subr.mxu0 0.0
    %1882 = vmatpush1.xpose.msra.mxu0 0.0
    %1883 = vmatprep.subr.mxu0 0.0
    %1884 = vmatpush1.xpose.msra.mxu0 0.0
    %1885 = vmatprep.subr.mxu0 0.0
    %1886 = vmatpush1.xpose.msra.mxu0 0.0
    %1887 = vmatprep.subr.mxu0 0.0
    %1888 = vmatpush1.xpose.msra.mxu0 0.0
    %1889 = vmatprep.subr.mxu0 0.0
    %1890 = vmatpush1.xpose.msra.mxu0 0.0
    %1891 = vmatprep.subr.mxu0 0.0
    %1892 = vmatpush1.xpose.msra.mxu0 0.0
    %1893 = vmatprep.subr.mxu0 0.0
    %1894 = vmatpush1.xpose.msra.mxu0 0.0
    %1895 = vmatprep.subr.mxu0 0.0
    %1896 = vmatpush1.xpose.msra.mxu0 0.0
    %1897 = vmatprep.subr.mxu0 0.0
    %1898 = vmatpush1.xpose.msra.mxu0 0.0
    %1899 = vmatprep.subr.mxu0 0.0
    %1900 = vmatpush1.xpose.msra.mxu0 0.0
    %1901 = vmatprep.subr.mxu0 0.0
    %1902 = vmatpush1.xpose.msra.mxu0 0.0
    %1903 = vmatprep.subr.mxu0 0.0
    %1904 = vmatpush1.xpose.msra.mxu0 0.0
    %1905 = vmatprep.mubr.f32.mxu0 0.0
    %1906 = vmatmul.mubr.f32.gmra.mrb[0].mxu0 %v1836
    %v1907 = vpop.f32.mrb[0].mxu0
    %v1908 = vadd.f32 0.0, %v1907
    %v1909 = vpop.f32.mrb[0].mxu0
    %1910 = vdwg.mxu0
    %1911 = vxpose.xlu0.b32.start [1/16] %v1376, 128
    %1912 = vxpose.xlu0.b32.cont [2/16] 0.0, 128
    %1913 = vxpose.xlu0.b32.cont [3/16] 0.0, 128
    %1914 = vxpose.xlu0.b32.cont [4/16] 0.0, 128
    %1915 = vxpose.xlu0.b32.cont [5/16] 0.0, 128
    %1916 = vxpose.xlu0.b32.cont [6/16] 0.0, 128
    %1917 = vxpose.xlu0.b32.cont [7/16] 0.0, 128
    %1918 = vxpose.xlu0.b32.cont [8/16] 0.0, 128
    %1919 = vxpose.xlu0.b32.cont [9/16] 0.0, 128
    %1920 = vxpose.xlu0.b32.cont [10/16] 0.0, 128
    %1921 = vxpose.xlu0.b32.cont [11/16] 0.0, 128
    %1922 = vxpose.xlu0.b32.cont [12/16] 0.0, 128
    %1923 = vxpose.xlu0.b32.cont [13/16] 0.0, 128
    %1924 = vxpose.xlu0.b32.cont [14/16] 0.0, 128
    %1925 = vxpose.xlu0.b32.cont [15/16] 0.0, 128
    %1926 = vxpose.xlu0.b32.end [16/16] 0.0, 128
    %v1927 = vpop.trf.xlu0
    %v1928 = vpop.trf.xlu0
    %v1929 = vpop.trf.xlu0
    %v1930 = vpop.trf.xlu0
    %v1931 = vpop.trf.xlu0
    %v1932 = vpop.trf.xlu0
    %v1933 = vpop.trf.xlu0
    %v1934 = vpop.trf.xlu0
    %v1935 = vpop.trf.xlu0
    %v1936 = vpop.trf.xlu0
    %v1937 = vpop.trf.xlu0
    %v1938 = vpop.trf.xlu0
    %v1939 = vpop.trf.xlu0
    %v1940 = vpop.trf.xlu0
    %v1941 = vpop.trf.xlu0
    %v1942 = vpop.trf.xlu0
    %1943 = vxpose.xlu0.b32.start [1/16] %v1452, 128
    %1944 = vxpose.xlu0.b32.cont [2/16] 0.0, 128
    %1945 = vxpose.xlu0.b32.cont [3/16] 0.0, 128
    %1946 = vxpose.xlu0.b32.cont [4/16] 0.0, 128
    %1947 = vxpose.xlu0.b32.cont [5/16] 0.0, 128
    %1948 = vxpose.xlu0.b32.cont [6/16] 0.0, 128
    %1949 = vxpose.xlu0.b32.cont [7/16] 0.0, 128
    %1950 = vxpose.xlu0.b32.cont [8/16] 0.0, 128
    %1951 = vxpose.xlu0.b32.cont [9/16] 0.0, 128
    %1952 = vxpose.xlu0.b32.cont [10/16] 0.0, 128
    %1953 = vxpose.xlu0.b32.cont [11/16] 0.0, 128
    %1954 = vxpose.xlu0.b32.cont [12/16] 0.0, 128
    %1955 = vxpose.xlu0.b32.cont [13/16] 0.0, 128
    %1956 = vxpose.xlu0.b32.cont [14/16] 0.0, 128
    %1957 = vxpose.xlu0.b32.cont [15/16] 0.0, 128
    %1958 = vxpose.xlu0.b32.end [16/16] 0.0, 128
    %v1959 = vpop.trf.xlu0
    %v1960 = vpop.trf.xlu0
    %v1961 = vpop.trf.xlu0
    %v1962 = vpop.trf.xlu0
    %v1963 = vpop.trf.xlu0
    %v1964 = vpop.trf.xlu0
    %v1965 = vpop.trf.xlu0
    %v1966 = vpop.trf.xlu0
    %v1967 = vpop.trf.xlu0
    %v1968 = vpop.trf.xlu0
    %v1969 = vpop.trf.xlu0
    %v1970 = vpop.trf.xlu0
    %v1971 = vpop.trf.xlu0
    %v1972 = vpop.trf.xlu0
    %v1973 = vpop.trf.xlu0
    %v1974 = vpop.trf.xlu0
    %1975 = vxpose.xlu0.b32.start [1/16] %v1528, 128
    %1976 = vxpose.xlu0.b32.cont [2/16] 0.0, 128
    %1977 = vxpose.xlu0.b32.cont [3/16] 0.0, 128
    %1978 = vxpose.xlu0.b32.cont [4/16] 0.0, 128
    %1979 = vxpose.xlu0.b32.cont [5/16] 0.0, 128
    %1980 = vxpose.xlu0.b32.cont [6/16] 0.0, 128
    %1981 = vxpose.xlu0.b32.cont [7/16] 0.0, 128
    %1982 = vxpose.xlu0.b32.cont [8/16] 0.0, 128
    %1983 = vxpose.xlu0.b32.cont [9/16] 0.0, 128
    %1984 = vxpose.xlu0.b32.cont [10/16] 0.0, 128
    %1985 = vxpose.xlu0.b32.cont [11/16] 0.0, 128
    %1986 = vxpose.xlu0.b32.cont [12/16] 0.0, 128
    %1987 = vxpose.xlu0.b32.cont [13/16] 0.0, 128
    %1988 = vxpose.xlu0.b32.cont [14/16] 0.0, 128
    %1989 = vxpose.xlu0.b32.cont [15/16] 0.0, 128
    %1990 = vxpose.xlu0.b32.end [16/16] 0.0, 128
    %v1991 = vpop.trf.xlu0
    %v1992 = vpop.trf.xlu0
    %v1993 = vpop.trf.xlu0
    %v1994 = vpop.trf.xlu0
    %v1995 = vpop.trf.xlu0
    %v1996 = vpop.trf.xlu0
    %v1997 = vpop.trf.xlu0
    %v1998 = vpop.trf.xlu0
    %v1999 = vpop.trf.xlu0
    %v2000 = vpop.trf.xlu0
    %v2001 = vpop.trf.xlu0
    %v2002 = vpop.trf.xlu0
    %v2003 = vpop.trf.xlu0
    %v2004 = vpop.trf.xlu0
    %v2005 = vpop.trf.xlu0
    %v2006 = vpop.trf.xlu0
    %2007 = vxpose.xlu0.b32.start [1/16] %v1604, 128
    %2008 = vxpose.xlu0.b32.cont [2/16] 0.0, 128
    %2009 = vxpose.xlu0.b32.cont [3/16] 0.0, 128
    %2010 = vxpose.xlu0.b32.cont [4/16] 0.0, 128
    %2011 = vxpose.xlu0.b32.cont [5/16] 0.0, 128
    %2012 = vxpose.xlu0.b32.cont [6/16] 0.0, 128
    %2013 = vxpose.xlu0.b32.cont [7/16] 0.0, 128
    %2014 = vxpose.xlu0.b32.cont [8/16] 0.0, 128
    %2015 = vxpose.xlu0.b32.cont [9/16] 0.0, 128
    %2016 = vxpose.xlu0.b32.cont [10/16] 0.0, 128
    %2017 = vxpose.xlu0.b32.cont [11/16] 0.0, 128
    %2018 = vxpose.xlu0.b32.cont [12/16] 0.0, 128
    %2019 = vxpose.xlu0.b32.cont [13/16] 0.0, 128
    %2020 = vxpose.xlu0.b32.cont [14/16] 0.0, 128
    %2021 = vxpose.xlu0.b32.cont [15/16] 0.0, 128
    %2022 = vxpose.xlu0.b32.end [16/16] 0.0, 128
    %v2023 = vpop.trf.xlu0
    %v2024 = vpop.trf.xlu0
    %v2025 = vpop.trf.xlu0
    %v2026 = vpop.trf.xlu0
    %v2027 = vpop.trf.xlu0
    %v2028 = vpop.trf.xlu0
    %v2029 = vpop.trf.xlu0
    %v2030 = vpop.trf.xlu0
    %v2031 = vpop.trf.xlu0
    %v2032 = vpop.trf.xlu0
    %v2033 = vpop.trf.xlu0
    %v2034 = vpop.trf.xlu0
    %v2035 = vpop.trf.xlu0
    %v2036 = vpop.trf.xlu0
    %v2037 = vpop.trf.xlu0
    %v2038 = vpop.trf.xlu0
    %2039 = vxpose.xlu0.b32.start [1/16] %v1680, 128
    %2040 = vxpose.xlu0.b32.cont [2/16] 0.0, 128
    %2041 = vxpose.xlu0.b32.cont [3/16] 0.0, 128
    %2042 = vxpose.xlu0.b32.cont [4/16] 0.0, 128
    %2043 = vxpose.xlu0.b32.cont [5/16] 0.0, 128
    %2044 = vxpose.xlu0.b32.cont [6/16] 0.0, 128
    %2045 = vxpose.xlu0.b32.cont [7/16] 0.0, 128
    %2046 = vxpose.xlu0.b32.cont [8/16] 0.0, 128
    %2047 = vxpose.xlu0.b32.cont [9/16] 0.0, 128
    %2048 = vxpose.xlu0.b32.cont [10/16] 0.0, 128
    %2049 = vxpose.xlu0.b32.cont [11/16] 0.0, 128
    %2050 = vxpose.xlu0.b32.cont [12/16] 0.0, 128
    %2051 = vxpose.xlu0.b32.cont [13/16] 0.0, 128
    %2052 = vxpose.xlu0.b32.cont [14/16] 0.0, 128
    %2053 = vxpose.xlu0.b32.cont [15/16] 0.0, 128
    %2054 = vxpose.xlu0.b32.end [16/16] 0.0, 128
    %v2055 = vpop.trf.xlu0
    %v2056 = vpop.trf.xlu0
    %v2057 = vpop.trf.xlu0
    %v2058 = vpop.trf.xlu0
    %v2059 = vpop.trf.xlu0
    %v2060 = vpop.trf.xlu0
    %v2061 = vpop.trf.xlu0
    %v2062 = vpop.trf.xlu0
    %v2063 = vpop.trf.xlu0
    %v2064 = vpop.trf.xlu0
    %v2065 = vpop.trf.xlu0
    %v2066 = vpop.trf.xlu0
    %v2067 = vpop.trf.xlu0
    %v2068 = vpop.trf.xlu0
    %v2069 = vpop.trf.xlu0
    %v2070 = vpop.trf.xlu0
    %2071 = vxpose.xlu0.b32.start [1/16] %v1756, 128
    %2072 = vxpose.xlu0.b32.cont [2/16] 0.0, 128
    %2073 = vxpose.xlu0.b32.cont [3/16] 0.0, 128
    %2074 = vxpose.xlu0.b32.cont [4/16] 0.0, 128
    %2075 = vxpose.xlu0.b32.cont [5/16] 0.0, 128
    %2076 = vxpose.xlu0.b32.cont [6/16] 0.0, 128
    %2077 = vxpose.xlu0.b32.cont [7/16] 0.0, 128
    %2078 = vxpose.xlu0.b32.cont [8/16] 0.0, 128
    %2079 = vxpose.xlu0.b32.cont [9/16] 0.0, 128
    %2080 = vxpose.xlu0.b32.cont [10/16] 0.0, 128
    %2081 = vxpose.xlu0.b32.cont [11/16] 0.0, 128
    %2082 = vxpose.xlu0.b32.cont [12/16] 0.0, 128
    %2083 = vxpose.xlu0.b32.cont [13/16] 0.0, 128
    %2084 = vxpose.xlu0.b32.cont [14/16] 0.0, 128
    %2085 = vxpose.xlu0.b32.cont [15/16] 0.0, 128
    %2086 = vxpose.xlu0.b32.end [16/16] 0.0, 128
    %v2087 = vpop.trf.xlu0
    %v2088 = vpop.trf.xlu0
    %v2089 = vpop.trf.xlu0
    %v2090 = vpop.trf.xlu0
    %v2091 = vpop.trf.xlu0
    %v2092 = vpop.trf.xlu0
    %v2093 = vpop.trf.xlu0
    %v2094 = vpop.trf.xlu0
    %v2095 = vpop.trf.xlu0
    %v2096 = vpop.trf.xlu0
    %v2097 = vpop.trf.xlu0
    %v2098 = vpop.trf.xlu0
    %v2099 = vpop.trf.xlu0
    %v2100 = vpop.trf.xlu0
    %v2101 = vpop.trf.xlu0
    %v2102 = vpop.trf.xlu0
    %2103 = vxpose.xlu0.b32.start [1/16] %v1832, 128
    %2104 = vxpose.xlu0.b32.cont [2/16] 0.0, 128
    %2105 = vxpose.xlu0.b32.cont [3/16] 0.0, 128
    %2106 = vxpose.xlu0.b32.cont [4/16] 0.0, 128
    %2107 = vxpose.xlu0.b32.cont [5/16] 0.0, 128
    %2108 = vxpose.xlu0.b32.cont [6/16] 0.0, 128
    %2109 = vxpose.xlu0.b32.cont [7/16] 0.0, 128
    %2110 = vxpose.xlu0.b32.cont [8/16] 0.0, 128
    %2111 = vxpose.xlu0.b32.cont [9/16] 0.0, 128
    %2112 = vxpose.xlu0.b32.cont [10/16] 0.0, 128
    %2113 = vxpose.xlu0.b32.cont [11/16] 0.0, 128
    %2114 = vxpose.xlu0.b32.cont [12/16] 0.0, 128
    %2115 = vxpose.xlu0.b32.cont [13/16] 0.0, 128
    %2116 = vxpose.xlu0.b32.cont [14/16] 0.0, 128
    %2117 = vxpose.xlu0.b32.cont [15/16] 0.0, 128
    %2118 = vxpose.xlu0.b32.end [16/16] 0.0, 128
    %v2119 = vpop.trf.xlu0
    %v2120 = vpop.trf.xlu0
    %v2121 = vpop.trf.xlu0
    %v2122 = vpop.trf.xlu0
    %v2123 = vpop.trf.xlu0
    %v2124 = vpop.trf.xlu0
    %v2125 = vpop.trf.xlu0
    %v2126 = vpop.trf.xlu0
    %v2127 = vpop.trf.xlu0
    %v2128 = vpop.trf.xlu0
    %v2129 = vpop.trf.xlu0
    %v2130 = vpop.trf.xlu0
    %v2131 = vpop.trf.xlu0
    %v2132 = vpop.trf.xlu0
    %v2133 = vpop.trf.xlu0
    %v2134 = vpop.trf.xlu0
    %2135 = vxpose.xlu0.b32.start [1/16] %v1908, 128
    %2136 = vxpose.xlu0.b32.cont [2/16] 0.0, 128
    %2137 = vxpose.xlu0.b32.cont [3/16] 0.0, 128
    %2138 = vxpose.xlu0.b32.cont [4/16] 0.0, 128
    %2139 = vxpose.xlu0.b32.cont [5/16] 0.0, 128
    %2140 = vxpose.xlu0.b32.cont [6/16] 0.0, 128
    %2141 = vxpose.xlu0.b32.cont [7/16] 0.0, 128
    %2142 = vxpose.xlu0.b32.cont [8/16] 0.0, 128
    %2143 = vxpose.xlu0.b32.cont [9/16] 0.0, 128
    %2144 = vxpose.xlu0.b32.cont [10/16] 0.0, 128
    %2145 = vxpose.xlu0.b32.cont [11/16] 0.0, 128
    %2146 = vxpose.xlu0.b32.cont [12/16] 0.0, 128
    %2147 = vxpose.xlu0.b32.cont [13/16] 0.0, 128
    %2148 = vxpose.xlu0.b32.cont [14/16] 0.0, 128
    %2149 = vxpose.xlu0.b32.cont [15/16] 0.0, 128
    %2150 = vxpose.xlu0.b32.end [16/16] 0.0, 128
    %v2151 = vpop.trf.xlu0
    %v2152 = vpop.trf.xlu0
    %v2153 = vpop.trf.xlu0
    %v2154 = vpop.trf.xlu0
    %v2155 = vpop.trf.xlu0
    %v2156 = vpop.trf.xlu0
    %v2157 = vpop.trf.xlu0
    %v2158 = vpop.trf.xlu0
    %v2159 = vpop.trf.xlu0
    %v2160 = vpop.trf.xlu0
    %v2161 = vpop.trf.xlu0
    %v2162 = vpop.trf.xlu0
    %v2163 = vpop.trf.xlu0
    %v2164 = vpop.trf.xlu0
    %v2165 = vpop.trf.xlu0
    %v2166 = vpop.trf.xlu0
    %2167 = vxpose.xlu0.b32.start [1/16] %v1927, 128
    %2168 = vxpose.xlu0.b32.cont [2/16] %v1959, 128
    %2169 = vxpose.xlu0.b32.cont [3/16] %v1991, 128
    %2170 = vxpose.xlu0.b32.cont [4/16] %v2023, 128
    %2171 = vxpose.xlu0.b32.cont [5/16] 0.0, 128
    %2172 = vxpose.xlu0.b32.cont [6/16] 0.0, 128
    %2173 = vxpose.xlu0.b32.cont [7/16] 0.0, 128
    %2174 = vxpose.xlu0.b32.cont [8/16] 0.0, 128
    %2175 = vxpose.xlu0.b32.cont [9/16] 0.0, 128
    %2176 = vxpose.xlu0.b32.cont [10/16] 0.0, 128
    %2177 = vxpose.xlu0.b32.cont [11/16] 0.0, 128
    %2178 = vxpose.xlu0.b32.cont [12/16] 0.0, 128
    %2179 = vxpose.xlu0.b32.cont [13/16] 0.0, 128
    %2180 = vxpose.xlu0.b32.cont [14/16] 0.0, 128
    %2181 = vxpose.xlu0.b32.cont [15/16] 0.0, 128
    %2182 = vxpose.xlu0.b32.end [16/16] 0.0, 128
    %v2183 = vpop.trf.xlu0
    %v2184 = vpop.trf.xlu0
    %v2185 = vpop.trf.xlu0
    %v2186 = vpop.trf.xlu0
    %v2187 = vpop.trf.xlu0
    %v2188 = vpop.trf.xlu0
    %v2189 = vpop.trf.xlu0
    %v2190 = vpop.trf.xlu0
    %v2191 = vpop.trf.xlu0
    %v2192 = vpop.trf.xlu0
    %v2193 = vpop.trf.xlu0
    %v2194 = vpop.trf.xlu0
    %v2195 = vpop.trf.xlu0
    %v2196 = vpop.trf.xlu0
    %v2197 = vpop.trf.xlu0
    %v2198 = vpop.trf.xlu0
    %2199 = vxpose.xlu0.b32.start [1/16] %v2055, 128
    %2200 = vxpose.xlu0.b32.cont [2/16] %v2087, 128
    %2201 = vxpose.xlu0.b32.cont [3/16] %v2119, 128
    %2202 = vxpose.xlu0.b32.cont [4/16] %v2151, 128
    %2203 = vxpose.xlu0.b32.cont [5/16] 0.0, 128
    %2204 = vxpose.xlu0.b32.cont [6/16] 0.0, 128
    %2205 = vxpose.xlu0.b32.cont [7/16] 0.0, 128
    %2206 = vxpose.xlu0.b32.cont [8/16] 0.0, 128
    %2207 = vxpose.xlu0.b32.cont [9/16] 0.0, 128
    %2208 = vxpose.xlu0.b32.cont [10/16] 0.0, 128
    %2209 = vxpose.xlu0.b32.cont [11/16] 0.0, 128
    %2210 = vxpose.xlu0.b32.cont [12/16] 0.0, 128
    %2211 = vxpose.xlu0.b32.cont [13/16] 0.0, 128
    %2212 = vxpose.xlu0.b32.cont [14/16] 0.0, 128
    %2213 = vxpose.xlu0.b32.cont [15/16] 0.0, 128
    %2214 = vxpose.xlu0.b32.end [16/16] 0.0, 128
    %v2215 = vpop.trf.xlu0
    %v2216 = vpop.trf.xlu0
    %v2217 = vpop.trf.xlu0
    %v2218 = vpop.trf.xlu0
    %v2219 = vpop.trf.xlu0
    %v2220 = vpop.trf.xlu0
    %v2221 = vpop.trf.xlu0
    %v2222 = vpop.trf.xlu0
    %v2223 = vpop.trf.xlu0
    %v2224 = vpop.trf.xlu0
    %v2225 = vpop.trf.xlu0
    %v2226 = vpop.trf.xlu0
    %v2227 = vpop.trf.xlu0
    %v2228 = vpop.trf.xlu0
    %v2229 = vpop.trf.xlu0
    %v2230 = vpop.trf.xlu0
    %v2231 = vld [vmem:[%s3] sm:$0xff]
    %v2232 = vld [vmem:[%s3 + $0x8] sm:$0xff]
    %v2233 = vld [vmem:[%s3 + $0x10] sm:$0xff]
    %v2234 = vld [vmem:[%s3 + $0x18] sm:$0xff]
    %v2235 = vlaneseq
    %v2236 = vshrl.u32 %v2235, 7
    %v2237 = vsub.s32 4, %v2236
    %v2238 = vrot.slane %v35, %v2237
    %v2240 = vsel %vm36, %v2183, 0
    %v2243 = vsel %vm36, %v2215, 0
    %2245 = vmatprep.subr.mxu0 0.0
    %2246 = vmatpush1.msra.mxu0 %v2231
    %2247 = vmatprep.subr.mxu0 0.0
    %2248 = vmatpush1.msra.mxu0 %v2232
    %2249 = vmatprep.subr.mxu0 0.0
    %2250 = vmatpush1.msra.mxu0 %v2233
    %2251 = vmatprep.subr.mxu0 0.0
    %2252 = vmatpush1.msra.mxu0 %v2234
    %2253 = vmatprep.subr.mxu0 0.0
    %2254 = vmatpush1.msra.mxu0 0.0
    %2255 = vmatprep.subr.mxu0 0.0
    %2256 = vmatpush1.msra.mxu0 0.0
    %2257 = vmatprep.subr.mxu0 0.0
    %2258 = vmatpush1.msra.mxu0 0.0
    %2259 = vmatprep.subr.mxu0 0.0
    %2260 = vmatpush1.msra.mxu0 0.0
    %2261 = vmatprep.subr.mxu0 0.0
    %2262 = vmatpush1.msra.mxu0 0.0
    %2263 = vmatprep.subr.mxu0 0.0
    %2264 = vmatpush1.msra.mxu0 0.0
    %2265 = vmatprep.subr.mxu0 0.0
    %2266 = vmatpush1.msra.mxu0 0.0
    %2267 = vmatprep.subr.mxu0 0.0
    %2268 = vmatpush1.msra.mxu0 0.0
    %2269 = vmatprep.subr.mxu0 0.0
    %2270 = vmatpush1.msra.mxu0 0.0
    %2271 = vmatprep.subr.mxu0 0.0
    %2272 = vmatpush1.msra.mxu0 0.0
    %2273 = vmatprep.subr.mxu0 0.0
    %2274 = vmatpush1.msra.mxu0 0.0
    %2275 = vmatprep.subr.mxu0 0.0
    %2276 = vmatpush1.msra.mxu0 0.0
    %2277 = vmatprep.subr.mxu0 0.0
    %2278 = vmatpush1.msra.mxu0 0.0
    %2279 = vmatprep.subr.mxu0 0.0
    %2280 = vmatpush1.msra.mxu0 0.0
    %2281 = vmatprep.subr.mxu0 0.0
    %2282 = vmatpush1.msra.mxu0 0.0
    %2283 = vmatprep.subr.mxu0 0.0
    %2284 = vmatpush1.msra.mxu0 0.0
    %2285 = vmatprep.subr.mxu0 0.0
    %2286 = vmatpush1.msra.mxu0 0.0
    %2287 = vmatprep.subr.mxu0 0.0
    %2288 = vmatpush1.msra.mxu0 0.0
    %2289 = vmatprep.subr.mxu0 0.0
    %2290 = vmatpush1.msra.mxu0 0.0
    %2291 = vmatprep.subr.mxu0 0.0
    %2292 = vmatpush1.msra.mxu0 0.0
    %2293 = vmatprep.subr.mxu0 0.0
    %2294 = vmatpush1.msra.mxu0 0.0
    %2295 = vmatprep.subr.mxu0 0.0
    %2296 = vmatpush1.msra.mxu0 0.0
    %2297 = vmatprep.subr.mxu0 0.0
    %2298 = vmatpush1.msra.mxu0 0.0
    %2299 = vmatprep.subr.mxu0 0.0
    %2300 = vmatpush1.msra.mxu0 0.0
    %2301 = vmatprep.subr.mxu0 0.0
    %2302 = vmatpush1.msra.mxu0 0.0
    %2303 = vmatprep.subr.mxu0 0.0
    %2304 = vmatpush1.msra.mxu0 0.0
    %2305 = vmatprep.subr.mxu0 0.0
    %2306 = vmatpush1.msra.mxu0 0.0
    %2307 = vmatprep.subr.mxu0 0.0
    %2308 = vmatpush1.msra.mxu0 0.0
    %2309 = vmatprep.mubr.f32.mxu0 0.0
    %2310 = vmatmul.mubr.f32.gmra.mrb[0].mxu0 %v2240
    %v2311 = vpop.f32.mrb[0].mxu0
    %v2312 = vadd.f32 %v2238, %v2311
    %v2313 = vpop.f32.mrb[0].mxu0
    %2314 = vmatprep.mubr.f32.mxu0 0.0
    %2315 = vmatmul.mubr.f32.gmra.mrb[0].mxu0 %v2243
    %v2316 = vpop.f32.mrb[0].mxu0
    %v2317 = vadd.f32 %v2238, %v2316
    %v2318 = vpop.f32.mrb[0].mxu0
    %2319 = vdwg.mxu0
    %v2320 = vadd.f32 %v2312, %v33
    %v2321 = vadd.f32 %v2317, %v34
    %v2322 = vsel %vm36, %v2320, 0.0
    %2323 = vadd.xlane.f32.xlu0 %v2322
    %v2324 = vpop.xlane.xlu0 %2323
    %v2325 = vsel %vm36, %v2321, 0.0
    %2326 = vadd.xlane.f32.xlu0 %v2325
    %v2327 = vpop.xlane.xlu0 %2326
    %v2328 = vmul.f32 %v2324, %v43
    %v2329 = vmul.f32 %v2327, %v43
    %v2330 = vsub.f32 %v2320, %v2328
    %v2331 = vsub.f32 %v2321, %v2329
    %v2332 = vmul.f32 %v2330, %v2330
    %v2333 = vmul.f32 %v2331, %v2331
    %v2334 = vsel %vm36, %v2332, 0.0
    %2335 = vadd.xlane.f32.xlu0 %v2334
    %v2336 = vpop.xlane.xlu0 %2335
    %v2337 = vsel %vm36, %v2333, 0.0
    %2338 = vadd.xlane.f32.xlu0 %v2337
    %v2339 = vpop.xlane.xlu0 %2338
    %v2340 = vmul.f32 %v2336, %v43
    %v2341 = vmul.f32 %v2339, %v43
    %v2342 = vadd.f32 %v2340, 1e-06
    %v2343 = vadd.f32 %v2341, 1e-06
    %v2344 = vrsqrt.pop %v2342
    %v2345 = vrsqrt.pop %v2343
    %v2346 = vmul.f32 %v2330, %v2344
    %v2347 = vmul.f32 %v2331, %v2345
    %v2348 = vlaneseq
    %v2349 = vshrl.u32 %v2348, 7
    %v2350 = vsub.s32 2, %v2349
    %v2351 = vrot.slane %v35, %v2350
    %v2352 = vmul.f32 %v2346, %v2351
    %v2353 = vmul.f32 %v2347, %v2351
    %v2354 = vlaneseq
    %v2355 = vshrl.u32 %v2354, 7
    %v2356 = vsub.s32 3, %v2355
    %v2357 = vrot.slane %v35, %v2356
    %v2358 = vadd.f32 %v2352, %v2357
    %v2359 = vadd.f32 %v2353, %v2357
    %v2360 = vld [vmem:[%s4] sm:$0xff]
    %v2361 = vld [vmem:[%s4 + $0x8] sm:$0xff]
    %v2362 = vld [vmem:[%s4 + $0x10] sm:$0xff]
    %v2363 = vld [vmem:[%s4 + $0x18] sm:$0xff]
    %v2364 = vld [vmem:[%s5] sm:$0x1]
    %v2366 = vlaneseq
    %v2367 = vshrl.u32 %v2366, 7
    %v2368 = vsub.s32 0, %v2367
    %v2369 = vrot.slane %v2364, %v2368
    %v2372 = vsel %vm36, %v2358, 0
    %v2375 = vsel %vm36, %v2359, 0
    %2377 = vmatprep.subr.mxu0 0.0
    %2378 = vmatpush1.msra.mxu0 %v2360
    %2379 = vmatprep.subr.mxu0 0.0
    %2380 = vmatpush1.msra.mxu0 %v2361
    %2381 = vmatprep.subr.mxu0 0.0
    %2382 = vmatpush1.msra.mxu0 %v2362
    %2383 = vmatprep.subr.mxu0 0.0
    %2384 = vmatpush1.msra.mxu0 %v2363
    %2385 = vmatprep.subr.mxu0 0.0
    %2386 = vmatpush1.msra.mxu0 0.0
    %2387 = vmatprep.subr.mxu0 0.0
    %2388 = vmatpush1.msra.mxu0 0.0
    %2389 = vmatprep.subr.mxu0 0.0
    %2390 = vmatpush1.msra.mxu0 0.0
    %2391 = vmatprep.subr.mxu0 0.0
    %2392 = vmatpush1.msra.mxu0 0.0
    %2393 = vmatprep.subr.mxu0 0.0
    %2394 = vmatpush1.msra.mxu0 0.0
    %2395 = vmatprep.subr.mxu0 0.0
    %2396 = vmatpush1.msra.mxu0 0.0
    %2397 = vmatprep.subr.mxu0 0.0
    %2398 = vmatpush1.msra.mxu0 0.0
    %2399 = vmatprep.subr.mxu0 0.0
    %2400 = vmatpush1.msra.mxu0 0.0
    %2401 = vmatprep.subr.mxu0 0.0
    %2402 = vmatpush1.msra.mxu0 0.0
    %2403 = vmatprep.subr.mxu0 0.0
    %2404 = vmatpush1.msra.mxu0 0.0
    %2405 = vmatprep.subr.mxu0 0.0
    %2406 = vmatpush1.msra.mxu0 0.0
    %2407 = vmatprep.subr.mxu0 0.0
    %2408 = vmatpush1.msra.mxu0 0.0
    %2409 = vmatprep.subr.mxu0 0.0
    %2410 = vmatpush1.msra.mxu0 0.0
    %2411 = vmatprep.subr.mxu0 0.0
    %2412 = vmatpush1.msra.mxu0 0.0
    %2413 = vmatprep.subr.mxu0 0.0
    %2414 = vmatpush1.msra.mxu0 0.0
    %2415 = vmatprep.subr.mxu0 0.0
    %2416 = vmatpush1.msra.mxu0 0.0
    %2417 = vmatprep.subr.mxu0 0.0
    %2418 = vmatpush1.msra.mxu0 0.0
    %2419 = vmatprep.subr.mxu0 0.0
    %2420 = vmatpush1.msra.mxu0 0.0
    %2421 = vmatprep.subr.mxu0 0.0
    %2422 = vmatpush1.msra.mxu0 0.0
    %2423 = vmatprep.subr.mxu0 0.0
    %2424 = vmatpush1.msra.mxu0 0.0
    %2425 = vmatprep.subr.mxu0 0.0
    %2426 = vmatpush1.msra.mxu0 0.0
    %2427 = vmatprep.subr.mxu0 0.0
    %2428 = vmatpush1.msra.mxu0 0.0
    %2429 = vmatprep.subr.mxu0 0.0
    %2430 = vmatpush1.msra.mxu0 0.0
    %2431 = vmatprep.subr.mxu0 0.0
    %2432 = vmatpush1.msra.mxu0 0.0
    %2433 = vmatprep.subr.mxu0 0.0
    %2434 = vmatpush1.msra.mxu0 0.0
    %2435 = vmatprep.subr.mxu0 0.0
    %2436 = vmatpush1.msra.mxu0 0.0
    %2437 = vmatprep.subr.mxu0 0.0
    %2438 = vmatpush1.msra.mxu0 0.0
    %2439 = vmatprep.subr.mxu0 0.0
    %2440 = vmatpush1.msra.mxu0 0.0
    %2441 = vmatprep.mubr.f32.mxu0 0.0
    %2442 = vmatmul.mubr.f32.gmra.mrb[0].mxu0 %v2372
    %v2443 = vpop.f32.mrb[0].mxu0
    %v2444 = vadd.f32 %v2369, %v2443
    %v2445 = vpop.f32.mrb[0].mxu0
    %2446 = vmatprep.mubr.f32.mxu0 0.0
    %2447 = vmatmul.mubr.f32.gmra.mrb[0].mxu0 %v2375
    %v2448 = vpop.f32.mrb[0].mxu0
    %v2449 = vadd.f32 %v2369, %v2448
    %v2450 = vpop.f32.mrb[0].mxu0
    %2451 = vdwg.mxu0
    %v2452 = vmul.f32 %v2444, 0.5
    %v2453 = vmul.f32 %v2449, 0.5
    %v2454 = vmul.f32 %v2444, 0.70710677
    %v2455 = vmul.f32 %v2449, 0.70710677
    %v2456 = verf.f32.pop %v2454
    %v2457 = verf.f32.pop %v2455
    %v2458 = vadd.f32 %v2456, 1.0
    %v2459 = vadd.f32 %v2457, 1.0
    %v2460 = vmul.f32 %v2452, %v2458
    %v2461 = vmul.f32 %v2453, %v2459
    %v2462 = vld [vmem:[%s6] sm:$0xff]
    %v2463 = vld [vmem:[%s6 + $0x8] sm:$0xff]
    %v2464 = vld [vmem:[%s6 + $0x10] sm:$0xff]
    %v2465 = vld [vmem:[%s6 + $0x18] sm:$0xff]
    %v2466 = vld [vmem:[%s6 + $0x20] sm:$0xff]
    %v2467 = vld [vmem:[%s6 + $0x28] sm:$0xff]
    %v2468 = vld [vmem:[%s6 + $0x30] sm:$0xff]
    %v2469 = vld [vmem:[%s6 + $0x38] sm:$0xff]
    %v2470 = vlaneseq
    %v2471 = vshrl.u32 %v2470, 7
    %v2472 = vsub.s32 5, %v2471
    %v2473 = vrot.slane %v35, %v2472
    %vm2474 = vcmask 523264
    %v2476 = vsel %vm2474, %v2460, 0
    %v2479 = vsel %vm2474, %v2461, 0
    %2481 = vmatprep.subr.mxu0 0.0
    %2482 = vmatpush1.msra.mxu0 %v2462
    %2483 = vmatprep.subr.mxu0 0.0
    %2484 = vmatpush1.msra.mxu0 %v2463
    %2485 = vmatprep.subr.mxu0 0.0
    %2486 = vmatpush1.msra.mxu0 %v2464
    %2487 = vmatprep.subr.mxu0 0.0
    %2488 = vmatpush1.msra.mxu0 %v2465
    %2489 = vmatprep.subr.mxu0 0.0
    %2490 = vmatpush1.msra.mxu0 %v2466
    %2491 = vmatprep.subr.mxu0 0.0
    %2492 = vmatpush1.msra.mxu0 %v2467
    %2493 = vmatprep.subr.mxu0 0.0
    %2494 = vmatpush1.msra.mxu0 %v2468
    %2495 = vmatprep.subr.mxu0 0.0
    %2496 = vmatpush1.msra.mxu0 %v2469
    %2497 = vmatprep.subr.mxu0 0.0
    %2498 = vmatpush1.msra.mxu0 0.0
    %2499 = vmatprep.subr.mxu0 0.0
    %2500 = vmatpush1.msra.mxu0 0.0
    %2501 = vmatprep.subr.mxu0 0.0
    %2502 = vmatpush1.msra.mxu0 0.0
    %2503 = vmatprep.subr.mxu0 0.0
    %2504 = vmatpush1.msra.mxu0 0.0
    %2505 = vmatprep.subr.mxu0 0.0
    %2506 = vmatpush1.msra.mxu0 0.0
    %2507 = vmatprep.subr.mxu0 0.0
    %2508 = vmatpush1.msra.mxu0 0.0
    %2509 = vmatprep.subr.mxu0 0.0
    %2510 = vmatpush1.msra.mxu0 0.0
    %2511 = vmatprep.subr.mxu0 0.0
    %2512 = vmatpush1.msra.mxu0 0.0
    %2513 = vmatprep.subr.mxu0 0.0
    %2514 = vmatpush1.msra.mxu0 0.0
    %2515 = vmatprep.subr.mxu0 0.0
    %2516 = vmatpush1.msra.mxu0 0.0
    %2517 = vmatprep.subr.mxu0 0.0
    %2518 = vmatpush1.msra.mxu0 0.0
    %2519 = vmatprep.subr.mxu0 0.0
    %2520 = vmatpush1.msra.mxu0 0.0
    %2521 = vmatprep.subr.mxu0 0.0
    %2522 = vmatpush1.msra.mxu0 0.0
    %2523 = vmatprep.subr.mxu0 0.0
    %2524 = vmatpush1.msra.mxu0 0.0
    %2525 = vmatprep.subr.mxu0 0.0
    %2526 = vmatpush1.msra.mxu0 0.0
    %2527 = vmatprep.subr.mxu0 0.0
    %2528 = vmatpush1.msra.mxu0 0.0
    %2529 = vmatprep.subr.mxu0 0.0
    %2530 = vmatpush1.msra.mxu0 0.0
    %2531 = vmatprep.subr.mxu0 0.0
    %2532 = vmatpush1.msra.mxu0 0.0
    %2533 = vmatprep.subr.mxu0 0.0
    %2534 = vmatpush1.msra.mxu0 0.0
    %2535 = vmatprep.subr.mxu0 0.0
    %2536 = vmatpush1.msra.mxu0 0.0
    %2537 = vmatprep.subr.mxu0 0.0
    %2538 = vmatpush1.msra.mxu0 0.0
    %2539 = vmatprep.subr.mxu0 0.0
    %2540 = vmatpush1.msra.mxu0 0.0
    %2541 = vmatprep.subr.mxu0 0.0
    %2542 = vmatpush1.msra.mxu0 0.0
    %2543 = vmatprep.subr.mxu0 0.0
    %2544 = vmatpush1.msra.mxu0 0.0
    %2545 = vmatprep.mubr.f32.mxu0 0.0
    %2546 = vmatmul.mubr.f32.gmra.mrb[0].mxu0 %v2476
    %v2547 = vpop.f32.mrb[0].mxu0
    %v2548 = vadd.f32 %v2473, %v2547
    %v2549 = vpop.f32.mrb[0].mxu0
    %2550 = vmatprep.mubr.f32.mxu0 0.0
    %2551 = vmatmul.mubr.f32.gmra.mrb[0].mxu0 %v2479
    %v2552 = vpop.f32.mrb[0].mxu0
    %v2553 = vadd.f32 %v2473, %v2552
    %v2554 = vpop.f32.mrb[0].mxu0
    %2555 = vdwg.mxu0
    %v2556 = vadd.f32 %v2548, %v2320
    %v2557 = vadd.f32 %v2553, %v2321
    %s2558 = scalar_lea.vmem %s7, 8
    %v2559 = vld [vmem:[%s2558] sm:$0x3f]
    %v2560 = vsel %vm36, %v2556, 0.0
    %2561 = vadd.xlane.f32.xlu0 %v2560
    %v2562 = vpop.xlane.xlu0 %2561
    %v2563 = vsel %vm36, %v2557, 0.0
    %2564 = vadd.xlane.f32.xlu0 %v2563
    %v2565 = vpop.xlane.xlu0 %2564
    %v2566 = vmul.f32 %v2562, %v43
    %v2567 = vmul.f32 %v2565, %v43
    %v2568 = vsub.f32 %v2556, %v2566
    %v2569 = vsub.f32 %v2557, %v2567
    %v2570 = vmul.f32 %v2568, %v2568
    %v2571 = vmul.f32 %v2569, %v2569
    %v2572 = vsel %vm36, %v2570, 0.0
    %2573 = vadd.xlane.f32.xlu0 %v2572
    %v2574 = vpop.xlane.xlu0 %2573
    %v2575 = vsel %vm36, %v2571, 0.0
    %2576 = vadd.xlane.f32.xlu0 %v2575
    %v2577 = vpop.xlane.xlu0 %2576
    %v2578 = vmul.f32 %v2574, %v43
    %v2579 = vmul.f32 %v2577, %v43
    %v2580 = vadd.f32 %v2578, 1e-06
    %v2581 = vadd.f32 %v2579, 1e-06
    %v2582 = vrsqrt.pop %v2580
    %v2583 = vrsqrt.pop %v2581
    %v2584 = vmul.f32 %v2568, %v2582
    %v2585 = vmul.f32 %v2569, %v2583
    %v2586 = vlaneseq
    %v2587 = vshrl.u32 %v2586, 7
    %v2588 = vsub.s32 0, %v2587
    %v2589 = vrot.slane %v2559, %v2588
    %v2590 = vmul.f32 %v2584, %v2589
    %v2591 = vmul.f32 %v2585, %v2589
    %v2592 = vlaneseq
    %v2593 = vshrl.u32 %v2592, 7
    %v2594 = vsub.s32 1, %v2593
    %v2595 = vrot.slane %v2559, %v2594
    %v2596 = vadd.f32 %v2590, %v2595
    %v2597 = vadd.f32 %v2591, %v2595
    %s2598 = scalar_lea.vmem %s1, 32
    %v2599 = vld [vmem:[%s2598] sm:$0xff]
    %v2600 = vld [vmem:[%s2598 + $0x8] sm:$0xff]
    %v2601 = vld [vmem:[%s2598 + $0x10] sm:$0xff]
    %v2602 = vld [vmem:[%s2598 + $0x18] sm:$0xff]
    %s2603 = scalar_lea.vmem %s2, 1
    %v2604 = vld [vmem:[%s2603] sm:$0x1]
    %v2606 = vlaneseq
    %v2607 = vshrl.u32 %v2606, 7
    %v2608 = vsub.s32 0, %v2607
    %v2609 = vrot.slane %v2604, %v2608
    %v2612 = vsel %vm36, %v2596, 0
    %v2615 = vsel %vm36, %v2597, 0
    %2617 = vmatprep.subr.mxu0 0.0
    %2618 = vmatpush1.msra.mxu0 %v2599
    %2619 = vmatprep.subr.mxu0 0.0
    %2620 = vmatpush1.msra.mxu0 %v2600
    %2621 = vmatprep.subr.mxu0 0.0
    %2622 = vmatpush1.msra.mxu0 %v2601
    %2623 = vmatprep.subr.mxu0 0.0
    %2624 = vmatpush1.msra.mxu0 %v2602
    %2625 = vmatprep.subr.mxu0 0.0
    %2626 = vmatpush1.msra.mxu0 0.0
    %2627 = vmatprep.subr.mxu0 0.0
    %2628 = vmatpush1.msra.mxu0 0.0
    %2629 = vmatprep.subr.mxu0 0.0
    %2630 = vmatpush1.msra.mxu0 0.0
    %2631 = vmatprep.subr.mxu0 0.0
    %2632 = vmatpush1.msra.mxu0 0.0
    %2633 = vmatprep.subr.mxu0 0.0
    %2634 = vmatpush1.msra.mxu0 0.0
    %2635 = vmatprep.subr.mxu0 0.0
    %2636 = vmatpush1.msra.mxu0 0.0
    %2637 = vmatprep.subr.mxu0 0.0
    %2638 = vmatpush1.msra.mxu0 0.0
    %2639 = vmatprep.subr.mxu0 0.0
    %2640 = vmatpush1.msra.mxu0 0.0
    %2641 = vmatprep.subr.mxu0 0.0
    %2642 = vmatpush1.msra.mxu0 0.0
    %2643 = vmatprep.subr.mxu0 0.0
    %2644 = vmatpush1.msra.mxu0 0.0
    %2645 = vmatprep.subr.mxu0 0.0
    %2646 = vmatpush1.msra.mxu0 0.0
    %2647 = vmatprep.subr.mxu0 0.0
    %2648 = vmatpush1.msra.mxu0 0.0
    %2649 = vmatprep.subr.mxu0 0.0
    %2650 = vmatpush1.msra.mxu0 0.0
    %2651 = vmatprep.subr.mxu0 0.0
    %2652 = vmatpush1.msra.mxu0 0.0
    %2653 = vmatprep.subr.mxu0 0.0
    %2654 = vmatpush1.msra.mxu0 0.0
    %2655 = vmatprep.subr.mxu0 0.0
    %2656 = vmatpush1.msra.mxu0 0.0
    %2657 = vmatprep.subr.mxu0 0.0
    %2658 = vmatpush1.msra.mxu0 0.0
    %2659 = vmatprep.subr.mxu0 0.0
    %2660 = vmatpush1.msra.mxu0 0.0
    %2661 = vmatprep.subr.mxu0 0.0
    %2662 = vmatpush1.msra.mxu0 0.0
    %2663 = vmatprep.subr.mxu0 0.0
    %2664 = vmatpush1.msra.mxu0 0.0
    %2665 = vmatprep.subr.mxu0 0.0
    %2666 = vmatpush1.msra.mxu0 0.0
    %2667 = vmatprep.subr.mxu0 0.0
    %2668 = vmatpush1.msra.mxu0 0.0
    %2669 = vmatprep.subr.mxu0 0.0
    %2670 = vmatpush1.msra.mxu0 0.0
    %2671 = vmatprep.subr.mxu0 0.0
    %2672 = vmatpush1.msra.mxu0 0.0
    %2673 = vmatprep.subr.mxu0 0.0
    %2674 = vmatpush1.msra.mxu0 0.0
    %2675 = vmatprep.subr.mxu0 0.0
    %2676 = vmatpush1.msra.mxu0 0.0
    %2677 = vmatprep.subr.mxu0 0.0
    %2678 = vmatpush1.msra.mxu0 0.0
    %2679 = vmatprep.subr.mxu0 0.0
    %2680 = vmatpush1.msra.mxu0 0.0
    %2681 = vmatprep.mubr.f32.mxu0 0.0
    %2682 = vmatmul.mubr.f32.gmra.mrb[0].mxu0 %v2612
    %v2683 = vpop.f32.mrb[0].mxu0
    %v2684 = vadd.f32 %v2609, %v2683
    %v2685 = vpop.f32.mrb[0].mxu0
    %2686 = vmatprep.mubr.f32.mxu0 0.0
    %2687 = vmatmul.mubr.f32.gmra.mrb[0].mxu0 %v2615
    %v2688 = vpop.f32.mrb[0].mxu0
    %v2689 = vadd.f32 %v2609, %v2688
    %v2690 = vpop.f32.mrb[0].mxu0
    %2691 = vdwg.mxu0
    %2692 = vxpose.xlu0.b32.start [1/16] %v2684, 128
    %2693 = vxpose.xlu0.b32.cont [2/16] 0.0, 128
    %2694 = vxpose.xlu0.b32.cont [3/16] 0.0, 128
    %2695 = vxpose.xlu0.b32.cont [4/16] 0.0, 128
    %2696 = vxpose.xlu0.b32.cont [5/16] 0.0, 128
    %2697 = vxpose.xlu0.b32.cont [6/16] 0.0, 128
    %2698 = vxpose.xlu0.b32.cont [7/16] 0.0, 128
    %2699 = vxpose.xlu0.b32.cont [8/16] 0.0, 128
    %2700 = vxpose.xlu0.b32.cont [9/16] 0.0, 128
    %2701 = vxpose.xlu0.b32.cont [10/16] 0.0, 128
    %2702 = vxpose.xlu0.b32.cont [11/16] 0.0, 128
    %2703 = vxpose.xlu0.b32.cont [12/16] 0.0, 128
    %2704 = vxpose.xlu0.b32.cont [13/16] 0.0, 128
    %2705 = vxpose.xlu0.b32.cont [14/16] 0.0, 128
    %2706 = vxpose.xlu0.b32.cont [15/16] 0.0, 128
    %2707 = vxpose.xlu0.b32.end [16/16] 0.0, 128
    %v2708 = vpop.trf.xlu0
    %v2709 = vpop.trf.xlu0
    %v2710 = vpop.trf.xlu0
    %v2711 = vpop.trf.xlu0
    %v2712 = vpop.trf.xlu0
    %v2713 = vpop.trf.xlu0
    %v2714 = vpop.trf.xlu0
    %v2715 = vpop.trf.xlu0
    %v2716 = vpop.trf.xlu0
    %v2717 = vpop.trf.xlu0
    %v2718 = vpop.trf.xlu0
    %v2719 = vpop.trf.xlu0
    %v2720 = vpop.trf.xlu0
    %v2721 = vpop.trf.xlu0
    %v2722 = vpop.trf.xlu0
    %v2723 = vpop.trf.xlu0
    %2724 = vxpose.xlu0.b32.start [1/16] %v2689, 128
    %2725 = vxpose.xlu0.b32.cont [2/16] 0.0, 128
    %2726 = vxpose.xlu0.b32.cont [3/16] 0.0, 128
    %2727 = vxpose.xlu0.b32.cont [4/16] 0.0, 128
    %2728 = vxpose.xlu0.b32.cont [5/16] 0.0, 128
    %2729 = vxpose.xlu0.b32.cont [6/16] 0.0, 128
    %2730 = vxpose.xlu0.b32.cont [7/16] 0.0, 128
    %2731 = vxpose.xlu0.b32.cont [8/16] 0.0, 128
    %2732 = vxpose.xlu0.b32.cont [9/16] 0.0, 128
    %2733 = vxpose.xlu0.b32.cont [10/16] 0.0, 128
    %2734 = vxpose.xlu0.b32.cont [11/16] 0.0, 128
    %2735 = vxpose.xlu0.b32.cont [12/16] 0.0, 128
    %2736 = vxpose.xlu0.b32.cont [13/16] 0.0, 128
    %2737 = vxpose.xlu0.b32.cont [14/16] 0.0, 128
    %2738 = vxpose.xlu0.b32.cont [15/16] 0.0, 128
    %2739 = vxpose.xlu0.b32.end [16/16] 0.0, 128
    %v2740 = vpop.trf.xlu0
    %v2741 = vpop.trf.xlu0
    %v2742 = vpop.trf.xlu0
    %v2743 = vpop.trf.xlu0
    %v2744 = vpop.trf.xlu0
    %v2745 = vpop.trf.xlu0
    %v2746 = vpop.trf.xlu0
    %v2747 = vpop.trf.xlu0
    %v2748 = vpop.trf.xlu0
    %v2749 = vpop.trf.xlu0
    %v2750 = vpop.trf.xlu0
    %v2751 = vpop.trf.xlu0
    %v2752 = vpop.trf.xlu0
    %v2753 = vpop.trf.xlu0
    %v2754 = vpop.trf.xlu0
    %v2755 = vpop.trf.xlu0
    %2756 = vxpose.xlu0.b32.start [1/16] %v2708, 128
    %2757 = vxpose.xlu0.b32.cont [2/16] 0.0, 128
    %2758 = vxpose.xlu0.b32.cont [3/16] 0.0, 128
    %2759 = vxpose.xlu0.b32.cont [4/16] 0.0, 128
    %2760 = vxpose.xlu0.b32.cont [5/16] 0.0, 128
    %2761 = vxpose.xlu0.b32.cont [6/16] 0.0, 128
    %2762 = vxpose.xlu0.b32.cont [7/16] 0.0, 128
    %2763 = vxpose.xlu0.b32.cont [8/16] 0.0, 128
    %2764 = vxpose.xlu0.b32.cont [9/16] 0.0, 128
    %2765 = vxpose.xlu0.b32.cont [10/16] 0.0, 128
    %2766 = vxpose.xlu0.b32.cont [11/16] 0.0, 128
    %2767 = vxpose.xlu0.b32.cont [12/16] 0.0, 128
    %2768 = vxpose.xlu0.b32.cont [13/16] 0.0, 128
    %2769 = vxpose.xlu0.b32.cont [14/16] 0.0, 128
    %2770 = vxpose.xlu0.b32.cont [15/16] 0.0, 128
    %2771 = vxpose.xlu0.b32.end [16/16] 0.0, 128
    %v2772 = vpop.trf.xlu0
    %v2773 = vpop.trf.xlu0
    %v2774 = vpop.trf.xlu0
    %v2775 = vpop.trf.xlu0
    %v2776 = vpop.trf.xlu0
    %v2777 = vpop.trf.xlu0
    %v2778 = vpop.trf.xlu0
    %v2779 = vpop.trf.xlu0
    %v2780 = vpop.trf.xlu0
    %v2781 = vpop.trf.xlu0
    %v2782 = vpop.trf.xlu0
    %v2783 = vpop.trf.xlu0
    %v2784 = vpop.trf.xlu0
    %v2785 = vpop.trf.xlu0
    %v2786 = vpop.trf.xlu0
    %v2787 = vpop.trf.xlu0
    %2788 = vxpose.xlu0.b32.start [1/16] %v2709, 128
    %2789 = vxpose.xlu0.b32.cont [2/16] 0.0, 128
    %2790 = vxpose.xlu0.b32.cont [3/16] 0.0, 128
    %2791 = vxpose.xlu0.b32.cont [4/16] 0.0, 128
    %2792 = vxpose.xlu0.b32.cont [5/16] 0.0, 128
    %2793 = vxpose.xlu0.b32.cont [6/16] 0.0, 128
    %2794 = vxpose.xlu0.b32.cont [7/16] 0.0, 128
    %2795 = vxpose.xlu0.b32.cont [8/16] 0.0, 128
    %2796 = vxpose.xlu0.b32.cont [9/16] 0.0, 128
    %2797 = vxpose.xlu0.b32.cont [10/16] 0.0, 128
    %2798 = vxpose.xlu0.b32.cont [11/16] 0.0, 128
    %2799 = vxpose.xlu0.b32.cont [12/16] 0.0, 128
    %2800 = vxpose.xlu0.b32.cont [13/16] 0.0, 128
    %2801 = vxpose.xlu0.b32.cont [14/16] 0.0, 128
    %2802 = vxpose.xlu0.b32.cont [15/16] 0.0, 128
    %2803 = vxpose.xlu0.b32.end [16/16] 0.0, 128
    %v2804 = vpop.trf.xlu0
    %v2805 = vpop.trf.xlu0
    %v2806 = vpop.trf.xlu0
    %v2807 = vpop.trf.xlu0
    %v2808 = vpop.trf.xlu0
    %v2809 = vpop.trf.xlu0
    %v2810 = vpop.trf.xlu0
    %v2811 = vpop.trf.xlu0
    %v2812 = vpop.trf.xlu0
    %v2813 = vpop.trf.xlu0
    %v2814 = vpop.trf.xlu0
    %v2815 = vpop.trf.xlu0
    %v2816 = vpop.trf.xlu0
    %v2817 = vpop.trf.xlu0
    %v2818 = vpop.trf.xlu0
    %v2819 = vpop.trf.xlu0
    %2820 = vxpose.xlu0.b32.start [1/16] %v2710, 128
    %2821 = vxpose.xlu0.b32.cont [2/16] 0.0, 128
    %2822 = vxpose.xlu0.b32.cont [3/16] 0.0, 128
    %2823 = vxpose.xlu0.b32.cont [4/16] 0.0, 128
    %2824 = vxpose.xlu0.b32.cont [5/16] 0.0, 128
    %2825 = vxpose.xlu0.b32.cont [6/16] 0.0, 128
    %2826 = vxpose.xlu0.b32.cont [7/16] 0.0, 128
    %2827 = vxpose.xlu0.b32.cont [8/16] 0.0, 128
    %2828 = vxpose.xlu0.b32.cont [9/16] 0.0, 128
    %2829 = vxpose.xlu0.b32.cont [10/16] 0.0, 128
    %2830 = vxpose.xlu0.b32.cont [11/16] 0.0, 128
    %2831 = vxpose.xlu0.b32.cont [12/16] 0.0, 128
    %2832 = vxpose.xlu0.b32.cont [13/16] 0.0, 128
    %2833 = vxpose.xlu0.b32.cont [14/16] 0.0, 128
    %2834 = vxpose.xlu0.b32.cont [15/16] 0.0, 128
    %2835 = vxpose.xlu0.b32.end [16/16] 0.0, 128
    %v2836 = vpop.trf.xlu0
    %v2837 = vpop.trf.xlu0
    %v2838 = vpop.trf.xlu0
    %v2839 = vpop.trf.xlu0
    %v2840 = vpop.trf.xlu0
    %v2841 = vpop.trf.xlu0
    %v2842 = vpop.trf.xlu0
    %v2843 = vpop.trf.xlu0
    %v2844 = vpop.trf.xlu0
    %v2845 = vpop.trf.xlu0
    %v2846 = vpop.trf.xlu0
    %v2847 = vpop.trf.xlu0
    %v2848 = vpop.trf.xlu0
    %v2849 = vpop.trf.xlu0
    %v2850 = vpop.trf.xlu0
    %v2851 = vpop.trf.xlu0
    %2852 = vxpose.xlu0.b32.start [1/16] %v2711, 128
    %2853 = vxpose.xlu0.b32.cont [2/16] 0.0, 128
    %2854 = vxpose.xlu0.b32.cont [3/16] 0.0, 128
    %2855 = vxpose.xlu0.b32.cont [4/16] 0.0, 128
    %2856 = vxpose.xlu0.b32.cont [5/16] 0.0, 128
    %2857 = vxpose.xlu0.b32.cont [6/16] 0.0, 128
    %2858 = vxpose.xlu0.b32.cont [7/16] 0.0, 128
    %2859 = vxpose.xlu0.b32.cont [8/16] 0.0, 128
    %2860 = vxpose.xlu0.b32.cont [9/16] 0.0, 128
    %2861 = vxpose.xlu0.b32.cont [10/16] 0.0, 128
    %2862 = vxpose.xlu0.b32.cont [11/16] 0.0, 128
    %2863 = vxpose.xlu0.b32.cont [12/16] 0.0, 128
    %2864 = vxpose.xlu0.b32.cont [13/16] 0.0, 128
    %2865 = vxpose.xlu0.b32.cont [14/16] 0.0, 128
    %2866 = vxpose.xlu0.b32.cont [15/16] 0.0, 128
    %2867 = vxpose.xlu0.b32.end [16/16] 0.0, 128
    %v2868 = vpop.trf.xlu0
    %v2869 = vpop.trf.xlu0
    %v2870 = vpop.trf.xlu0
    %v2871 = vpop.trf.xlu0
    %v2872 = vpop.trf.xlu0
    %v2873 = vpop.trf.xlu0
    %v2874 = vpop.trf.xlu0
    %v2875 = vpop.trf.xlu0
    %v2876 = vpop.trf.xlu0
    %v2877 = vpop.trf.xlu0
    %v2878 = vpop.trf.xlu0
    %v2879 = vpop.trf.xlu0
    %v2880 = vpop.trf.xlu0
    %v2881 = vpop.trf.xlu0
    %v2882 = vpop.trf.xlu0
    %v2883 = vpop.trf.xlu0
    %2884 = vxpose.xlu0.b32.start [1/16] %v2740, 128
    %2885 = vxpose.xlu0.b32.cont [2/16] 0.0, 128
    %2886 = vxpose.xlu0.b32.cont [3/16] 0.0, 128
    %2887 = vxpose.xlu0.b32.cont [4/16] 0.0, 128
    %2888 = vxpose.xlu0.b32.cont [5/16] 0.0, 128
    %2889 = vxpose.xlu0.b32.cont [6/16] 0.0, 128
    %2890 = vxpose.xlu0.b32.cont [7/16] 0.0, 128
    %2891 = vxpose.xlu0.b32.cont [8/16] 0.0, 128
    %2892 = vxpose.xlu0.b32.cont [9/16] 0.0, 128
    %2893 = vxpose.xlu0.b32.cont [10/16] 0.0, 128
    %2894 = vxpose.xlu0.b32.cont [11/16] 0.0, 128
    %2895 = vxpose.xlu0.b32.cont [12/16] 0.0, 128
    %2896 = vxpose.xlu0.b32.cont [13/16] 0.0, 128
    %2897 = vxpose.xlu0.b32.cont [14/16] 0.0, 128
    %2898 = vxpose.xlu0.b32.cont [15/16] 0.0, 128
    %2899 = vxpose.xlu0.b32.end [16/16] 0.0, 128
    %v2900 = vpop.trf.xlu0
    %v2901 = vpop.trf.xlu0
    %v2902 = vpop.trf.xlu0
    %v2903 = vpop.trf.xlu0
    %v2904 = vpop.trf.xlu0
    %v2905 = vpop.trf.xlu0
    %v2906 = vpop.trf.xlu0
    %v2907 = vpop.trf.xlu0
    %v2908 = vpop.trf.xlu0
    %v2909 = vpop.trf.xlu0
    %v2910 = vpop.trf.xlu0
    %v2911 = vpop.trf.xlu0
    %v2912 = vpop.trf.xlu0
    %v2913 = vpop.trf.xlu0
    %v2914 = vpop.trf.xlu0
    %v2915 = vpop.trf.xlu0
    %2916 = vxpose.xlu0.b32.start [1/16] %v2741, 128
    %2917 = vxpose.xlu0.b32.cont [2/16] 0.0, 128
    %2918 = vxpose.xlu0.b32.cont [3/16] 0.0, 128
    %2919 = vxpose.xlu0.b32.cont [4/16] 0.0, 128
    %2920 = vxpose.xlu0.b32.cont [5/16] 0.0, 128
    %2921 = vxpose.xlu0.b32.cont [6/16] 0.0, 128
    %2922 = vxpose.xlu0.b32.cont [7/16] 0.0, 128
    %2923 = vxpose.xlu0.b32.cont [8/16] 0.0, 128
    %2924 = vxpose.xlu0.b32.cont [9/16] 0.0, 128
    %2925 = vxpose.xlu0.b32.cont [10/16] 0.0, 128
    %2926 = vxpose.xlu0.b32.cont [11/16] 0.0, 128
    %2927 = vxpose.xlu0.b32.cont [12/16] 0.0, 128
    %2928 = vxpose.xlu0.b32.cont [13/16] 0.0, 128
    %2929 = vxpose.xlu0.b32.cont [14/16] 0.0, 128
    %2930 = vxpose.xlu0.b32.cont [15/16] 0.0, 128
    %2931 = vxpose.xlu0.b32.end [16/16] 0.0, 128
    %v2932 = vpop.trf.xlu0
    %v2933 = vpop.trf.xlu0
    %v2934 = vpop.trf.xlu0
    %v2935 = vpop.trf.xlu0
    %v2936 = vpop.trf.xlu0
    %v2937 = vpop.trf.xlu0
    %v2938 = vpop.trf.xlu0
    %v2939 = vpop.trf.xlu0
    %v2940 = vpop.trf.xlu0
    %v2941 = vpop.trf.xlu0
    %v2942 = vpop.trf.xlu0
    %v2943 = vpop.trf.xlu0
    %v2944 = vpop.trf.xlu0
    %v2945 = vpop.trf.xlu0
    %v2946 = vpop.trf.xlu0
    %v2947 = vpop.trf.xlu0
    %2948 = vxpose.xlu0.b32.start [1/16] %v2742, 128
    %2949 = vxpose.xlu0.b32.cont [2/16] 0.0, 128
    %2950 = vxpose.xlu0.b32.cont [3/16] 0.0, 128
    %2951 = vxpose.xlu0.b32.cont [4/16] 0.0, 128
    %2952 = vxpose.xlu0.b32.cont [5/16] 0.0, 128
    %2953 = vxpose.xlu0.b32.cont [6/16] 0.0, 128
    %2954 = vxpose.xlu0.b32.cont [7/16] 0.0, 128
    %2955 = vxpose.xlu0.b32.cont [8/16] 0.0, 128
    %2956 = vxpose.xlu0.b32.cont [9/16] 0.0, 128
    %2957 = vxpose.xlu0.b32.cont [10/16] 0.0, 128
    %2958 = vxpose.xlu0.b32.cont [11/16] 0.0, 128
    %2959 = vxpose.xlu0.b32.cont [12/16] 0.0, 128
    %2960 = vxpose.xlu0.b32.cont [13/16] 0.0, 128
    %2961 = vxpose.xlu0.b32.cont [14/16] 0.0, 128
    %2962 = vxpose.xlu0.b32.cont [15/16] 0.0, 128
    %2963 = vxpose.xlu0.b32.end [16/16] 0.0, 128
    %v2964 = vpop.trf.xlu0
    %v2965 = vpop.trf.xlu0
    %v2966 = vpop.trf.xlu0
    %v2967 = vpop.trf.xlu0
    %v2968 = vpop.trf.xlu0
    %v2969 = vpop.trf.xlu0
    %v2970 = vpop.trf.xlu0
    %v2971 = vpop.trf.xlu0
    %v2972 = vpop.trf.xlu0
    %v2973 = vpop.trf.xlu0
    %v2974 = vpop.trf.xlu0
    %v2975 = vpop.trf.xlu0
    %v2976 = vpop.trf.xlu0
    %v2977 = vpop.trf.xlu0
    %v2978 = vpop.trf.xlu0
    %v2979 = vpop.trf.xlu0
    %2980 = vxpose.xlu0.b32.start [1/16] %v2743, 128
    %2981 = vxpose.xlu0.b32.cont [2/16] 0.0, 128
    %2982 = vxpose.xlu0.b32.cont [3/16] 0.0, 128
    %2983 = vxpose.xlu0.b32.cont [4/16] 0.0, 128
    %2984 = vxpose.xlu0.b32.cont [5/16] 0.0, 128
    %2985 = vxpose.xlu0.b32.cont [6/16] 0.0, 128
    %2986 = vxpose.xlu0.b32.cont [7/16] 0.0, 128
    %2987 = vxpose.xlu0.b32.cont [8/16] 0.0, 128
    %2988 = vxpose.xlu0.b32.cont [9/16] 0.0, 128
    %2989 = vxpose.xlu0.b32.cont [10/16] 0.0, 128
    %2990 = vxpose.xlu0.b32.cont [11/16] 0.0, 128
    %2991 = vxpose.xlu0.b32.cont [12/16] 0.0, 128
    %2992 = vxpose.xlu0.b32.cont [13/16] 0.0, 128
    %2993 = vxpose.xlu0.b32.cont [14/16] 0.0, 128
    %2994 = vxpose.xlu0.b32.cont [15/16] 0.0, 128
    %2995 = vxpose.xlu0.b32.end [16/16] 0.0, 128
    %v2996 = vpop.trf.xlu0
    %v2997 = vpop.trf.xlu0
    %v2998 = vpop.trf.xlu0
    %v2999 = vpop.trf.xlu0
    %v3000 = vpop.trf.xlu0
    %v3001 = vpop.trf.xlu0
    %v3002 = vpop.trf.xlu0
    %v3003 = vpop.trf.xlu0
    %v3004 = vpop.trf.xlu0
    %v3005 = vpop.trf.xlu0
    %v3006 = vpop.trf.xlu0
    %v3007 = vpop.trf.xlu0
    %v3008 = vpop.trf.xlu0
    %v3009 = vpop.trf.xlu0
    %v3010 = vpop.trf.xlu0
    %v3011 = vpop.trf.xlu0
    %3014 = vrot.lane.b32.xlu0 %v2684, 96
    %v3015 = vpop.permute.xlu0 %3014
    %3016 = vrot.lane.b32.xlu0 %v2689, 96
    %v3017 = vpop.permute.xlu0 %3016
    %3020 = vxpose.xlu0.b32.start [1/16] %v3015, 128
    %3021 = vxpose.xlu0.b32.cont [2/16] 0.0, 128
    %3022 = vxpose.xlu0.b32.cont [3/16] 0.0, 128
    %3023 = vxpose.xlu0.b32.cont [4/16] 0.0, 128
    %3024 = vxpose.xlu0.b32.cont [5/16] 0.0, 128
    %3025 = vxpose.xlu0.b32.cont [6/16] 0.0, 128
    %3026 = vxpose.xlu0.b32.cont [7/16] 0.0, 128
    %3027 = vxpose.xlu0.b32.cont [8/16] 0.0, 128
    %3028 = vxpose.xlu0.b32.cont [9/16] 0.0, 128
    %3029 = vxpose.xlu0.b32.cont [10/16] 0.0, 128
    %3030 = vxpose.xlu0.b32.cont [11/16] 0.0, 128
    %3031 = vxpose.xlu0.b32.cont [12/16] 0.0, 128
    %3032 = vxpose.xlu0.b32.cont [13/16] 0.0, 128
    %3033 = vxpose.xlu0.b32.cont [14/16] 0.0, 128
    %3034 = vxpose.xlu0.b32.cont [15/16] 0.0, 128
    %3035 = vxpose.xlu0.b32.end [16/16] 0.0, 128
    %v3036 = vpop.trf.xlu0
    %v3037 = vpop.trf.xlu0
    %v3038 = vpop.trf.xlu0
    %v3039 = vpop.trf.xlu0
    %v3040 = vpop.trf.xlu0
    %v3041 = vpop.trf.xlu0
    %v3042 = vpop.trf.xlu0
    %v3043 = vpop.trf.xlu0
    %v3044 = vpop.trf.xlu0
    %v3045 = vpop.trf.xlu0
    %v3046 = vpop.trf.xlu0
    %v3047 = vpop.trf.xlu0
    %v3048 = vpop.trf.xlu0
    %v3049 = vpop.trf.xlu0
    %v3050 = vpop.trf.xlu0
    %v3051 = vpop.trf.xlu0
    %3052 = vxpose.xlu0.b32.start [1/16] %v3017, 128
    %3053 = vxpose.xlu0.b32.cont [2/16] 0.0, 128
    %3054 = vxpose.xlu0.b32.cont [3/16] 0.0, 128
    %3055 = vxpose.xlu0.b32.cont [4/16] 0.0, 128
    %3056 = vxpose.xlu0.b32.cont [5/16] 0.0, 128
    %3057 = vxpose.xlu0.b32.cont [6/16] 0.0, 128
    %3058 = vxpose.xlu0.b32.cont [7/16] 0.0, 128
    %3059 = vxpose.xlu0.b32.cont [8/16] 0.0, 128
    %3060 = vxpose.xlu0.b32.cont [9/16] 0.0, 128
    %3061 = vxpose.xlu0.b32.cont [10/16] 0.0, 128
    %3062 = vxpose.xlu0.b32.cont [11/16] 0.0, 128
    %3063 = vxpose.xlu0.b32.cont [12/16] 0.0, 128
    %3064 = vxpose.xlu0.b32.cont [13/16] 0.0, 128
    %3065 = vxpose.xlu0.b32.cont [14/16] 0.0, 128
    %3066 = vxpose.xlu0.b32.cont [15/16] 0.0, 128
    %3067 = vxpose.xlu0.b32.end [16/16] 0.0, 128
    %v3068 = vpop.trf.xlu0
    %v3069 = vpop.trf.xlu0
    %v3070 = vpop.trf.xlu0
    %v3071 = vpop.trf.xlu0
    %v3072 = vpop.trf.xlu0
    %v3073 = vpop.trf.xlu0
    %v3074 = vpop.trf.xlu0
    %v3075 = vpop.trf.xlu0
    %v3076 = vpop.trf.xlu0
    %v3077 = vpop.trf.xlu0
    %v3078 = vpop.trf.xlu0
    %v3079 = vpop.trf.xlu0
    %v3080 = vpop.trf.xlu0
    %v3081 = vpop.trf.xlu0
    %v3082 = vpop.trf.xlu0
    %v3083 = vpop.trf.xlu0
    %3084 = vrot.lane.b32.xlu0 %v2684, 64
    %v3085 = vpop.permute.xlu0 %3084
    %3086 = vrot.lane.b32.xlu0 %v2689, 64
    %v3087 = vpop.permute.xlu0 %3086
    %3090 = vxpose.xlu0.b32.start [1/16] %v3085, 128
    %3091 = vxpose.xlu0.b32.cont [2/16] 0.0, 128
    %3092 = vxpose.xlu0.b32.cont [3/16] 0.0, 128
    %3093 = vxpose.xlu0.b32.cont [4/16] 0.0, 128
    %3094 = vxpose.xlu0.b32.cont [5/16] 0.0, 128
    %3095 = vxpose.xlu0.b32.cont [6/16] 0.0, 128
    %3096 = vxpose.xlu0.b32.cont [7/16] 0.0, 128
    %3097 = vxpose.xlu0.b32.cont [8/16] 0.0, 128
    %3098 = vxpose.xlu0.b32.cont [9/16] 0.0, 128
    %3099 = vxpose.xlu0.b32.cont [10/16] 0.0, 128
    %3100 = vxpose.xlu0.b32.cont [11/16] 0.0, 128
    %3101 = vxpose.xlu0.b32.cont [12/16] 0.0, 128
    %3102 = vxpose.xlu0.b32.cont [13/16] 0.0, 128
    %3103 = vxpose.xlu0.b32.cont [14/16] 0.0, 128
    %3104 = vxpose.xlu0.b32.cont [15/16] 0.0, 128
    %3105 = vxpose.xlu0.b32.end [16/16] 0.0, 128
    %v3106 = vpop.trf.xlu0
    %v3107 = vpop.trf.xlu0
    %v3108 = vpop.trf.xlu0
    %v3109 = vpop.trf.xlu0
    %v3110 = vpop.trf.xlu0
    %v3111 = vpop.trf.xlu0
    %v3112 = vpop.trf.xlu0
    %v3113 = vpop.trf.xlu0
    %v3114 = vpop.trf.xlu0
    %v3115 = vpop.trf.xlu0
    %v3116 = vpop.trf.xlu0
    %v3117 = vpop.trf.xlu0
    %v3118 = vpop.trf.xlu0
    %v3119 = vpop.trf.xlu0
    %v3120 = vpop.trf.xlu0
    %v3121 = vpop.trf.xlu0
    %3122 = vxpose.xlu0.b32.start [1/16] %v3087, 128
    %3123 = vxpose.xlu0.b32.cont [2/16] 0.0, 128
    %3124 = vxpose.xlu0.b32.cont [3/16] 0.0, 128
    %3125 = vxpose.xlu0.b32.cont [4/16] 0.0, 128
    %3126 = vxpose.xlu0.b32.cont [5/16] 0.0, 128
    %3127 = vxpose.xlu0.b32.cont [6/16] 0.0, 128
    %3128 = vxpose.xlu0.b32.cont [7/16] 0.0, 128
    %3129 = vxpose.xlu0.b32.cont [8/16] 0.0, 128
    %3130 = vxpose.xlu0.b32.cont [9/16] 0.0, 128
    %3131 = vxpose.xlu0.b32.cont [10/16] 0.0, 128
    %3132 = vxpose.xlu0.b32.cont [11/16] 0.0, 128
    %3133 = vxpose.xlu0.b32.cont [12/16] 0.0, 128
    %3134 = vxpose.xlu0.b32.cont [13/16] 0.0, 128
    %3135 = vxpose.xlu0.b32.cont [14/16] 0.0, 128
    %3136 = vxpose.xlu0.b32.cont [15/16] 0.0, 128
    %3137 = vxpose.xlu0.b32.end [16/16] 0.0, 128
    %v3138 = vpop.trf.xlu0
    %v3139 = vpop.trf.xlu0
    %v3140 = vpop.trf.xlu0
    %v3141 = vpop.trf.xlu0
    %v3142 = vpop.trf.xlu0
    %v3143 = vpop.trf.xlu0
    %v3144 = vpop.trf.xlu0
    %v3145 = vpop.trf.xlu0
    %v3146 = vpop.trf.xlu0
    %v3147 = vpop.trf.xlu0
    %v3148 = vpop.trf.xlu0
    %v3149 = vpop.trf.xlu0
    %v3150 = vpop.trf.xlu0
    %v3151 = vpop.trf.xlu0
    %v3152 = vpop.trf.xlu0
    %v3153 = vpop.trf.xlu0
    %v3155 = vsel %vm630, %v2772, 0
    %3157 = vmatprep.subr.mxu0 0.0
    %3158 = vmatpush1.msra.mxu0 %v3036
    %3159 = vmatprep.subr.mxu0 0.0
    %3160 = vmatpush1.msra.mxu0 0.0
    %3161 = vmatprep.subr.mxu0 0.0
    %3162 = vmatpush1.msra.mxu0 0.0
    %3163 = vmatprep.subr.mxu0 0.0
    %3164 = vmatpush1.msra.mxu0 0.0
    %3165 = vmatprep.subr.mxu0 0.0
    %3166 = vmatpush1.msra.mxu0 0.0
    %3167 = vmatprep.subr.mxu0 0.0
    %3168 = vmatpush1.msra.mxu0 0.0
    %3169 = vmatprep.subr.mxu0 0.0
    %3170 = vmatpush1.msra.mxu0 0.0
    %3171 = vmatprep.subr.mxu0 0.0
    %3172 = vmatpush1.msra.mxu0 0.0
    %3173 = vmatprep.subr.mxu0 0.0
    %3174 = vmatpush1.msra.mxu0 0.0
    %3175 = vmatprep.subr.mxu0 0.0
    %3176 = vmatpush1.msra.mxu0 0.0
    %3177 = vmatprep.subr.mxu0 0.0
    %3178 = vmatpush1.msra.mxu0 0.0
    %3179 = vmatprep.subr.mxu0 0.0
    %3180 = vmatpush1.msra.mxu0 0.0
    %3181 = vmatprep.subr.mxu0 0.0
    %3182 = vmatpush1.msra.mxu0 0.0
    %3183 = vmatprep.subr.mxu0 0.0
    %3184 = vmatpush1.msra.mxu0 0.0
    %3185 = vmatprep.subr.mxu0 0.0
    %3186 = vmatpush1.msra.mxu0 0.0
    %3187 = vmatprep.subr.mxu0 0.0
    %3188 = vmatpush1.msra.mxu0 0.0
    %3189 = vmatprep.subr.mxu0 0.0
    %3190 = vmatpush1.msra.mxu0 0.0
    %3191 = vmatprep.subr.mxu0 0.0
    %3192 = vmatpush1.msra.mxu0 0.0
    %3193 = vmatprep.subr.mxu0 0.0
    %3194 = vmatpush1.msra.mxu0 0.0
    %3195 = vmatprep.subr.mxu0 0.0
    %3196 = vmatpush1.msra.mxu0 0.0
    %3197 = vmatprep.subr.mxu0 0.0
    %3198 = vmatpush1.msra.mxu0 0.0
    %3199 = vmatprep.subr.mxu0 0.0
    %3200 = vmatpush1.msra.mxu0 0.0
    %3201 = vmatprep.subr.mxu0 0.0
    %3202 = vmatpush1.msra.mxu0 0.0
    %3203 = vmatprep.subr.mxu0 0.0
    %3204 = vmatpush1.msra.mxu0 0.0
    %3205 = vmatprep.subr.mxu0 0.0
    %3206 = vmatpush1.msra.mxu0 0.0
    %3207 = vmatprep.subr.mxu0 0.0
    %3208 = vmatpush1.msra.mxu0 0.0
    %3209 = vmatprep.subr.mxu0 0.0
    %3210 = vmatpush1.msra.mxu0 0.0
    %3211 = vmatprep.subr.mxu0 0.0
    %3212 = vmatpush1.msra.mxu0 0.0
    %3213 = vmatprep.subr.mxu0 0.0
    %3214 = vmatpush1.msra.mxu0 0.0
    %3215 = vmatprep.subr.mxu0 0.0
    %3216 = vmatpush1.msra.mxu0 0.0
    %3217 = vmatprep.subr.mxu0 0.0
    %3218 = vmatpush1.msra.mxu0 0.0
    %3219 = vmatprep.subr.mxu0 0.0
    %3220 = vmatpush1.msra.mxu0 0.0
    %3221 = vmatprep.mubr.f32.mxu0 0.0
    %3222 = vmatmul.mubr.f32.gmra.mrb[0].mxu0 %v3155
    %v3223 = vpop.f32.mrb[0].mxu0
    %v3224 = vadd.f32 0.0, %v3223
    %v3225 = vpop.f32.mrb[0].mxu0
    %3226 = vdwg.mxu0
    %v3228 = vsel %vm630, %v2804, 0
    %3230 = vmatprep.subr.mxu0 0.0
    %3231 = vmatpush1.msra.mxu0 %v3037
    %3232 = vmatprep.subr.mxu0 0.0
    %3233 = vmatpush1.msra.mxu0 0.0
    %3234 = vmatprep.subr.mxu0 0.0
    %3235 = vmatpush1.msra.mxu0 0.0
    %3236 = vmatprep.subr.mxu0 0.0
    %3237 = vmatpush1.msra.mxu0 0.0
    %3238 = vmatprep.subr.mxu0 0.0
    %3239 = vmatpush1.msra.mxu0 0.0
    %3240 = vmatprep.subr.mxu0 0.0
    %3241 = vmatpush1.msra.mxu0 0.0
    %3242 = vmatprep.subr.mxu0 0.0
    %3243 = vmatpush1.msra.mxu0 0.0
    %3244 = vmatprep.subr.mxu0 0.0
    %3245 = vmatpush1.msra.mxu0 0.0
    %3246 = vmatprep.subr.mxu0 0.0
    %3247 = vmatpush1.msra.mxu0 0.0
    %3248 = vmatprep.subr.mxu0 0.0
    %3249 = vmatpush1.msra.mxu0 0.0
    %3250 = vmatprep.subr.mxu0 0.0
    %3251 = vmatpush1.msra.mxu0 0.0
    %3252 = vmatprep.subr.mxu0 0.0
    %3253 = vmatpush1.msra.mxu0 0.0
    %3254 = vmatprep.subr.mxu0 0.0
    %3255 = vmatpush1.msra.mxu0 0.0
    %3256 = vmatprep.subr.mxu0 0.0
    %3257 = vmatpush1.msra.mxu0 0.0
    %3258 = vmatprep.subr.mxu0 0.0
    %3259 = vmatpush1.msra.mxu0 0.0
    %3260 = vmatprep.subr.mxu0 0.0
    %3261 = vmatpush1.msra.mxu0 0.0
    %3262 = vmatprep.subr.mxu0 0.0
    %3263 = vmatpush1.msra.mxu0 0.0
    %3264 = vmatprep.subr.mxu0 0.0
    %3265 = vmatpush1.msra.mxu0 0.0
    %3266 = vmatprep.subr.mxu0 0.0
    %3267 = vmatpush1.msra.mxu0 0.0
    %3268 = vmatprep.subr.mxu0 0.0
    %3269 = vmatpush1.msra.mxu0 0.0
    %3270 = vmatprep.subr.mxu0 0.0
    %3271 = vmatpush1.msra.mxu0 0.0
    %3272 = vmatprep.subr.mxu0 0.0
    %3273 = vmatpush1.msra.mxu0 0.0
    %3274 = vmatprep.subr.mxu0 0.0
    %3275 = vmatpush1.msra.mxu0 0.0
    %3276 = vmatprep.subr.mxu0 0.0
    %3277 = vmatpush1.msra.mxu0 0.0
    %3278 = vmatprep.subr.mxu0 0.0
    %3279 = vmatpush1.msra.mxu0 0.0
    %3280 = vmatprep.subr.mxu0 0.0
    %3281 = vmatpush1.msra.mxu0 0.0
    %3282 = vmatprep.subr.mxu0 0.0
    %3283 = vmatpush1.msra.mxu0 0.0
    %3284 = vmatprep.subr.mxu0 0.0
    %3285 = vmatpush1.msra.mxu0 0.0
    %3286 = vmatprep.subr.mxu0 0.0
    %3287 = vmatpush1.msra.mxu0 0.0
    %3288 = vmatprep.subr.mxu0 0.0
    %3289 = vmatpush1.msra.mxu0 0.0
    %3290 = vmatprep.subr.mxu0 0.0
    %3291 = vmatpush1.msra.mxu0 0.0
    %3292 = vmatprep.subr.mxu0 0.0
    %3293 = vmatpush1.msra.mxu0 0.0
    %3294 = vmatprep.mubr.f32.mxu0 0.0
    %3295 = vmatmul.mubr.f32.gmra.mrb[0].mxu0 %v3228
    %v3296 = vpop.f32.mrb[0].mxu0
    %v3297 = vadd.f32 0.0, %v3296
    %v3298 = vpop.f32.mrb[0].mxu0
    %3299 = vdwg.mxu0
    %v3301 = vsel %vm630, %v2836, 0
    %3303 = vmatprep.subr.mxu0 0.0
    %3304 = vmatpush1.msra.mxu0 %v3038
    %3305 = vmatprep.subr.mxu0 0.0
    %3306 = vmatpush1.msra.mxu0 0.0
    %3307 = vmatprep.subr.mxu0 0.0
    %3308 = vmatpush1.msra.mxu0 0.0
    %3309 = vmatprep.subr.mxu0 0.0
    %3310 = vmatpush1.msra.mxu0 0.0
    %3311 = vmatprep.subr.mxu0 0.0
    %3312 = vmatpush1.msra.mxu0 0.0
    %3313 = vmatprep.subr.mxu0 0.0
    %3314 = vmatpush1.msra.mxu0 0.0
    %3315 = vmatprep.subr.mxu0 0.0
    %3316 = vmatpush1.msra.mxu0 0.0
    %3317 = vmatprep.subr.mxu0 0.0
    %3318 = vmatpush1.msra.mxu0 0.0
    %3319 = vmatprep.subr.mxu0 0.0
    %3320 = vmatpush1.msra.mxu0 0.0
    %3321 = vmatprep.subr.mxu0 0.0
    %3322 = vmatpush1.msra.mxu0 0.0
    %3323 = vmatprep.subr.mxu0 0.0
    %3324 = vmatpush1.msra.mxu0 0.0
    %3325 = vmatprep.subr.mxu0 0.0
    %3326 = vmatpush1.msra.mxu0 0.0
    %3327 = vmatprep.subr.mxu0 0.0
    %3328 = vmatpush1.msra.mxu0 0.0
    %3329 = vmatprep.subr.mxu0 0.0
    %3330 = vmatpush1.msra.mxu0 0.0
    %3331 = vmatprep.subr.mxu0 0.0
    %3332 = vmatpush1.msra.mxu0 0.0
    %3333 = vmatprep.subr.mxu0 0.0
    %3334 = vmatpush1.msra.mxu0 0.0
    %3335 = vmatprep.subr.mxu0 0.0
    %3336 = vmatpush1.msra.mxu0 0.0
    %3337 = vmatprep.subr.mxu0 0.0
    %3338 = vmatpush1.msra.mxu0 0.0
    %3339 = vmatprep.subr.mxu0 0.0
    %3340 = vmatpush1.msra.mxu0 0.0
    %3341 = vmatprep.subr.mxu0 0.0
    %3342 = vmatpush1.msra.mxu0 0.0
    %3343 = vmatprep.subr.mxu0 0.0
    %3344 = vmatpush1.msra.mxu0 0.0
    %3345 = vmatprep.subr.mxu0 0.0
    %3346 = vmatpush1.msra.mxu0 0.0
    %3347 = vmatprep.subr.mxu0 0.0
    %3348 = vmatpush1.msra.mxu0 0.0
    %3349 = vmatprep.subr.mxu0 0.0
    %3350 = vmatpush1.msra.mxu0 0.0
    %3351 = vmatprep.subr.mxu0 0.0
    %3352 = vmatpush1.msra.mxu0 0.0
    %3353 = vmatprep.subr.mxu0 0.0
    %3354 = vmatpush1.msra.mxu0 0.0
    %3355 = vmatprep.subr.mxu0 0.0
    %3356 = vmatpush1.msra.mxu0 0.0
    %3357 = vmatprep.subr.mxu0 0.0
    %3358 = vmatpush1.msra.mxu0 0.0
    %3359 = vmatprep.subr.mxu0 0.0
    %3360 = vmatpush1.msra.mxu0 0.0
    %3361 = vmatprep.subr.mxu0 0.0
    %3362 = vmatpush1.msra.mxu0 0.0
    %3363 = vmatprep.subr.mxu0 0.0
    %3364 = vmatpush1.msra.mxu0 0.0
    %3365 = vmatprep.subr.mxu0 0.0
    %3366 = vmatpush1.msra.mxu0 0.0
    %3367 = vmatprep.mubr.f32.mxu0 0.0
    %3368 = vmatmul.mubr.f32.gmra.mrb[0].mxu0 %v3301
    %v3369 = vpop.f32.mrb[0].mxu0
    %v3370 = vadd.f32 0.0, %v3369
    %v3371 = vpop.f32.mrb[0].mxu0
    %3372 = vdwg.mxu0
    %v3374 = vsel %vm630, %v2868, 0
    %3376 = vmatprep.subr.mxu0 0.0
    %3377 = vmatpush1.msra.mxu0 %v3039
    %3378 = vmatprep.subr.mxu0 0.0
    %3379 = vmatpush1.msra.mxu0 0.0
    %3380 = vmatprep.subr.mxu0 0.0
    %3381 = vmatpush1.msra.mxu0 0.0
    %3382 = vmatprep.subr.mxu0 0.0
    %3383 = vmatpush1.msra.mxu0 0.0
    %3384 = vmatprep.subr.mxu0 0.0
    %3385 = vmatpush1.msra.mxu0 0.0
    %3386 = vmatprep.subr.mxu0 0.0
    %3387 = vmatpush1.msra.mxu0 0.0
    %3388 = vmatprep.subr.mxu0 0.0
    %3389 = vmatpush1.msra.mxu0 0.0
    %3390 = vmatprep.subr.mxu0 0.0
    %3391 = vmatpush1.msra.mxu0 0.0
    %3392 = vmatprep.subr.mxu0 0.0
    %3393 = vmatpush1.msra.mxu0 0.0
    %3394 = vmatprep.subr.mxu0 0.0
    %3395 = vmatpush1.msra.mxu0 0.0
    %3396 = vmatprep.subr.mxu0 0.0
    %3397 = vmatpush1.msra.mxu0 0.0
    %3398 = vmatprep.subr.mxu0 0.0
    %3399 = vmatpush1.msra.mxu0 0.0
    %3400 = vmatprep.subr.mxu0 0.0
    %3401 = vmatpush1.msra.mxu0 0.0
    %3402 = vmatprep.subr.mxu0 0.0
    %3403 = vmatpush1.msra.mxu0 0.0
    %3404 = vmatprep.subr.mxu0 0.0
    %3405 = vmatpush1.msra.mxu0 0.0
    %3406 = vmatprep.subr.mxu0 0.0
    %3407 = vmatpush1.msra.mxu0 0.0
    %3408 = vmatprep.subr.mxu0 0.0
    %3409 = vmatpush1.msra.mxu0 0.0
    %3410 = vmatprep.subr.mxu0 0.0
    %3411 = vmatpush1.msra.mxu0 0.0
    %3412 = vmatprep.subr.mxu0 0.0
    %3413 = vmatpush1.msra.mxu0 0.0
    %3414 = vmatprep.subr.mxu0 0.0
    %3415 = vmatpush1.msra.mxu0 0.0
    %3416 = vmatprep.subr.mxu0 0.0
    %3417 = vmatpush1.msra.mxu0 0.0
    %3418 = vmatprep.subr.mxu0 0.0
    %3419 = vmatpush1.msra.mxu0 0.0
    %3420 = vmatprep.subr.mxu0 0.0
    %3421 = vmatpush1.msra.mxu0 0.0
    %3422 = vmatprep.subr.mxu0 0.0
    %3423 = vmatpush1.msra.mxu0 0.0
    %3424 = vmatprep.subr.mxu0 0.0
    %3425 = vmatpush1.msra.mxu0 0.0
    %3426 = vmatprep.subr.mxu0 0.0
    %3427 = vmatpush1.msra.mxu0 0.0
    %3428 = vmatprep.subr.mxu0 0.0
    %3429 = vmatpush1.msra.mxu0 0.0
    %3430 = vmatprep.subr.mxu0 0.0
    %3431 = vmatpush1.msra.mxu0 0.0
    %3432 = vmatprep.subr.mxu0 0.0
    %3433 = vmatpush1.msra.mxu0 0.0
    %3434 = vmatprep.subr.mxu0 0.0
    %3435 = vmatpush1.msra.mxu0 0.0
    %3436 = vmatprep.subr.mxu0 0.0
    %3437 = vmatpush1.msra.mxu0 0.0
    %3438 = vmatprep.subr.mxu0 0.0
    %3439 = vmatpush1.msra.mxu0 0.0
    %3440 = vmatprep.mubr.f32.mxu0 0.0
    %3441 = vmatmul.mubr.f32.gmra.mrb[0].mxu0 %v3374
    %v3442 = vpop.f32.mrb[0].mxu0
    %v3443 = vadd.f32 0.0, %v3442
    %v3444 = vpop.f32.mrb[0].mxu0
    %3445 = vdwg.mxu0
    %v3447 = vsel %vm630, %v2900, 0
    %3449 = vmatprep.subr.mxu0 0.0
    %3450 = vmatpush1.msra.mxu0 %v3068
    %3451 = vmatprep.subr.mxu0 0.0
    %3452 = vmatpush1.msra.mxu0 0.0
    %3453 = vmatprep.subr.mxu0 0.0
    %3454 = vmatpush1.msra.mxu0 0.0
    %3455 = vmatprep.subr.mxu0 0.0
    %3456 = vmatpush1.msra.mxu0 0.0
    %3457 = vmatprep.subr.mxu0 0.0
    %3458 = vmatpush1.msra.mxu0 0.0
    %3459 = vmatprep.subr.mxu0 0.0
    %3460 = vmatpush1.msra.mxu0 0.0
    %3461 = vmatprep.subr.mxu0 0.0
    %3462 = vmatpush1.msra.mxu0 0.0
    %3463 = vmatprep.subr.mxu0 0.0
    %3464 = vmatpush1.msra.mxu0 0.0
    %3465 = vmatprep.subr.mxu0 0.0
    %3466 = vmatpush1.msra.mxu0 0.0
    %3467 = vmatprep.subr.mxu0 0.0
    %3468 = vmatpush1.msra.mxu0 0.0
    %3469 = vmatprep.subr.mxu0 0.0
    %3470 = vmatpush1.msra.mxu0 0.0
    %3471 = vmatprep.subr.mxu0 0.0
    %3472 = vmatpush1.msra.mxu0 0.0
    %3473 = vmatprep.subr.mxu0 0.0
    %3474 = vmatpush1.msra.mxu0 0.0
    %3475 = vmatprep.subr.mxu0 0.0
    %3476 = vmatpush1.msra.mxu0 0.0
    %3477 = vmatprep.subr.mxu0 0.0
    %3478 = vmatpush1.msra.mxu0 0.0
    %3479 = vmatprep.subr.mxu0 0.0
    %3480 = vmatpush1.msra.mxu0 0.0
    %3481 = vmatprep.subr.mxu0 0.0
    %3482 = vmatpush1.msra.mxu0 0.0
    %3483 = vmatprep.subr.mxu0 0.0
    %3484 = vmatpush1.msra.mxu0 0.0
    %3485 = vmatprep.subr.mxu0 0.0
    %3486 = vmatpush1.msra.mxu0 0.0
    %3487 = vmatprep.subr.mxu0 0.0
    %3488 = vmatpush1.msra.mxu0 0.0
    %3489 = vmatprep.subr.mxu0 0.0
    %3490 = vmatpush1.msra.mxu0 0.0
    %3491 = vmatprep.subr.mxu0 0.0
    %3492 = vmatpush1.msra.mxu0 0.0
    %3493 = vmatprep.subr.mxu0 0.0
    %3494 = vmatpush1.msra.mxu0 0.0
    %3495 = vmatprep.subr.mxu0 0.0
    %3496 = vmatpush1.msra.mxu0 0.0
    %3497 = vmatprep.subr.mxu0 0.0
    %3498 = vmatpush1.msra.mxu0 0.0
    %3499 = vmatprep.subr.mxu0 0.0
    %3500 = vmatpush1.msra.mxu0 0.0
    %3501 = vmatprep.subr.mxu0 0.0
    %3502 = vmatpush1.msra.mxu0 0.0
    %3503 = vmatprep.subr.mxu0 0.0
    %3504 = vmatpush1.msra.mxu0 0.0
    %3505 = vmatprep.subr.mxu0 0.0
    %3506 = vmatpush1.msra.mxu0 0.0
    %3507 = vmatprep.subr.mxu0 0.0
    %3508 = vmatpush1.msra.mxu0 0.0
    %3509 = vmatprep.subr.mxu0 0.0
    %3510 = vmatpush1.msra.mxu0 0.0
    %3511 = vmatprep.subr.mxu0 0.0
    %3512 = vmatpush1.msra.mxu0 0.0
    %3513 = vmatprep.mubr.f32.mxu0 0.0
    %3514 = vmatmul.mubr.f32.gmra.mrb[0].mxu0 %v3447
    %v3515 = vpop.f32.mrb[0].mxu0
    %v3516 = vadd.f32 0.0, %v3515
    %v3517 = vpop.f32.mrb[0].mxu0
    %3518 = vdwg.mxu0
    %v3520 = vsel %vm630, %v2932, 0
    %3522 = vmatprep.subr.mxu0 0.0
    %3523 = vmatpush1.msra.mxu0 %v3069
    %3524 = vmatprep.subr.mxu0 0.0
    %3525 = vmatpush1.msra.mxu0 0.0
    %3526 = vmatprep.subr.mxu0 0.0
    %3527 = vmatpush1.msra.mxu0 0.0
    %3528 = vmatprep.subr.mxu0 0.0
    %3529 = vmatpush1.msra.mxu0 0.0
    %3530 = vmatprep.subr.mxu0 0.0
    %3531 = vmatpush1.msra.mxu0 0.0
    %3532 = vmatprep.subr.mxu0 0.0
    %3533 = vmatpush1.msra.mxu0 0.0
    %3534 = vmatprep.subr.mxu0 0.0
    %3535 = vmatpush1.msra.mxu0 0.0
    %3536 = vmatprep.subr.mxu0 0.0
    %3537 = vmatpush1.msra.mxu0 0.0
    %3538 = vmatprep.subr.mxu0 0.0
    %3539 = vmatpush1.msra.mxu0 0.0
    %3540 = vmatprep.subr.mxu0 0.0
    %3541 = vmatpush1.msra.mxu0 0.0
    %3542 = vmatprep.subr.mxu0 0.0
    %3543 = vmatpush1.msra.mxu0 0.0
    %3544 = vmatprep.subr.mxu0 0.0
    %3545 = vmatpush1.msra.mxu0 0.0
    %3546 = vmatprep.subr.mxu0 0.0
    %3547 = vmatpush1.msra.mxu0 0.0
    %3548 = vmatprep.subr.mxu0 0.0
    %3549 = vmatpush1.msra.mxu0 0.0
    %3550 = vmatprep.subr.mxu0 0.0
    %3551 = vmatpush1.msra.mxu0 0.0
    %3552 = vmatprep.subr.mxu0 0.0
    %3553 = vmatpush1.msra.mxu0 0.0
    %3554 = vmatprep.subr.mxu0 0.0
    %3555 = vmatpush1.msra.mxu0 0.0
    %3556 = vmatprep.subr.mxu0 0.0
    %3557 = vmatpush1.msra.mxu0 0.0
    %3558 = vmatprep.subr.mxu0 0.0
    %3559 = vmatpush1.msra.mxu0 0.0
    %3560 = vmatprep.subr.mxu0 0.0
    %3561 = vmatpush1.msra.mxu0 0.0
    %3562 = vmatprep.subr.mxu0 0.0
    %3563 = vmatpush1.msra.mxu0 0.0
    %3564 = vmatprep.subr.mxu0 0.0
    %3565 = vmatpush1.msra.mxu0 0.0
    %3566 = vmatprep.subr.mxu0 0.0
    %3567 = vmatpush1.msra.mxu0 0.0
    %3568 = vmatprep.subr.mxu0 0.0
    %3569 = vmatpush1.msra.mxu0 0.0
    %3570 = vmatprep.subr.mxu0 0.0
    %3571 = vmatpush1.msra.mxu0 0.0
    %3572 = vmatprep.subr.mxu0 0.0
    %3573 = vmatpush1.msra.mxu0 0.0
    %3574 = vmatprep.subr.mxu0 0.0
    %3575 = vmatpush1.msra.mxu0 0.0
    %3576 = vmatprep.subr.mxu0 0.0
    %3577 = vmatpush1.msra.mxu0 0.0
    %3578 = vmatprep.subr.mxu0 0.0
    %3579 = vmatpush1.msra.mxu0 0.0
    %3580 = vmatprep.subr.mxu0 0.0
    %3581 = vmatpush1.msra.mxu0 0.0
    %3582 = vmatprep.subr.mxu0 0.0
    %3583 = vmatpush1.msra.mxu0 0.0
    %3584 = vmatprep.subr.mxu0 0.0
    %3585 = vmatpush1.msra.mxu0 0.0
    %3586 = vmatprep.mubr.f32.mxu0 0.0
    %3587 = vmatmul.mubr.f32.gmra.mrb[0].mxu0 %v3520
    %v3588 = vpop.f32.mrb[0].mxu0
    %v3589 = vadd.f32 0.0, %v3588
    %v3590 = vpop.f32.mrb[0].mxu0
    %3591 = vdwg.mxu0
    %v3593 = vsel %vm630, %v2964, 0
    %3595 = vmatprep.subr.mxu0 0.0
    %3596 = vmatpush1.msra.mxu0 %v3070
    %3597 = vmatprep.subr.mxu0 0.0
    %3598 = vmatpush1.msra.mxu0 0.0
    %3599 = vmatprep.subr.mxu0 0.0
    %3600 = vmatpush1.msra.mxu0 0.0
    %3601 = vmatprep.subr.mxu0 0.0
    %3602 = vmatpush1.msra.mxu0 0.0
    %3603 = vmatprep.subr.mxu0 0.0
    %3604 = vmatpush1.msra.mxu0 0.0
    %3605 = vmatprep.subr.mxu0 0.0
    %3606 = vmatpush1.msra.mxu0 0.0
    %3607 = vmatprep.subr.mxu0 0.0
    %3608 = vmatpush1.msra.mxu0 0.0
    %3609 = vmatprep.subr.mxu0 0.0
    %3610 = vmatpush1.msra.mxu0 0.0
    %3611 = vmatprep.subr.mxu0 0.0
    %3612 = vmatpush1.msra.mxu0 0.0
    %3613 = vmatprep.subr.mxu0 0.0
    %3614 = vmatpush1.msra.mxu0 0.0
    %3615 = vmatprep.subr.mxu0 0.0
    %3616 = vmatpush1.msra.mxu0 0.0
    %3617 = vmatprep.subr.mxu0 0.0
    %3618 = vmatpush1.msra.mxu0 0.0
    %3619 = vmatprep.subr.mxu0 0.0
    %3620 = vmatpush1.msra.mxu0 0.0
    %3621 = vmatprep.subr.mxu0 0.0
    %3622 = vmatpush1.msra.mxu0 0.0
    %3623 = vmatprep.subr.mxu0 0.0
    %3624 = vmatpush1.msra.mxu0 0.0
    %3625 = vmatprep.subr.mxu0 0.0
    %3626 = vmatpush1.msra.mxu0 0.0
    %3627 = vmatprep.subr.mxu0 0.0
    %3628 = vmatpush1.msra.mxu0 0.0
    %3629 = vmatprep.subr.mxu0 0.0
    %3630 = vmatpush1.msra.mxu0 0.0
    %3631 = vmatprep.subr.mxu0 0.0
    %3632 = vmatpush1.msra.mxu0 0.0
    %3633 = vmatprep.subr.mxu0 0.0
    %3634 = vmatpush1.msra.mxu0 0.0
    %3635 = vmatprep.subr.mxu0 0.0
    %3636 = vmatpush1.msra.mxu0 0.0
    %3637 = vmatprep.subr.mxu0 0.0
    %3638 = vmatpush1.msra.mxu0 0.0
    %3639 = vmatprep.subr.mxu0 0.0
    %3640 = vmatpush1.msra.mxu0 0.0
    %3641 = vmatprep.subr.mxu0 0.0
    %3642 = vmatpush1.msra.mxu0 0.0
    %3643 = vmatprep.subr.mxu0 0.0
    %3644 = vmatpush1.msra.mxu0 0.0
    %3645 = vmatprep.subr.mxu0 0.0
    %3646 = vmatpush1.msra.mxu0 0.0
    %3647 = vmatprep.subr.mxu0 0.0
    %3648 = vmatpush1.msra.mxu0 0.0
    %3649 = vmatprep.subr.mxu0 0.0
    %3650 = vmatpush1.msra.mxu0 0.0
    %3651 = vmatprep.subr.mxu0 0.0
    %3652 = vmatpush1.msra.mxu0 0.0
    %3653 = vmatprep.subr.mxu0 0.0
    %3654 = vmatpush1.msra.mxu0 0.0
    %3655 = vmatprep.subr.mxu0 0.0
    %3656 = vmatpush1.msra.mxu0 0.0
    %3657 = vmatprep.subr.mxu0 0.0
    %3658 = vmatpush1.msra.mxu0 0.0
    %3659 = vmatprep.mubr.f32.mxu0 0.0
    %3660 = vmatmul.mubr.f32.gmra.mrb[0].mxu0 %v3593
    %v3661 = vpop.f32.mrb[0].mxu0
    %v3662 = vadd.f32 0.0, %v3661
    %v3663 = vpop.f32.mrb[0].mxu0
    %3664 = vdwg.mxu0
    %v3666 = vsel %vm630, %v2996, 0
    %3668 = vmatprep.subr.mxu0 0.0
    %3669 = vmatpush1.msra.mxu0 %v3071
    %3670 = vmatprep.subr.mxu0 0.0
    %3671 = vmatpush1.msra.mxu0 0.0
    %3672 = vmatprep.subr.mxu0 0.0
    %3673 = vmatpush1.msra.mxu0 0.0
    %3674 = vmatprep.subr.mxu0 0.0
    %3675 = vmatpush1.msra.mxu0 0.0
    %3676 = vmatprep.subr.mxu0 0.0
    %3677 = vmatpush1.msra.mxu0 0.0
    %3678 = vmatprep.subr.mxu0 0.0
    %3679 = vmatpush1.msra.mxu0 0.0
    %3680 = vmatprep.subr.mxu0 0.0
    %3681 = vmatpush1.msra.mxu0 0.0
    %3682 = vmatprep.subr.mxu0 0.0
    %3683 = vmatpush1.msra.mxu0 0.0
    %3684 = vmatprep.subr.mxu0 0.0
    %3685 = vmatpush1.msra.mxu0 0.0
    %3686 = vmatprep.subr.mxu0 0.0
    %3687 = vmatpush1.msra.mxu0 0.0
    %3688 = vmatprep.subr.mxu0 0.0
    %3689 = vmatpush1.msra.mxu0 0.0
    %3690 = vmatprep.subr.mxu0 0.0
    %3691 = vmatpush1.msra.mxu0 0.0
    %3692 = vmatprep.subr.mxu0 0.0
    %3693 = vmatpush1.msra.mxu0 0.0
    %3694 = vmatprep.subr.mxu0 0.0
    %3695 = vmatpush1.msra.mxu0 0.0
    %3696 = vmatprep.subr.mxu0 0.0
    %3697 = vmatpush1.msra.mxu0 0.0
    %3698 = vmatprep.subr.mxu0 0.0
    %3699 = vmatpush1.msra.mxu0 0.0
    %3700 = vmatprep.subr.mxu0 0.0
    %3701 = vmatpush1.msra.mxu0 0.0
    %3702 = vmatprep.subr.mxu0 0.0
    %3703 = vmatpush1.msra.mxu0 0.0
    %3704 = vmatprep.subr.mxu0 0.0
    %3705 = vmatpush1.msra.mxu0 0.0
    %3706 = vmatprep.subr.mxu0 0.0
    %3707 = vmatpush1.msra.mxu0 0.0
    %3708 = vmatprep.subr.mxu0 0.0
    %3709 = vmatpush1.msra.mxu0 0.0
    %3710 = vmatprep.subr.mxu0 0.0
    %3711 = vmatpush1.msra.mxu0 0.0
    %3712 = vmatprep.subr.mxu0 0.0
    %3713 = vmatpush1.msra.mxu0 0.0
    %3714 = vmatprep.subr.mxu0 0.0
    %3715 = vmatpush1.msra.mxu0 0.0
    %3716 = vmatprep.subr.mxu0 0.0
    %3717 = vmatpush1.msra.mxu0 0.0
    %3718 = vmatprep.subr.mxu0 0.0
    %3719 = vmatpush1.msra.mxu0 0.0
    %3720 = vmatprep.subr.mxu0 0.0
    %3721 = vmatpush1.msra.mxu0 0.0
    %3722 = vmatprep.subr.mxu0 0.0
    %3723 = vmatpush1.msra.mxu0 0.0
    %3724 = vmatprep.subr.mxu0 0.0
    %3725 = vmatpush1.msra.mxu0 0.0
    %3726 = vmatprep.subr.mxu0 0.0
    %3727 = vmatpush1.msra.mxu0 0.0
    %3728 = vmatprep.subr.mxu0 0.0
    %3729 = vmatpush1.msra.mxu0 0.0
    %3730 = vmatprep.subr.mxu0 0.0
    %3731 = vmatpush1.msra.mxu0 0.0
    %3732 = vmatprep.mubr.f32.mxu0 0.0
    %3733 = vmatmul.mubr.f32.gmra.mrb[0].mxu0 %v3666
    %v3734 = vpop.f32.mrb[0].mxu0
    %v3735 = vadd.f32 0.0, %v3734
    %v3736 = vpop.f32.mrb[0].mxu0
    %3737 = vdwg.mxu0
    %v3738 = vsel %vm630, %v3224, -inf
    %3739 = vmax.xlane.f32.xlu0 %v3738
    %v3740 = vpop.xlane.xlu0 %3739
    %v3741 = vsel %vm630, %v3297, -inf
    %3742 = vmax.xlane.f32.xlu0 %v3741
    %v3743 = vpop.xlane.xlu0 %3742
    %v3744 = vsel %vm630, %v3370, -inf
    %3745 = vmax.xlane.f32.xlu0 %v3744
    %v3746 = vpop.xlane.xlu0 %3745
    %v3747 = vsel %vm630, %v3443, -inf
    %3748 = vmax.xlane.f32.xlu0 %v3747
    %v3749 = vpop.xlane.xlu0 %3748
    %v3750 = vsel %vm630, %v3516, -inf
    %3751 = vmax.xlane.f32.xlu0 %v3750
    %v3752 = vpop.xlane.xlu0 %3751
    %v3753 = vsel %vm630, %v3589, -inf
    %3754 = vmax.xlane.f32.xlu0 %v3753
    %v3755 = vpop.xlane.xlu0 %3754
    %v3756 = vsel %vm630, %v3662, -inf
    %3757 = vmax.xlane.f32.xlu0 %v3756
    %v3758 = vpop.xlane.xlu0 %3757
    %v3759 = vsel %vm630, %v3735, -inf
    %3760 = vmax.xlane.f32.xlu0 %v3759
    %v3761 = vpop.xlane.xlu0 %3760
    %v3762 = vsub.f32 %v3224, %v3740
    %v3763 = vsub.f32 %v3297, %v3743
    %v3764 = vsub.f32 %v3370, %v3746
    %v3765 = vsub.f32 %v3443, %v3749
    %v3766 = vsub.f32 %v3516, %v3752
    %v3767 = vsub.f32 %v3589, %v3755
    %v3768 = vsub.f32 %v3662, %v3758
    %v3769 = vsub.f32 %v3735, %v3761
    %v3770 = vmul.f32 %v3762, 1.442695
    %v3771 = vpow.pop %v3770
    %v3772 = vmul.f32 %v3763, 1.442695
    %v3773 = vpow.pop %v3772
    %v3774 = vmul.f32 %v3764, 1.442695
    %v3775 = vpow.pop %v3774
    %v3776 = vmul.f32 %v3765, 1.442695
    %v3777 = vpow.pop %v3776
    %v3778 = vmul.f32 %v3766, 1.442695
    %v3779 = vpow.pop %v3778
    %v3780 = vmul.f32 %v3767, 1.442695
    %v3781 = vpow.pop %v3780
    %v3782 = vmul.f32 %v3768, 1.442695
    %v3783 = vpow.pop %v3782
    %v3784 = vmul.f32 %v3769, 1.442695
    %v3785 = vpow.pop %v3784
    %v3786 = vsel %vm630, %v3771, 0.0
    %3787 = vadd.xlane.f32.xlu0 %v3786
    %v3788 = vpop.xlane.xlu0 %3787
    %v3789 = vsel %vm630, %v3773, 0.0
    %3790 = vadd.xlane.f32.xlu0 %v3789
    %v3791 = vpop.xlane.xlu0 %3790
    %v3792 = vsel %vm630, %v3775, 0.0
    %3793 = vadd.xlane.f32.xlu0 %v3792
    %v3794 = vpop.xlane.xlu0 %3793
    %v3795 = vsel %vm630, %v3777, 0.0
    %3796 = vadd.xlane.f32.xlu0 %v3795
    %v3797 = vpop.xlane.xlu0 %3796
    %v3798 = vsel %vm630, %v3779, 0.0
    %3799 = vadd.xlane.f32.xlu0 %v3798
    %v3800 = vpop.xlane.xlu0 %3799
    %v3801 = vsel %vm630, %v3781, 0.0
    %3802 = vadd.xlane.f32.xlu0 %v3801
    %v3803 = vpop.xlane.xlu0 %3802
    %v3804 = vsel %vm630, %v3783, 0.0
    %3805 = vadd.xlane.f32.xlu0 %v3804
    %v3806 = vpop.xlane.xlu0 %3805
    %v3807 = vsel %vm630, %v3785, 0.0
    %3808 = vadd.xlane.f32.xlu0 %v3807
    %v3809 = vpop.xlane.xlu0 %3808
    %v3810 = vrcp.pop %v3788
    %v3811 = vrcp.pop %v3791
    %v3812 = vrcp.pop %v3794
    %v3813 = vrcp.pop %v3797
    %v3814 = vrcp.pop %v3800
    %v3815 = vrcp.pop %v3803
    %v3816 = vrcp.pop %v3806
    %v3817 = vrcp.pop %v3809
    %v3818 = vmul.f32 %v3771, %v3810
    %v3819 = vmul.f32 %v3773, %v3811
    %v3820 = vmul.f32 %v3775, %v3812
    %v3821 = vmul.f32 %v3777, %v3813
    %v3822 = vmul.f32 %v3779, %v3814
    %v3823 = vmul.f32 %v3781, %v3815
    %v3824 = vmul.f32 %v3783, %v3816
    %v3825 = vmul.f32 %v3785, %v3817
    %v3827 = vsel %vm630, %v3818, 0
    %v3830 = vsel %vm630, %v3106, 0
    %3832 = vmatprep.subr.mxu0 0.0
    %3833 = vmatpush1.xpose.msra.mxu0 %v3830
    %3834 = vmatprep.subr.mxu0 0.0
    %3835 = vmatpush1.xpose.msra.mxu0 0.0
    %3836 = vmatprep.subr.mxu0 0.0
    %3837 = vmatpush1.xpose.msra.mxu0 0.0
    %3838 = vmatprep.subr.mxu0 0.0
    %3839 = vmatpush1.xpose.msra.mxu0 0.0
    %3840 = vmatprep.subr.mxu0 0.0
    %3841 = vmatpush1.xpose.msra.mxu0 0.0
    %3842 = vmatprep.subr.mxu0 0.0
    %3843 = vmatpush1.xpose.msra.mxu0 0.0
    %3844 = vmatprep.subr.mxu0 0.0
    %3845 = vmatpush1.xpose.msra.mxu0 0.0
    %3846 = vmatprep.subr.mxu0 0.0
    %3847 = vmatpush1.xpose.msra.mxu0 0.0
    %3848 = vmatprep.subr.mxu0 0.0
    %3849 = vmatpush1.xpose.msra.mxu0 0.0
    %3850 = vmatprep.subr.mxu0 0.0
    %3851 = vmatpush1.xpose.msra.mxu0 0.0
    %3852 = vmatprep.subr.mxu0 0.0
    %3853 = vmatpush1.xpose.msra.mxu0 0.0
    %3854 = vmatprep.subr.mxu0 0.0
    %3855 = vmatpush1.xpose.msra.mxu0 0.0
    %3856 = vmatprep.subr.mxu0 0.0
    %3857 = vmatpush1.xpose.msra.mxu0 0.0
    %3858 = vmatprep.subr.mxu0 0.0
    %3859 = vmatpush1.xpose.msra.mxu0 0.0
    %3860 = vmatprep.subr.mxu0 0.0
    %3861 = vmatpush1.xpose.msra.mxu0 0.0
    %3862 = vmatprep.subr.mxu0 0.0
    %3863 = vmatpush1.xpose.msra.mxu0 0.0
    %3864 = vmatprep.subr.mxu0 0.0
    %3865 = vmatpush1.xpose.msra.mxu0 0.0
    %3866 = vmatprep.subr.mxu0 0.0
    %3867 = vmatpush1.xpose.msra.mxu0 0.0
    %3868 = vmatprep.subr.mxu0 0.0
    %3869 = vmatpush1.xpose.msra.mxu0 0.0
    %3870 = vmatprep.subr.mxu0 0.0
    %3871 = vmatpush1.xpose.msra.mxu0 0.0
    %3872 = vmatprep.subr.mxu0 0.0
    %3873 = vmatpush1.xpose.msra.mxu0 0.0
    %3874 = vmatprep.subr.mxu0 0.0
    %3875 = vmatpush1.xpose.msra.mxu0 0.0
    %3876 = vmatprep.subr.mxu0 0.0
    %3877 = vmatpush1.xpose.msra.mxu0 0.0
    %3878 = vmatprep.subr.mxu0 0.0
    %3879 = vmatpush1.xpose.msra.mxu0 0.0
    %3880 = vmatprep.subr.mxu0 0.0
    %3881 = vmatpush1.xpose.msra.mxu0 0.0
    %3882 = vmatprep.subr.mxu0 0.0
    %3883 = vmatpush1.xpose.msra.mxu0 0.0
    %3884 = vmatprep.subr.mxu0 0.0
    %3885 = vmatpush1.xpose.msra.mxu0 0.0
    %3886 = vmatprep.subr.mxu0 0.0
    %3887 = vmatpush1.xpose.msra.mxu0 0.0
    %3888 = vmatprep.subr.mxu0 0.0
    %3889 = vmatpush1.xpose.msra.mxu0 0.0
    %3890 = vmatprep.subr.mxu0 0.0
    %3891 = vmatpush1.xpose.msra.mxu0 0.0
    %3892 = vmatprep.subr.mxu0 0.0
    %3893 = vmatpush1.xpose.msra.mxu0 0.0
    %3894 = vmatprep.subr.mxu0 0.0
    %3895 = vmatpush1.xpose.msra.mxu0 0.0
    %3896 = vmatprep.mubr.f32.mxu0 0.0
    %3897 = vmatmul.mubr.f32.gmra.mrb[0].mxu0 %v3827
    %v3898 = vpop.f32.mrb[0].mxu0
    %v3899 = vadd.f32 0.0, %v3898
    %v3900 = vpop.f32.mrb[0].mxu0
    %3901 = vdwg.mxu0
    %v3903 = vsel %vm630, %v3819, 0
    %v3906 = vsel %vm630, %v3107, 0
    %3908 = vmatprep.subr.mxu0 0.0
    %3909 = vmatpush1.xpose.msra.mxu0 %v3906
    %3910 = vmatprep.subr.mxu0 0.0
    %3911 = vmatpush1.xpose.msra.mxu0 0.0
    %3912 = vmatprep.subr.mxu0 0.0
    %3913 = vmatpush1.xpose.msra.mxu0 0.0
    %3914 = vmatprep.subr.mxu0 0.0
    %3915 = vmatpush1.xpose.msra.mxu0 0.0
    %3916 = vmatprep.subr.mxu0 0.0
    %3917 = vmatpush1.xpose.msra.mxu0 0.0
    %3918 = vmatprep.subr.mxu0 0.0
    %3919 = vmatpush1.xpose.msra.mxu0 0.0
    %3920 = vmatprep.subr.mxu0 0.0
    %3921 = vmatpush1.xpose.msra.mxu0 0.0
    %3922 = vmatprep.subr.mxu0 0.0
    %3923 = vmatpush1.xpose.msra.mxu0 0.0
    %3924 = vmatprep.subr.mxu0 0.0
    %3925 = vmatpush1.xpose.msra.mxu0 0.0
    %3926 = vmatprep.subr.mxu0 0.0
    %3927 = vmatpush1.xpose.msra.mxu0 0.0
    %3928 = vmatprep.subr.mxu0 0.0
    %3929 = vmatpush1.xpose.msra.mxu0 0.0
    %3930 = vmatprep.subr.mxu0 0.0
    %3931 = vmatpush1.xpose.msra.mxu0 0.0
    %3932 = vmatprep.subr.mxu0 0.0
    %3933 = vmatpush1.xpose.msra.mxu0 0.0
    %3934 = vmatprep.subr.mxu0 0.0
    %3935 = vmatpush1.xpose.msra.mxu0 0.0
    %3936 = vmatprep.subr.mxu0 0.0
    %3937 = vmatpush1.xpose.msra.mxu0 0.0
    %3938 = vmatprep.subr.mxu0 0.0
    %3939 = vmatpush1.xpose.msra.mxu0 0.0
    %3940 = vmatprep.subr.mxu0 0.0
    %3941 = vmatpush1.xpose.msra.mxu0 0.0
    %3942 = vmatprep.subr.mxu0 0.0
    %3943 = vmatpush1.xpose.msra.mxu0 0.0
    %3944 = vmatprep.subr.mxu0 0.0
    %3945 = vmatpush1.xpose.msra.mxu0 0.0
    %3946 = vmatprep.subr.mxu0 0.0
    %3947 = vmatpush1.xpose.msra.mxu0 0.0
    %3948 = vmatprep.subr.mxu0 0.0
    %3949 = vmatpush1.xpose.msra.mxu0 0.0
    %3950 = vmatprep.subr.mxu0 0.0
    %3951 = vmatpush1.xpose.msra.mxu0 0.0
    %3952 = vmatprep.subr.mxu0 0.0
    %3953 = vmatpush1.xpose.msra.mxu0 0.0
    %3954 = vmatprep.subr.mxu0 0.0
    %3955 = vmatpush1.xpose.msra.mxu0 0.0
    %3956 = vmatprep.subr.mxu0 0.0
    %3957 = vmatpush1.xpose.msra.mxu0 0.0
    %3958 = vmatprep.subr.mxu0 0.0
    %3959 = vmatpush1.xpose.msra.mxu0 0.0
    %3960 = vmatprep.subr.mxu0 0.0
    %3961 = vmatpush1.xpose.msra.mxu0 0.0
    %3962 = vmatprep.subr.mxu0 0.0
    %3963 = vmatpush1.xpose.msra.mxu0 0.0
    %3964 = vmatprep.subr.mxu0 0.0
    %3965 = vmatpush1.xpose.msra.mxu0 0.0
    %3966 = vmatprep.subr.mxu0 0.0
    %3967 = vmatpush1.xpose.msra.mxu0 0.0
    %3968 = vmatprep.subr.mxu0 0.0
    %3969 = vmatpush1.xpose.msra.mxu0 0.0
    %3970 = vmatprep.subr.mxu0 0.0
    %3971 = vmatpush1.xpose.msra.mxu0 0.0
    %3972 = vmatprep.mubr.f32.mxu0 0.0
    %3973 = vmatmul.mubr.f32.gmra.mrb[0].mxu0 %v3903
    %v3974 = vpop.f32.mrb[0].mxu0
    %v3975 = vadd.f32 0.0, %v3974
    %v3976 = vpop.f32.mrb[0].mxu0
    %3977 = vdwg.mxu0
    %v3979 = vsel %vm630, %v3820, 0
    %v3982 = vsel %vm630, %v3108, 0
    %3984 = vmatprep.subr.mxu0 0.0
    %3985 = vmatpush1.xpose.msra.mxu0 %v3982
    %3986 = vmatprep.subr.mxu0 0.0
    %3987 = vmatpush1.xpose.msra.mxu0 0.0
    %3988 = vmatprep.subr.mxu0 0.0
    %3989 = vmatpush1.xpose.msra.mxu0 0.0
    %3990 = vmatprep.subr.mxu0 0.0
    %3991 = vmatpush1.xpose.msra.mxu0 0.0
    %3992 = vmatprep.subr.mxu0 0.0
    %3993 = vmatpush1.xpose.msra.mxu0 0.0
    %3994 = vmatprep.subr.mxu0 0.0
    %3995 = vmatpush1.xpose.msra.mxu0 0.0
    %3996 = vmatprep.subr.mxu0 0.0
    %3997 = vmatpush1.xpose.msra.mxu0 0.0
    %3998 = vmatprep.subr.mxu0 0.0
    %3999 = vmatpush1.xpose.msra.mxu0 0.0
    %4000 = vmatprep.subr.mxu0 0.0
    %4001 = vmatpush1.xpose.msra.mxu0 0.0
    %4002 = vmatprep.subr.mxu0 0.0
    %4003 = vmatpush1.xpose.msra.mxu0 0.0
    %4004 = vmatprep.subr.mxu0 0.0
    %4005 = vmatpush1.xpose.msra.mxu0 0.0
    %4006 = vmatprep.subr.mxu0 0.0
    %4007 = vmatpush1.xpose.msra.mxu0 0.0
    %4008 = vmatprep.subr.mxu0 0.0
    %4009 = vmatpush1.xpose.msra.mxu0 0.0
    %4010 = vmatprep.subr.mxu0 0.0
    %4011 = vmatpush1.xpose.msra.mxu0 0.0
    %4012 = vmatprep.subr.mxu0 0.0
    %4013 = vmatpush1.xpose.msra.mxu0 0.0
    %4014 = vmatprep.subr.mxu0 0.0
    %4015 = vmatpush1.xpose.msra.mxu0 0.0
    %4016 = vmatprep.subr.mxu0 0.0
    %4017 = vmatpush1.xpose.msra.mxu0 0.0
    %4018 = vmatprep.subr.mxu0 0.0
    %4019 = vmatpush1.xpose.msra.mxu0 0.0
    %4020 = vmatprep.subr.mxu0 0.0
    %4021 = vmatpush1.xpose.msra.mxu0 0.0
    %4022 = vmatprep.subr.mxu0 0.0
    %4023 = vmatpush1.xpose.msra.mxu0 0.0
    %4024 = vmatprep.subr.mxu0 0.0
    %4025 = vmatpush1.xpose.msra.mxu0 0.0
    %4026 = vmatprep.subr.mxu0 0.0
    %4027 = vmatpush1.xpose.msra.mxu0 0.0
    %4028 = vmatprep.subr.mxu0 0.0
    %4029 = vmatpush1.xpose.msra.mxu0 0.0
    %4030 = vmatprep.subr.mxu0 0.0
    %4031 = vmatpush1.xpose.msra.mxu0 0.0
    %4032 = vmatprep.subr.mxu0 0.0
    %4033 = vmatpush1.xpose.msra.mxu0 0.0
    %4034 = vmatprep.subr.mxu0 0.0
    %4035 = vmatpush1.xpose.msra.mxu0 0.0
    %4036 = vmatprep.subr.mxu0 0.0
    %4037 = vmatpush1.xpose.msra.mxu0 0.0
    %4038 = vmatprep.subr.mxu0 0.0
    %4039 = vmatpush1.xpose.msra.mxu0 0.0
    %4040 = vmatprep.subr.mxu0 0.0
    %4041 = vmatpush1.xpose.msra.mxu0 0.0
    %4042 = vmatprep.subr.mxu0 0.0
    %4043 = vmatpush1.xpose.msra.mxu0 0.0
    %4044 = vmatprep.subr.mxu0 0.0
    %4045 = vmatpush1.xpose.msra.mxu0 0.0
    %4046 = vmatprep.subr.mxu0 0.0
    %4047 = vmatpush1.xpose.msra.mxu0 0.0
    %4048 = vmatprep.mubr.f32.mxu0 0.0
    %4049 = vmatmul.mubr.f32.gmra.mrb[0].mxu0 %v3979
    %v4050 = vpop.f32.mrb[0].mxu0
    %v4051 = vadd.f32 0.0, %v4050
    %v4052 = vpop.f32.mrb[0].mxu0
    %4053 = vdwg.mxu0
    %v4055 = vsel %vm630, %v3821, 0
    %v4058 = vsel %vm630, %v3109, 0
    %4060 = vmatprep.subr.mxu0 0.0
    %4061 = vmatpush1.xpose.msra.mxu0 %v4058
    %4062 = vmatprep.subr.mxu0 0.0
    %4063 = vmatpush1.xpose.msra.mxu0 0.0
    %4064 = vmatprep.subr.mxu0 0.0
    %4065 = vmatpush1.xpose.msra.mxu0 0.0
    %4066 = vmatprep.subr.mxu0 0.0
    %4067 = vmatpush1.xpose.msra.mxu0 0.0
    %4068 = vmatprep.subr.mxu0 0.0
    %4069 = vmatpush1.xpose.msra.mxu0 0.0
    %4070 = vmatprep.subr.mxu0 0.0
    %4071 = vmatpush1.xpose.msra.mxu0 0.0
    %4072 = vmatprep.subr.mxu0 0.0
    %4073 = vmatpush1.xpose.msra.mxu0 0.0
    %4074 = vmatprep.subr.mxu0 0.0
    %4075 = vmatpush1.xpose.msra.mxu0 0.0
    %4076 = vmatprep.subr.mxu0 0.0
    %4077 = vmatpush1.xpose.msra.mxu0 0.0
    %4078 = vmatprep.subr.mxu0 0.0
    %4079 = vmatpush1.xpose.msra.mxu0 0.0
    %4080 = vmatprep.subr.mxu0 0.0
    %4081 = vmatpush1.xpose.msra.mxu0 0.0
    %4082 = vmatprep.subr.mxu0 0.0
    %4083 = vmatpush1.xpose.msra.mxu0 0.0
    %4084 = vmatprep.subr.mxu0 0.0
    %4085 = vmatpush1.xpose.msra.mxu0 0.0
    %4086 = vmatprep.subr.mxu0 0.0
    %4087 = vmatpush1.xpose.msra.mxu0 0.0
    %4088 = vmatprep.subr.mxu0 0.0
    %4089 = vmatpush1.xpose.msra.mxu0 0.0
    %4090 = vmatprep.subr.mxu0 0.0
    %4091 = vmatpush1.xpose.msra.mxu0 0.0
    %4092 = vmatprep.subr.mxu0 0.0
    %4093 = vmatpush1.xpose.msra.mxu0 0.0
    %4094 = vmatprep.subr.mxu0 0.0
    %4095 = vmatpush1.xpose.msra.mxu0 0.0
    %4096 = vmatprep.subr.mxu0 0.0
    %4097 = vmatpush1.xpose.msra.mxu0 0.0
    %4098 = vmatprep.subr.mxu0 0.0
    %4099 = vmatpush1.xpose.msra.mxu0 0.0
    %4100 = vmatprep.subr.mxu0 0.0
    %4101 = vmatpush1.xpose.msra.mxu0 0.0
    %4102 = vmatprep.subr.mxu0 0.0
    %4103 = vmatpush1.xpose.msra.mxu0 0.0
    %4104 = vmatprep.subr.mxu0 0.0
    %4105 = vmatpush1.xpose.msra.mxu0 0.0
    %4106 = vmatprep.subr.mxu0 0.0
    %4107 = vmatpush1.xpose.msra.mxu0 0.0
    %4108 = vmatprep.subr.mxu0 0.0
    %4109 = vmatpush1.xpose.msra.mxu0 0.0
    %4110 = vmatprep.subr.mxu0 0.0
    %4111 = vmatpush1.xpose.msra.mxu0 0.0
    %4112 = vmatprep.subr.mxu0 0.0
    %4113 = vmatpush1.xpose.msra.mxu0 0.0
    %4114 = vmatprep.subr.mxu0 0.0
    %4115 = vmatpush1.xpose.msra.mxu0 0.0
    %4116 = vmatprep.subr.mxu0 0.0
    %4117 = vmatpush1.xpose.msra.mxu0 0.0
    %4118 = vmatprep.subr.mxu0 0.0
    %4119 = vmatpush1.xpose.msra.mxu0 0.0
    %4120 = vmatprep.subr.mxu0 0.0
    %4121 = vmatpush1.xpose.msra.mxu0 0.0
    %4122 = vmatprep.subr.mxu0 0.0
    %4123 = vmatpush1.xpose.msra.mxu0 0.0
    %4124 = vmatprep.mubr.f32.mxu0 0.0
    %4125 = vmatmul.mubr.f32.gmra.mrb[0].mxu0 %v4055
    %v4126 = vpop.f32.mrb[0].mxu0
    %v4127 = vadd.f32 0.0, %v4126
    %v4128 = vpop.f32.mrb[0].mxu0
    %4129 = vdwg.mxu0
    %v4131 = vsel %vm630, %v3822, 0
    %v4134 = vsel %vm630, %v3138, 0
    %4136 = vmatprep.subr.mxu0 0.0
    %4137 = vmatpush1.xpose.msra.mxu0 %v4134
    %4138 = vmatprep.subr.mxu0 0.0
    %4139 = vmatpush1.xpose.msra.mxu0 0.0
    %4140 = vmatprep.subr.mxu0 0.0
    %4141 = vmatpush1.xpose.msra.mxu0 0.0
    %4142 = vmatprep.subr.mxu0 0.0
    %4143 = vmatpush1.xpose.msra.mxu0 0.0
    %4144 = vmatprep.subr.mxu0 0.0
    %4145 = vmatpush1.xpose.msra.mxu0 0.0
    %4146 = vmatprep.subr.mxu0 0.0
    %4147 = vmatpush1.xpose.msra.mxu0 0.0
    %4148 = vmatprep.subr.mxu0 0.0
    %4149 = vmatpush1.xpose.msra.mxu0 0.0
    %4150 = vmatprep.subr.mxu0 0.0
    %4151 = vmatpush1.xpose.msra.mxu0 0.0
    %4152 = vmatprep.subr.mxu0 0.0
    %4153 = vmatpush1.xpose.msra.mxu0 0.0
    %4154 = vmatprep.subr.mxu0 0.0
    %4155 = vmatpush1.xpose.msra.mxu0 0.0
    %4156 = vmatprep.subr.mxu0 0.0
    %4157 = vmatpush1.xpose.msra.mxu0 0.0
    %4158 = vmatprep.subr.mxu0 0.0
    %4159 = vmatpush1.xpose.msra.mxu0 0.0
    %4160 = vmatprep.subr.mxu0 0.0
    %4161 = vmatpush1.xpose.msra.mxu0 0.0
    %4162 = vmatprep.subr.mxu0 0.0
    %4163 = vmatpush1.xpose.msra.mxu0 0.0
    %4164 = vmatprep.subr.mxu0 0.0
    %4165 = vmatpush1.xpose.msra.mxu0 0.0
    %4166 = vmatprep.subr.mxu0 0.0
    %4167 = vmatpush1.xpose.msra.mxu0 0.0
    %4168 = vmatprep.subr.mxu0 0.0
    %4169 = vmatpush1.xpose.msra.mxu0 0.0
    %4170 = vmatprep.subr.mxu0 0.0
    %4171 = vmatpush1.xpose.msra.mxu0 0.0
    %4172 = vmatprep.subr.mxu0 0.0
    %4173 = vmatpush1.xpose.msra.mxu0 0.0
    %4174 = vmatprep.subr.mxu0 0.0
    %4175 = vmatpush1.xpose.msra.mxu0 0.0
    %4176 = vmatprep.subr.mxu0 0.0
    %4177 = vmatpush1.xpose.msra.mxu0 0.0
    %4178 = vmatprep.subr.mxu0 0.0
    %4179 = vmatpush1.xpose.msra.mxu0 0.0
    %4180 = vmatprep.subr.mxu0 0.0
    %4181 = vmatpush1.xpose.msra.mxu0 0.0
    %4182 = vmatprep.subr.mxu0 0.0
    %4183 = vmatpush1.xpose.msra.mxu0 0.0
    %4184 = vmatprep.subr.mxu0 0.0
    %4185 = vmatpush1.xpose.msra.mxu0 0.0
    %4186 = vmatprep.subr.mxu0 0.0
    %4187 = vmatpush1.xpose.msra.mxu0 0.0
    %4188 = vmatprep.subr.mxu0 0.0
    %4189 = vmatpush1.xpose.msra.mxu0 0.0
    %4190 = vmatprep.subr.mxu0 0.0
    %4191 = vmatpush1.xpose.msra.mxu0 0.0
    %4192 = vmatprep.subr.mxu0 0.0
    %4193 = vmatpush1.xpose.msra.mxu0 0.0
    %4194 = vmatprep.subr.mxu0 0.0
    %4195 = vmatpush1.xpose.msra.mxu0 0.0
    %4196 = vmatprep.subr.mxu0 0.0
    %4197 = vmatpush1.xpose.msra.mxu0 0.0
    %4198 = vmatprep.subr.mxu0 0.0
    %4199 = vmatpush1.xpose.msra.mxu0 0.0
    %4200 = vmatprep.mubr.f32.mxu0 0.0
    %4201 = vmatmul.mubr.f32.gmra.mrb[0].mxu0 %v4131
    %v4202 = vpop.f32.mrb[0].mxu0
    %v4203 = vadd.f32 0.0, %v4202
    %v4204 = vpop.f32.mrb[0].mxu0
    %4205 = vdwg.mxu0
    %v4207 = vsel %vm630, %v3823, 0
    %v4210 = vsel %vm630, %v3139, 0
    %4212 = vmatprep.subr.mxu0 0.0
    %4213 = vmatpush1.xpose.msra.mxu0 %v4210
    %4214 = vmatprep.subr.mxu0 0.0
    %4215 = vmatpush1.xpose.msra.mxu0 0.0
    %4216 = vmatprep.subr.mxu0 0.0
    %4217 = vmatpush1.xpose.msra.mxu0 0.0
    %4218 = vmatprep.subr.mxu0 0.0
    %4219 = vmatpush1.xpose.msra.mxu0 0.0
    %4220 = vmatprep.subr.mxu0 0.0
    %4221 = vmatpush1.xpose.msra.mxu0 0.0
    %4222 = vmatprep.subr.mxu0 0.0
    %4223 = vmatpush1.xpose.msra.mxu0 0.0
    %4224 = vmatprep.subr.mxu0 0.0
    %4225 = vmatpush1.xpose.msra.mxu0 0.0
    %4226 = vmatprep.subr.mxu0 0.0
    %4227 = vmatpush1.xpose.msra.mxu0 0.0
    %4228 = vmatprep.subr.mxu0 0.0
    %4229 = vmatpush1.xpose.msra.mxu0 0.0
    %4230 = vmatprep.subr.mxu0 0.0
    %4231 = vmatpush1.xpose.msra.mxu0 0.0
    %4232 = vmatprep.subr.mxu0 0.0
    %4233 = vmatpush1.xpose.msra.mxu0 0.0
    %4234 = vmatprep.subr.mxu0 0.0
    %4235 = vmatpush1.xpose.msra.mxu0 0.0
    %4236 = vmatprep.subr.mxu0 0.0
    %4237 = vmatpush1.xpose.msra.mxu0 0.0
    %4238 = vmatprep.subr.mxu0 0.0
    %4239 = vmatpush1.xpose.msra.mxu0 0.0
    %4240 = vmatprep.subr.mxu0 0.0
    %4241 = vmatpush1.xpose.msra.mxu0 0.0
    %4242 = vmatprep.subr.mxu0 0.0
    %4243 = vmatpush1.xpose.msra.mxu0 0.0
    %4244 = vmatprep.subr.mxu0 0.0
    %4245 = vmatpush1.xpose.msra.mxu0 0.0
    %4246 = vmatprep.subr.mxu0 0.0
    %4247 = vmatpush1.xpose.msra.mxu0 0.0
    %4248 = vmatprep.subr.mxu0 0.0
    %4249 = vmatpush1.xpose.msra.mxu0 0.0
    %4250 = vmatprep.subr.mxu0 0.0
    %4251 = vmatpush1.xpose.msra.mxu0 0.0
    %4252 = vmatprep.subr.mxu0 0.0
    %4253 = vmatpush1.xpose.msra.mxu0 0.0
    %4254 = vmatprep.subr.mxu0 0.0
    %4255 = vmatpush1.xpose.msra.mxu0 0.0
    %4256 = vmatprep.subr.mxu0 0.0
    %4257 = vmatpush1.xpose.msra.mxu0 0.0
    %4258 = vmatprep.subr.mxu0 0.0
    %4259 = vmatpush1.xpose.msra.mxu0 0.0
    %4260 = vmatprep.subr.mxu0 0.0
    %4261 = vmatpush1.xpose.msra.mxu0 0.0
    %4262 = vmatprep.subr.mxu0 0.0
    %4263 = vmatpush1.xpose.msra.mxu0 0.0
    %4264 = vmatprep.subr.mxu0 0.0
    %4265 = vmatpush1.xpose.msra.mxu0 0.0
    %4266 = vmatprep.subr.mxu0 0.0
    %4267 = vmatpush1.xpose.msra.mxu0 0.0
    %4268 = vmatprep.subr.mxu0 0.0
    %4269 = vmatpush1.xpose.msra.mxu0 0.0
    %4270 = vmatprep.subr.mxu0 0.0
    %4271 = vmatpush1.xpose.msra.mxu0 0.0
    %4272 = vmatprep.subr.mxu0 0.0
    %4273 = vmatpush1.xpose.msra.mxu0 0.0
    %4274 = vmatprep.subr.mxu0 0.0
    %4275 = vmatpush1.xpose.msra.mxu0 0.0
    %4276 = vmatprep.mubr.f32.mxu0 0.0
    %4277 = vmatmul.mubr.f32.gmra.mrb[0].mxu0 %v4207
    %v4278 = vpop.f32.mrb[0].mxu0
    %v4279 = vadd.f32 0.0, %v4278
    %v4280 = vpop.f32.mrb[0].mxu0
    %4281 = vdwg.mxu0
    %v4283 = vsel %vm630, %v3824, 0
    %v4286 = vsel %vm630, %v3140, 0
    %4288 = vmatprep.subr.mxu0 0.0
    %4289 = vmatpush1.xpose.msra.mxu0 %v4286
    %4290 = vmatprep.subr.mxu0 0.0
    %4291 = vmatpush1.xpose.msra.mxu0 0.0
    %4292 = vmatprep.subr.mxu0 0.0
    %4293 = vmatpush1.xpose.msra.mxu0 0.0
    %4294 = vmatprep.subr.mxu0 0.0
    %4295 = vmatpush1.xpose.msra.mxu0 0.0
    %4296 = vmatprep.subr.mxu0 0.0
    %4297 = vmatpush1.xpose.msra.mxu0 0.0
    %4298 = vmatprep.subr.mxu0 0.0
    %4299 = vmatpush1.xpose.msra.mxu0 0.0
    %4300 = vmatprep.subr.mxu0 0.0
    %4301 = vmatpush1.xpose.msra.mxu0 0.0
    %4302 = vmatprep.subr.mxu0 0.0
    %4303 = vmatpush1.xpose.msra.mxu0 0.0
    %4304 = vmatprep.subr.mxu0 0.0
    %4305 = vmatpush1.xpose.msra.mxu0 0.0
    %4306 = vmatprep.subr.mxu0 0.0
    %4307 = vmatpush1.xpose.msra.mxu0 0.0
    %4308 = vmatprep.subr.mxu0 0.0
    %4309 = vmatpush1.xpose.msra.mxu0 0.0
    %4310 = vmatprep.subr.mxu0 0.0
    %4311 = vmatpush1.xpose.msra.mxu0 0.0
    %4312 = vmatprep.subr.mxu0 0.0
    %4313 = vmatpush1.xpose.msra.mxu0 0.0
    %4314 = vmatprep.subr.mxu0 0.0
    %4315 = vmatpush1.xpose.msra.mxu0 0.0
    %4316 = vmatprep.subr.mxu0 0.0
    %4317 = vmatpush1.xpose.msra.mxu0 0.0
    %4318 = vmatprep.subr.mxu0 0.0
    %4319 = vmatpush1.xpose.msra.mxu0 0.0
    %4320 = vmatprep.subr.mxu0 0.0
    %4321 = vmatpush1.xpose.msra.mxu0 0.0
    %4322 = vmatprep.subr.mxu0 0.0
    %4323 = vmatpush1.xpose.msra.mxu0 0.0
    %4324 = vmatprep.subr.mxu0 0.0
    %4325 = vmatpush1.xpose.msra.mxu0 0.0
    %4326 = vmatprep.subr.mxu0 0.0
    %4327 = vmatpush1.xpose.msra.mxu0 0.0
    %4328 = vmatprep.subr.mxu0 0.0
    %4329 = vmatpush1.xpose.msra.mxu0 0.0
    %4330 = vmatprep.subr.mxu0 0.0
    %4331 = vmatpush1.xpose.msra.mxu0 0.0
    %4332 = vmatprep.subr.mxu0 0.0
    %4333 = vmatpush1.xpose.msra.mxu0 0.0
    %4334 = vmatprep.subr.mxu0 0.0
    %4335 = vmatpush1.xpose.msra.mxu0 0.0
    %4336 = vmatprep.subr.mxu0 0.0
    %4337 = vmatpush1.xpose.msra.mxu0 0.0
    %4338 = vmatprep.subr.mxu0 0.0
    %4339 = vmatpush1.xpose.msra.mxu0 0.0
    %4340 = vmatprep.subr.mxu0 0.0
    %4341 = vmatpush1.xpose.msra.mxu0 0.0
    %4342 = vmatprep.subr.mxu0 0.0
    %4343 = vmatpush1.xpose.msra.mxu0 0.0
    %4344 = vmatprep.subr.mxu0 0.0
    %4345 = vmatpush1.xpose.msra.mxu0 0.0
    %4346 = vmatprep.subr.mxu0 0.0
    %4347 = vmatpush1.xpose.msra.mxu0 0.0
    %4348 = vmatprep.subr.mxu0 0.0
    %4349 = vmatpush1.xpose.msra.mxu0 0.0
    %4350 = vmatprep.subr.mxu0 0.0
    %4351 = vmatpush1.xpose.msra.mxu0 0.0
    %4352 = vmatprep.mubr.f32.mxu0 0.0
    %4353 = vmatmul.mubr.f32.gmra.mrb[0].mxu0 %v4283
    %v4354 = vpop.f32.mrb[0].mxu0
    %v4355 = vadd.f32 0.0, %v4354
    %v4356 = vpop.f32.mrb[0].mxu0
    %4357 = vdwg.mxu0
    %v4359 = vsel %vm630, %v3825, 0
    %v4362 = vsel %vm630, %v3141, 0
    %4364 = vmatprep.subr.mxu0 0.0
    %4365 = vmatpush1.xpose.msra.mxu0 %v4362
    %4366 = vmatprep.subr.mxu0 0.0
    %4367 = vmatpush1.xpose.msra.mxu0 0.0
    %4368 = vmatprep.subr.mxu0 0.0
    %4369 = vmatpush1.xpose.msra.mxu0 0.0
    %4370 = vmatprep.subr.mxu0 0.0
    %4371 = vmatpush1.xpose.msra.mxu0 0.0
    %4372 = vmatprep.subr.mxu0 0.0
    %4373 = vmatpush1.xpose.msra.mxu0 0.0
    %4374 = vmatprep.subr.mxu0 0.0
    %4375 = vmatpush1.xpose.msra.mxu0 0.0
    %4376 = vmatprep.subr.mxu0 0.0
    %4377 = vmatpush1.xpose.msra.mxu0 0.0
    %4378 = vmatprep.subr.mxu0 0.0
    %4379 = vmatpush1.xpose.msra.mxu0 0.0
    %4380 = vmatprep.subr.mxu0 0.0
    %4381 = vmatpush1.xpose.msra.mxu0 0.0
    %4382 = vmatprep.subr.mxu0 0.0
    %4383 = vmatpush1.xpose.msra.mxu0 0.0
    %4384 = vmatprep.subr.mxu0 0.0
    %4385 = vmatpush1.xpose.msra.mxu0 0.0
    %4386 = vmatprep.subr.mxu0 0.0
    %4387 = vmatpush1.xpose.msra.mxu0 0.0
    %4388 = vmatprep.subr.mxu0 0.0
    %4389 = vmatpush1.xpose.msra.mxu0 0.0
    %4390 = vmatprep.subr.mxu0 0.0
    %4391 = vmatpush1.xpose.msra.mxu0 0.0
    %4392 = vmatprep.subr.mxu0 0.0
    %4393 = vmatpush1.xpose.msra.mxu0 0.0
    %4394 = vmatprep.subr.mxu0 0.0
    %4395 = vmatpush1.xpose.msra.mxu0 0.0
    %4396 = vmatprep.subr.mxu0 0.0
    %4397 = vmatpush1.xpose.msra.mxu0 0.0
    %4398 = vmatprep.subr.mxu0 0.0
    %4399 = vmatpush1.xpose.msra.mxu0 0.0
    %4400 = vmatprep.subr.mxu0 0.0
    %4401 = vmatpush1.xpose.msra.mxu0 0.0
    %4402 = vmatprep.subr.mxu0 0.0
    %4403 = vmatpush1.xpose.msra.mxu0 0.0
    %4404 = vmatprep.subr.mxu0 0.0
    %4405 = vmatpush1.xpose.msra.mxu0 0.0
    %4406 = vmatprep.subr.mxu0 0.0
    %4407 = vmatpush1.xpose.msra.mxu0 0.0
    %4408 = vmatprep.subr.mxu0 0.0
    %4409 = vmatpush1.xpose.msra.mxu0 0.0
    %4410 = vmatprep.subr.mxu0 0.0
    %4411 = vmatpush1.xpose.msra.mxu0 0.0
    %4412 = vmatprep.subr.mxu0 0.0
    %4413 = vmatpush1.xpose.msra.mxu0 0.0
    %4414 = vmatprep.subr.mxu0 0.0
    %4415 = vmatpush1.xpose.msra.mxu0 0.0
    %4416 = vmatprep.subr.mxu0 0.0
    %4417 = vmatpush1.xpose.msra.mxu0 0.0
    %4418 = vmatprep.subr.mxu0 0.0
    %4419 = vmatpush1.xpose.msra.mxu0 0.0
    %4420 = vmatprep.subr.mxu0 0.0
    %4421 = vmatpush1.xpose.msra.mxu0 0.0
    %4422 = vmatprep.subr.mxu0 0.0
    %4423 = vmatpush1.xpose.msra.mxu0 0.0
    %4424 = vmatprep.subr.mxu0 0.0
    %4425 = vmatpush1.xpose.msra.mxu0 0.0
    %4426 = vmatprep.subr.mxu0 0.0
    %4427 = vmatpush1.xpose.msra.mxu0 0.0
    %4428 = vmatprep.mubr.f32.mxu0 0.0
    %4429 = vmatmul.mubr.f32.gmra.mrb[0].mxu0 %v4359
    %v4430 = vpop.f32.mrb[0].mxu0
    %v4431 = vadd.f32 0.0, %v4430
    %v4432 = vpop.f32.mrb[0].mxu0
    %4433 = vdwg.mxu0
    %4434 = vxpose.xlu0.b32.start [1/16] %v3899, 128
    %4435 = vxpose.xlu0.b32.cont [2/16] 0.0, 128
    %4436 = vxpose.xlu0.b32.cont [3/16] 0.0, 128
    %4437 = vxpose.xlu0.b32.cont [4/16] 0.0, 128
    %4438 = vxpose.xlu0.b32.cont [5/16] 0.0, 128
    %4439 = vxpose.xlu0.b32.cont [6/16] 0.0, 128
    %4440 = vxpose.xlu0.b32.cont [7/16] 0.0, 128
    %4441 = vxpose.xlu0.b32.cont [8/16] 0.0, 128
    %4442 = vxpose.xlu0.b32.cont [9/16] 0.0, 128
    %4443 = vxpose.xlu0.b32.cont [10/16] 0.0, 128
    %4444 = vxpose.xlu0.b32.cont [11/16] 0.0, 128
    %4445 = vxpose.xlu0.b32.cont [12/16] 0.0, 128
    %4446 = vxpose.xlu0.b32.cont [13/16] 0.0, 128
    %4447 = vxpose.xlu0.b32.cont [14/16] 0.0, 128
    %4448 = vxpose.xlu0.b32.cont [15/16] 0.0, 128
    %4449 = vxpose.xlu0.b32.end [16/16] 0.0, 128
    %v4450 = vpop.trf.xlu0
    %v4451 = vpop.trf.xlu0
    %v4452 = vpop.trf.xlu0
    %v4453 = vpop.trf.xlu0
    %v4454 = vpop.trf.xlu0
    %v4455 = vpop.trf.xlu0
    %v4456 = vpop.trf.xlu0
    %v4457 = vpop.trf.xlu0
    %v4458 = vpop.trf.xlu0
    %v4459 = vpop.trf.xlu0
    %v4460 = vpop.trf.xlu0
    %v4461 = vpop.trf.xlu0
    %v4462 = vpop.trf.xlu0
    %v4463 = vpop.trf.xlu0
    %v4464 = vpop.trf.xlu0
    %v4465 = vpop.trf.xlu0
    %4466 = vxpose.xlu0.b32.start [1/16] %v3975, 128
    %4467 = vxpose.xlu0.b32.cont [2/16] 0.0, 128
    %4468 = vxpose.xlu0.b32.cont [3/16] 0.0, 128
    %4469 = vxpose.xlu0.b32.cont [4/16] 0.0, 128
    %4470 = vxpose.xlu0.b32.cont [5/16] 0.0, 128
    %4471 = vxpose.xlu0.b32.cont [6/16] 0.0, 128
    %4472 = vxpose.xlu0.b32.cont [7/16] 0.0, 128
    %4473 = vxpose.xlu0.b32.cont [8/16] 0.0, 128
    %4474 = vxpose.xlu0.b32.cont [9/16] 0.0, 128
    %4475 = vxpose.xlu0.b32.cont [10/16] 0.0, 128
    %4476 = vxpose.xlu0.b32.cont [11/16] 0.0, 128
    %4477 = vxpose.xlu0.b32.cont [12/16] 0.0, 128
    %4478 = vxpose.xlu0.b32.cont [13/16] 0.0, 128
    %4479 = vxpose.xlu0.b32.cont [14/16] 0.0, 128
    %4480 = vxpose.xlu0.b32.cont [15/16] 0.0, 128
    %4481 = vxpose.xlu0.b32.end [16/16] 0.0, 128
    %v4482 = vpop.trf.xlu0
    %v4483 = vpop.trf.xlu0
    %v4484 = vpop.trf.xlu0
    %v4485 = vpop.trf.xlu0
    %v4486 = vpop.trf.xlu0
    %v4487 = vpop.trf.xlu0
    %v4488 = vpop.trf.xlu0
    %v4489 = vpop.trf.xlu0
    %v4490 = vpop.trf.xlu0
    %v4491 = vpop.trf.xlu0
    %v4492 = vpop.trf.xlu0
    %v4493 = vpop.trf.xlu0
    %v4494 = vpop.trf.xlu0
    %v4495 = vpop.trf.xlu0
    %v4496 = vpop.trf.xlu0
    %v4497 = vpop.trf.xlu0
    %4498 = vxpose.xlu0.b32.start [1/16] %v4051, 128
    %4499 = vxpose.xlu0.b32.cont [2/16] 0.0, 128
    %4500 = vxpose.xlu0.b32.cont [3/16] 0.0, 128
    %4501 = vxpose.xlu0.b32.cont [4/16] 0.0, 128
    %4502 = vxpose.xlu0.b32.cont [5/16] 0.0, 128
    %4503 = vxpose.xlu0.b32.cont [6/16] 0.0, 128
    %4504 = vxpose.xlu0.b32.cont [7/16] 0.0, 128
    %4505 = vxpose.xlu0.b32.cont [8/16] 0.0, 128
    %4506 = vxpose.xlu0.b32.cont [9/16] 0.0, 128
    %4507 = vxpose.xlu0.b32.cont [10/16] 0.0, 128
    %4508 = vxpose.xlu0.b32.cont [11/16] 0.0, 128
    %4509 = vxpose.xlu0.b32.cont [12/16] 0.0, 128
    %4510 = vxpose.xlu0.b32.cont [13/16] 0.0, 128
    %4511 = vxpose.xlu0.b32.cont [14/16] 0.0, 128
    %4512 = vxpose.xlu0.b32.cont [15/16] 0.0, 128
    %4513 = vxpose.xlu0.b32.end [16/16] 0.0, 128
    %v4514 = vpop.trf.xlu0
    %v4515 = vpop.trf.xlu0
    %v4516 = vpop.trf.xlu0
    %v4517 = vpop.trf.xlu0
    %v4518 = vpop.trf.xlu0
    %v4519 = vpop.trf.xlu0
    %v4520 = vpop.trf.xlu0
    %v4521 = vpop.trf.xlu0
    %v4522 = vpop.trf.xlu0
    %v4523 = vpop.trf.xlu0
    %v4524 = vpop.trf.xlu0
    %v4525 = vpop.trf.xlu0
    %v4526 = vpop.trf.xlu0
    %v4527 = vpop.trf.xlu0
    %v4528 = vpop.trf.xlu0
    %v4529 = vpop.trf.xlu0
    %4530 = vxpose.xlu0.b32.start [1/16] %v4127, 128
    %4531 = vxpose.xlu0.b32.cont [2/16] 0.0, 128
    %4532 = vxpose.xlu0.b32.cont [3/16] 0.0, 128
    %4533 = vxpose.xlu0.b32.cont [4/16] 0.0, 128
    %4534 = vxpose.xlu0.b32.cont [5/16] 0.0, 128
    %4535 = vxpose.xlu0.b32.cont [6/16] 0.0, 128
    %4536 = vxpose.xlu0.b32.cont [7/16] 0.0, 128
    %4537 = vxpose.xlu0.b32.cont [8/16] 0.0, 128
    %4538 = vxpose.xlu0.b32.cont [9/16] 0.0, 128
    %4539 = vxpose.xlu0.b32.cont [10/16] 0.0, 128
    %4540 = vxpose.xlu0.b32.cont [11/16] 0.0, 128
    %4541 = vxpose.xlu0.b32.cont [12/16] 0.0, 128
    %4542 = vxpose.xlu0.b32.cont [13/16] 0.0, 128
    %4543 = vxpose.xlu0.b32.cont [14/16] 0.0, 128
    %4544 = vxpose.xlu0.b32.cont [15/16] 0.0, 128
    %4545 = vxpose.xlu0.b32.end [16/16] 0.0, 128
    %v4546 = vpop.trf.xlu0
    %v4547 = vpop.trf.xlu0
    %v4548 = vpop.trf.xlu0
    %v4549 = vpop.trf.xlu0
    %v4550 = vpop.trf.xlu0
    %v4551 = vpop.trf.xlu0
    %v4552 = vpop.trf.xlu0
    %v4553 = vpop.trf.xlu0
    %v4554 = vpop.trf.xlu0
    %v4555 = vpop.trf.xlu0
    %v4556 = vpop.trf.xlu0
    %v4557 = vpop.trf.xlu0
    %v4558 = vpop.trf.xlu0
    %v4559 = vpop.trf.xlu0
    %v4560 = vpop.trf.xlu0
    %v4561 = vpop.trf.xlu0
    %4562 = vxpose.xlu0.b32.start [1/16] %v4203, 128
    %4563 = vxpose.xlu0.b32.cont [2/16] 0.0, 128
    %4564 = vxpose.xlu0.b32.cont [3/16] 0.0, 128
    %4565 = vxpose.xlu0.b32.cont [4/16] 0.0, 128
    %4566 = vxpose.xlu0.b32.cont [5/16] 0.0, 128
    %4567 = vxpose.xlu0.b32.cont [6/16] 0.0, 128
    %4568 = vxpose.xlu0.b32.cont [7/16] 0.0, 128
    %4569 = vxpose.xlu0.b32.cont [8/16] 0.0, 128
    %4570 = vxpose.xlu0.b32.cont [9/16] 0.0, 128
    %4571 = vxpose.xlu0.b32.cont [10/16] 0.0, 128
    %4572 = vxpose.xlu0.b32.cont [11/16] 0.0, 128
    %4573 = vxpose.xlu0.b32.cont [12/16] 0.0, 128
    %4574 = vxpose.xlu0.b32.cont [13/16] 0.0, 128
    %4575 = vxpose.xlu0.b32.cont [14/16] 0.0, 128
    %4576 = vxpose.xlu0.b32.cont [15/16] 0.0, 128
    %4577 = vxpose.xlu0.b32.end [16/16] 0.0, 128
    %v4578 = vpop.trf.xlu0
    %v4579 = vpop.trf.xlu0
    %v4580 = vpop.trf.xlu0
    %v4581 = vpop.trf.xlu0
    %v4582 = vpop.trf.xlu0
    %v4583 = vpop.trf.xlu0
    %v4584 = vpop.trf.xlu0
    %v4585 = vpop.trf.xlu0
    %v4586 = vpop.trf.xlu0
    %v4587 = vpop.trf.xlu0
    %v4588 = vpop.trf.xlu0
    %v4589 = vpop.trf.xlu0
    %v4590 = vpop.trf.xlu0
    %v4591 = vpop.trf.xlu0
    %v4592 = vpop.trf.xlu0
    %v4593 = vpop.trf.xlu0
    %4594 = vxpose.xlu0.b32.start [1/16] %v4279, 128
    %4595 = vxpose.xlu0.b32.cont [2/16] 0.0, 128
    %4596 = vxpose.xlu0.b32.cont [3/16] 0.0, 128
    %4597 = vxpose.xlu0.b32.cont [4/16] 0.0, 128
    %4598 = vxpose.xlu0.b32.cont [5/16] 0.0, 128
    %4599 = vxpose.xlu0.b32.cont [6/16] 0.0, 128
    %4600 = vxpose.xlu0.b32.cont [7/16] 0.0, 128
    %4601 = vxpose.xlu0.b32.cont [8/16] 0.0, 128
    %4602 = vxpose.xlu0.b32.cont [9/16] 0.0, 128
    %4603 = vxpose.xlu0.b32.cont [10/16] 0.0, 128
    %4604 = vxpose.xlu0.b32.cont [11/16] 0.0, 128
    %4605 = vxpose.xlu0.b32.cont [12/16] 0.0, 128
    %4606 = vxpose.xlu0.b32.cont [13/16] 0.0, 128
    %4607 = vxpose.xlu0.b32.cont [14/16] 0.0, 128
    %4608 = vxpose.xlu0.b32.cont [15/16] 0.0, 128
    %4609 = vxpose.xlu0.b32.end [16/16] 0.0, 128
    %v4610 = vpop.trf.xlu0
    %v4611 = vpop.trf.xlu0
    %v4612 = vpop.trf.xlu0
    %v4613 = vpop.trf.xlu0
    %v4614 = vpop.trf.xlu0
    %v4615 = vpop.trf.xlu0
    %v4616 = vpop.trf.xlu0
    %v4617 = vpop.trf.xlu0
    %v4618 = vpop.trf.xlu0
    %v4619 = vpop.trf.xlu0
    %v4620 = vpop.trf.xlu0
    %v4621 = vpop.trf.xlu0
    %v4622 = vpop.trf.xlu0
    %v4623 = vpop.trf.xlu0
    %v4624 = vpop.trf.xlu0
    %v4625 = vpop.trf.xlu0
    %4626 = vxpose.xlu0.b32.start [1/16] %v4355, 128
    %4627 = vxpose.xlu0.b32.cont [2/16] 0.0, 128
    %4628 = vxpose.xlu0.b32.cont [3/16] 0.0, 128
    %4629 = vxpose.xlu0.b32.cont [4/16] 0.0, 128
    %4630 = vxpose.xlu0.b32.cont [5/16] 0.0, 128
    %4631 = vxpose.xlu0.b32.cont [6/16] 0.0, 128
    %4632 = vxpose.xlu0.b32.cont [7/16] 0.0, 128
    %4633 = vxpose.xlu0.b32.cont [8/16] 0.0, 128
    %4634 = vxpose.xlu0.b32.cont [9/16] 0.0, 128
    %4635 = vxpose.xlu0.b32.cont [10/16] 0.0, 128
    %4636 = vxpose.xlu0.b32.cont [11/16] 0.0, 128
    %4637 = vxpose.xlu0.b32.cont [12/16] 0.0, 128
    %4638 = vxpose.xlu0.b32.cont [13/16] 0.0, 128
    %4639 = vxpose.xlu0.b32.cont [14/16] 0.0, 128
    %4640 = vxpose.xlu0.b32.cont [15/16] 0.0, 128
    %4641 = vxpose.xlu0.b32.end [16/16] 0.0, 128
    %v4642 = vpop.trf.xlu0
    %v4643 = vpop.trf.xlu0
    %v4644 = vpop.trf.xlu0
    %v4645 = vpop.trf.xlu0
    %v4646 = vpop.trf.xlu0
    %v4647 = vpop.trf.xlu0
    %v4648 = vpop.trf.xlu0
    %v4649 = vpop.trf.xlu0
    %v4650 = vpop.trf.xlu0
    %v4651 = vpop.trf.xlu0
    %v4652 = vpop.trf.xlu0
    %v4653 = vpop.trf.xlu0
    %v4654 = vpop.trf.xlu0
    %v4655 = vpop.trf.xlu0
    %v4656 = vpop.trf.xlu0
    %v4657 = vpop.trf.xlu0
    %4658 = vxpose.xlu0.b32.start [1/16] %v4431, 128
    %4659 = vxpose.xlu0.b32.cont [2/16] 0.0, 128
    %4660 = vxpose.xlu0.b32.cont [3/16] 0.0, 128
    %4661 = vxpose.xlu0.b32.cont [4/16] 0.0, 128
    %4662 = vxpose.xlu0.b32.cont [5/16] 0.0, 128
    %4663 = vxpose.xlu0.b32.cont [6/16] 0.0, 128
    %4664 = vxpose.xlu0.b32.cont [7/16] 0.0, 128
    %4665 = vxpose.xlu0.b32.cont [8/16] 0.0, 128
    %4666 = vxpose.xlu0.b32.cont [9/16] 0.0, 128
    %4667 = vxpose.xlu0.b32.cont [10/16] 0.0, 128
    %4668 = vxpose.xlu0.b32.cont [11/16] 0.0, 128
    %4669 = vxpose.xlu0.b32.cont [12/16] 0.0, 128
    %4670 = vxpose.xlu0.b32.cont [13/16] 0.0, 128
    %4671 = vxpose.xlu0.b32.cont [14/16] 0.0, 128
    %4672 = vxpose.xlu0.b32.cont [15/16] 0.0, 128
    %4673 = vxpose.xlu0.b32.end [16/16] 0.0, 128
    %v4674 = vpop.trf.xlu0
    %v4675 = vpop.trf.xlu0
    %v4676 = vpop.trf.xlu0
    %v4677 = vpop.trf.xlu0
    %v4678 = vpop.trf.xlu0
    %v4679 = vpop.trf.xlu0
    %v4680 = vpop.trf.xlu0
    %v4681 = vpop.trf.xlu0
    %v4682 = vpop.trf.xlu0
    %v4683 = vpop.trf.xlu0
    %v4684 = vpop.trf.xlu0
    %v4685 = vpop.trf.xlu0
    %v4686 = vpop.trf.xlu0
    %v4687 = vpop.trf.xlu0
    %v4688 = vpop.trf.xlu0
    %v4689 = vpop.trf.xlu0
    %4690 = vxpose.xlu0.b32.start [1/16] %v4450, 128
    %4691 = vxpose.xlu0.b32.cont [2/16] %v4482, 128
    %4692 = vxpose.xlu0.b32.cont [3/16] %v4514, 128
    %4693 = vxpose.xlu0.b32.cont [4/16] %v4546, 128
    %4694 = vxpose.xlu0.b32.cont [5/16] 0.0, 128
    %4695 = vxpose.xlu0.b32.cont [6/16] 0.0, 128
    %4696 = vxpose.xlu0.b32.cont [7/16] 0.0, 128
    %4697 = vxpose.xlu0.b32.cont [8/16] 0.0, 128
    %4698 = vxpose.xlu0.b32.cont [9/16] 0.0, 128
    %4699 = vxpose.xlu0.b32.cont [10/16] 0.0, 128
    %4700 = vxpose.xlu0.b32.cont [11/16] 0.0, 128
    %4701 = vxpose.xlu0.b32.cont [12/16] 0.0, 128
    %4702 = vxpose.xlu0.b32.cont [13/16] 0.0, 128
    %4703 = vxpose.xlu0.b32.cont [14/16] 0.0, 128
    %4704 = vxpose.xlu0.b32.cont [15/16] 0.0, 128
    %4705 = vxpose.xlu0.b32.end [16/16] 0.0, 128
    %v4706 = vpop.trf.xlu0
    %v4707 = vpop.trf.xlu0
    %v4708 = vpop.trf.xlu0
    %v4709 = vpop.trf.xlu0
    %v4710 = vpop.trf.xlu0
    %v4711 = vpop.trf.xlu0
    %v4712 = vpop.trf.xlu0
    %v4713 = vpop.trf.xlu0
    %v4714 = vpop.trf.xlu0
    %v4715 = vpop.trf.xlu0
    %v4716 = vpop.trf.xlu0
    %v4717 = vpop.trf.xlu0
    %v4718 = vpop.trf.xlu0
    %v4719 = vpop.trf.xlu0
    %v4720 = vpop.trf.xlu0
    %v4721 = vpop.trf.xlu0
    %4722 = vxpose.xlu0.b32.start [1/16] %v4578, 128
    %4723 = vxpose.xlu0.b32.cont [2/16] %v4610, 128
    %4724 = vxpose.xlu0.b32.cont [3/16] %v4642, 128
    %4725 = vxpose.xlu0.b32.cont [4/16] %v4674, 128
    %4726 = vxpose.xlu0.b32.cont [5/16] 0.0, 128
    %4727 = vxpose.xlu0.b32.cont [6/16] 0.0, 128
    %4728 = vxpose.xlu0.b32.cont [7/16] 0.0, 128
    %4729 = vxpose.xlu0.b32.cont [8/16] 0.0, 128
    %4730 = vxpose.xlu0.b32.cont [9/16] 0.0, 128
    %4731 = vxpose.xlu0.b32.cont [10/16] 0.0, 128
    %4732 = vxpose.xlu0.b32.cont [11/16] 0.0, 128
    %4733 = vxpose.xlu0.b32.cont [12/16] 0.0, 128
    %4734 = vxpose.xlu0.b32.cont [13/16] 0.0, 128
    %4735 = vxpose.xlu0.b32.cont [14/16] 0.0, 128
    %4736 = vxpose.xlu0.b32.cont [15/16] 0.0, 128
    %4737 = vxpose.xlu0.b32.end [16/16] 0.0, 128
    %v4738 = vpop.trf.xlu0
    %v4739 = vpop.trf.xlu0
    %v4740 = vpop.trf.xlu0
    %v4741 = vpop.trf.xlu0
    %v4742 = vpop.trf.xlu0
    %v4743 = vpop.trf.xlu0
    %v4744 = vpop.trf.xlu0
    %v4745 = vpop.trf.xlu0
    %v4746 = vpop.trf.xlu0
    %v4747 = vpop.trf.xlu0
    %v4748 = vpop.trf.xlu0
    %v4749 = vpop.trf.xlu0
    %v4750 = vpop.trf.xlu0
    %v4751 = vpop.trf.xlu0
    %v4752 = vpop.trf.xlu0
    %v4753 = vpop.trf.xlu0
    %s4754 = scalar_lea.vmem %s3, 32
    %v4755 = vld [vmem:[%s4754] sm:$0xff]
    %v4756 = vld [vmem:[%s4754 + $0x8] sm:$0xff]
    %v4757 = vld [vmem:[%s4754 + $0x10] sm:$0xff]
    %v4758 = vld [vmem:[%s4754 + $0x18] sm:$0xff]
    %v4759 = vlaneseq
    %v4760 = vshrl.u32 %v4759, 7
    %v4761 = vsub.s32 4, %v4760
    %v4762 = vrot.slane %v2559, %v4761
    %v4764 = vsel %vm36, %v4706, 0
    %v4767 = vsel %vm36, %v4738, 0
    %4769 = vmatprep.subr.mxu0 0.0
    %4770 = vmatpush1.msra.mxu0 %v4755
    %4771 = vmatprep.subr.mxu0 0.0
    %4772 = vmatpush1.msra.mxu0 %v4756
    %4773 = vmatprep.subr.mxu0 0.0
    %4774 = vmatpush1.msra.mxu0 %v4757
    %4775 = vmatprep.subr.mxu0 0.0
    %4776 = vmatpush1.msra.mxu0 %v4758
    %4777 = vmatprep.subr.mxu0 0.0
    %4778 = vmatpush1.msra.mxu0 0.0
    %4779 = vmatprep.subr.mxu0 0.0
    %4780 = vmatpush1.msra.mxu0 0.0
    %4781 = vmatprep.subr.mxu0 0.0
    %4782 = vmatpush1.msra.mxu0 0.0
    %4783 = vmatprep.subr.mxu0 0.0
    %4784 = vmatpush1.msra.mxu0 0.0
    %4785 = vmatprep.subr.mxu0 0.0
    %4786 = vmatpush1.msra.mxu0 0.0
    %4787 = vmatprep.subr.mxu0 0.0
    %4788 = vmatpush1.msra.mxu0 0.0
    %4789 = vmatprep.subr.mxu0 0.0
    %4790 = vmatpush1.msra.mxu0 0.0
    %4791 = vmatprep.subr.mxu0 0.0
    %4792 = vmatpush1.msra.mxu0 0.0
    %4793 = vmatprep.subr.mxu0 0.0
    %4794 = vmatpush1.msra.mxu0 0.0
    %4795 = vmatprep.subr.mxu0 0.0
    %4796 = vmatpush1.msra.mxu0 0.0
    %4797 = vmatprep.subr.mxu0 0.0
    %4798 = vmatpush1.msra.mxu0 0.0
    %4799 = vmatprep.subr.mxu0 0.0
    %4800 = vmatpush1.msra.mxu0 0.0
    %4801 = vmatprep.subr.mxu0 0.0
    %4802 = vmatpush1.msra.mxu0 0.0
    %4803 = vmatprep.subr.mxu0 0.0
    %4804 = vmatpush1.msra.mxu0 0.0
    %4805 = vmatprep.subr.mxu0 0.0
    %4806 = vmatpush1.msra.mxu0 0.0
    %4807 = vmatprep.subr.mxu0 0.0
    %4808 = vmatpush1.msra.mxu0 0.0
    %4809 = vmatprep.subr.mxu0 0.0
    %4810 = vmatpush1.msra.mxu0 0.0
    %4811 = vmatprep.subr.mxu0 0.0
    %4812 = vmatpush1.msra.mxu0 0.0
    %4813 = vmatprep.subr.mxu0 0.0
    %4814 = vmatpush1.msra.mxu0 0.0
    %4815 = vmatprep.subr.mxu0 0.0
    %4816 = vmatpush1.msra.mxu0 0.0
    %4817 = vmatprep.subr.mxu0 0.0
    %4818 = vmatpush1.msra.mxu0 0.0
    %4819 = vmatprep.subr.mxu0 0.0
    %4820 = vmatpush1.msra.mxu0 0.0
    %4821 = vmatprep.subr.mxu0 0.0
    %4822 = vmatpush1.msra.mxu0 0.0
    %4823 = vmatprep.subr.mxu0 0.0
    %4824 = vmatpush1.msra.mxu0 0.0
    %4825 = vmatprep.subr.mxu0 0.0
    %4826 = vmatpush1.msra.mxu0 0.0
    %4827 = vmatprep.subr.mxu0 0.0
    %4828 = vmatpush1.msra.mxu0 0.0
    %4829 = vmatprep.subr.mxu0 0.0
    %4830 = vmatpush1.msra.mxu0 0.0
    %4831 = vmatprep.subr.mxu0 0.0
    %4832 = vmatpush1.msra.mxu0 0.0
    %4833 = vmatprep.mubr.f32.mxu0 0.0
    %4834 = vmatmul.mubr.f32.gmra.mrb[0].mxu0 %v4764
    %v4835 = vpop.f32.mrb[0].mxu0
    %v4836 = vadd.f32 %v4762, %v4835
    %v4837 = vpop.f32.mrb[0].mxu0
    %4838 = vmatprep.mubr.f32.mxu0 0.0
    %4839 = vmatmul.mubr.f32.gmra.mrb[0].mxu0 %v4767
    %v4840 = vpop.f32.mrb[0].mxu0
    %v4841 = vadd.f32 %v4762, %v4840
    %v4842 = vpop.f32.mrb[0].mxu0
    %4843 = vdwg.mxu0
    %v4844 = vadd.f32 %v4836, %v2556
    %v4845 = vadd.f32 %v4841, %v2557
    %v4846 = vsel %vm36, %v4844, 0.0
    %4847 = vadd.xlane.f32.xlu0 %v4846
    %v4848 = vpop.xlane.xlu0 %4847
    %v4849 = vsel %vm36, %v4845, 0.0
    %4850 = vadd.xlane.f32.xlu0 %v4849
    %v4851 = vpop.xlane.xlu0 %4850
    %v4852 = vmul.f32 %v4848, %v43
    %v4853 = vmul.f32 %v4851, %v43
    %v4854 = vsub.f32 %v4844, %v4852
    %v4855 = vsub.f32 %v4845, %v4853
    %v4856 = vmul.f32 %v4854, %v4854
    %v4857 = vmul.f32 %v4855, %v4855
    %v4858 = vsel %vm36, %v4856, 0.0
    %4859 = vadd.xlane.f32.xlu0 %v4858
    %v4860 = vpop.xlane.xlu0 %4859
    %v4861 = vsel %vm36, %v4857, 0.0
    %4862 = vadd.xlane.f32.xlu0 %v4861
    %v4863 = vpop.xlane.xlu0 %4862
    %v4864 = vmul.f32 %v4860, %v43
    %v4865 = vmul.f32 %v4863, %v43
    %v4866 = vadd.f32 %v4864, 1e-06
    %v4867 = vadd.f32 %v4865, 1e-06
    %v4868 = vrsqrt.pop %v4866
    %v4869 = vrsqrt.pop %v4867
    %v4870 = vmul.f32 %v4854, %v4868
    %v4871 = vmul.f32 %v4855, %v4869
    %v4872 = vlaneseq
    %v4873 = vshrl.u32 %v4872, 7
    %v4874 = vsub.s32 2, %v4873
    %v4875 = vrot.slane %v2559, %v4874
    %v4876 = vmul.f32 %v4870, %v4875
    %v4877 = vmul.f32 %v4871, %v4875
    %v4878 = vlaneseq
    %v4879 = vshrl.u32 %v4878, 7
    %v4880 = vsub.s32 3, %v4879
    %v4881 = vrot.slane %v2559, %v4880
    %v4882 = vadd.f32 %v4876, %v4881
    %v4883 = vadd.f32 %v4877, %v4881
    %s4884 = scalar_lea.vmem %s4, 32
    %v4885 = vld [vmem:[%s4884] sm:$0xff]
    %v4886 = vld [vmem:[%s4884 + $0x8] sm:$0xff]
    %v4887 = vld [vmem:[%s4884 + $0x10] sm:$0xff]
    %v4888 = vld [vmem:[%s4884 + $0x18] sm:$0xff]
    %s4889 = scalar_lea.vmem %s5, 1
    %v4890 = vld [vmem:[%s4889] sm:$0x1]
    %v4892 = vlaneseq
    %v4893 = vshrl.u32 %v4892, 7
    %v4894 = vsub.s32 0, %v4893
    %v4895 = vrot.slane %v4890, %v4894
    %v4898 = vsel %vm36, %v4882, 0
    %v4901 = vsel %vm36, %v4883, 0
    %4903 = vmatprep.subr.mxu0 0.0
    %4904 = vmatpush1.msra.mxu0 %v4885
    %4905 = vmatprep.subr.mxu0 0.0
    %4906 = vmatpush1.msra.mxu0 %v4886
    %4907 = vmatprep.subr.mxu0 0.0
    %4908 = vmatpush1.msra.mxu0 %v4887
    %4909 = vmatprep.subr.mxu0 0.0
    %4910 = vmatpush1.msra.mxu0 %v4888
    %4911 = vmatprep.subr.mxu0 0.0
    %4912 = vmatpush1.msra.mxu0 0.0
    %4913 = vmatprep.subr.mxu0 0.0
    %4914 = vmatpush1.msra.mxu0 0.0
    %4915 = vmatprep.subr.mxu0 0.0
    %4916 = vmatpush1.msra.mxu0 0.0
    %4917 = vmatprep.subr.mxu0 0.0
    %4918 = vmatpush1.msra.mxu0 0.0
    %4919 = vmatprep.subr.mxu0 0.0
    %4920 = vmatpush1.msra.mxu0 0.0
    %4921 = vmatprep.subr.mxu0 0.0
    %4922 = vmatpush1.msra.mxu0 0.0
    %4923 = vmatprep.subr.mxu0 0.0
    %4924 = vmatpush1.msra.mxu0 0.0
    %4925 = vmatprep.subr.mxu0 0.0
    %4926 = vmatpush1.msra.mxu0 0.0
    %4927 = vmatprep.subr.mxu0 0.0
    %4928 = vmatpush1.msra.mxu0 0.0
    %4929 = vmatprep.subr.mxu0 0.0
    %4930 = vmatpush1.msra.mxu0 0.0
    %4931 = vmatprep.subr.mxu0 0.0
    %4932 = vmatpush1.msra.mxu0 0.0
    %4933 = vmatprep.subr.mxu0 0.0
    %4934 = vmatpush1.msra.mxu0 0.0
    %4935 = vmatprep.subr.mxu0 0.0
    %4936 = vmatpush1.msra.mxu0 0.0
    %4937 = vmatprep.subr.mxu0 0.0
    %4938 = vmatpush1.msra.mxu0 0.0
    %4939 = vmatprep.subr.mxu0 0.0
    %4940 = vmatpush1.msra.mxu0 0.0
    %4941 = vmatprep.subr.mxu0 0.0
    %4942 = vmatpush1.msra.mxu0 0.0
    %4943 = vmatprep.subr.mxu0 0.0
    %4944 = vmatpush1.msra.mxu0 0.0
    %4945 = vmatprep.subr.mxu0 0.0
    %4946 = vmatpush1.msra.mxu0 0.0
    %4947 = vmatprep.subr.mxu0 0.0
    %4948 = vmatpush1.msra.mxu0 0.0
    %4949 = vmatprep.subr.mxu0 0.0
    %4950 = vmatpush1.msra.mxu0 0.0
    %4951 = vmatprep.subr.mxu0 0.0
    %4952 = vmatpush1.msra.mxu0 0.0
    %4953 = vmatprep.subr.mxu0 0.0
    %4954 = vmatpush1.msra.mxu0 0.0
    %4955 = vmatprep.subr.mxu0 0.0
    %4956 = vmatpush1.msra.mxu0 0.0
    %4957 = vmatprep.subr.mxu0 0.0
    %4958 = vmatpush1.msra.mxu0 0.0
    %4959 = vmatprep.subr.mxu0 0.0
    %4960 = vmatpush1.msra.mxu0 0.0
    %4961 = vmatprep.subr.mxu0 0.0
    %4962 = vmatpush1.msra.mxu0 0.0
    %4963 = vmatprep.subr.mxu0 0.0
    %4964 = vmatpush1.msra.mxu0 0.0
    %4965 = vmatprep.subr.mxu0 0.0
    %4966 = vmatpush1.msra.mxu0 0.0
    %4967 = vmatprep.mubr.f32.mxu0 0.0
    %4968 = vmatmul.mubr.f32.gmra.mrb[0].mxu0 %v4898
    %v4969 = vpop.f32.mrb[0].mxu0
    %v4970 = vadd.f32 %v4895, %v4969
    %v4971 = vpop.f32.mrb[0].mxu0
    %4972 = vmatprep.mubr.f32.mxu0 0.0
    %4973 = vmatmul.mubr.f32.gmra.mrb[0].mxu0 %v4901
    %v4974 = vpop.f32.mrb[0].mxu0
    %v4975 = vadd.f32 %v4895, %v4974
    %v4976 = vpop.f32.mrb[0].mxu0
    %4977 = vdwg.mxu0
    %v4978 = vmul.f32 %v4970, 0.5
    %v4979 = vmul.f32 %v4975, 0.5
    %v4980 = vmul.f32 %v4970, 0.70710677
    %v4981 = vmul.f32 %v4975, 0.70710677
    %v4982 = verf.f32.pop %v4980
    %v4983 = verf.f32.pop %v4981
    %v4984 = vadd.f32 %v4982, 1.0
    %v4985 = vadd.f32 %v4983, 1.0
    %v4986 = vmul.f32 %v4978, %v4984
    %v4987 = vmul.f32 %v4979, %v4985
    %s4988 = scalar_lea.vmem %s6, 64
    %v4989 = vld [vmem:[%s4988] sm:$0xff]
    %v4990 = vld [vmem:[%s4988 + $0x8] sm:$0xff]
    %v4991 = vld [vmem:[%s4988 + $0x10] sm:$0xff]
    %v4992 = vld [vmem:[%s4988 + $0x18] sm:$0xff]
    %v4993 = vld [vmem:[%s4988 + $0x20] sm:$0xff]
    %v4994 = vld [vmem:[%s4988 + $0x28] sm:$0xff]
    %v4995 = vld [vmem:[%s4988 + $0x30] sm:$0xff]
    %v4996 = vld [vmem:[%s4988 + $0x38] sm:$0xff]
    %v4997 = vlaneseq
    %v4998 = vshrl.u32 %v4997, 7
    %v4999 = vsub.s32 5, %v4998
    %v5000 = vrot.slane %v2559, %v4999
    %v5002 = vsel %vm2474, %v4986, 0
    %v5005 = vsel %vm2474, %v4987, 0
    %5007 = vmatprep.subr.mxu0 0.0
    %5008 = vmatpush1.msra.mxu0 %v4989
    %5009 = vmatprep.subr.mxu0 0.0
    %5010 = vmatpush1.msra.mxu0 %v4990
    %5011 = vmatprep.subr.mxu0 0.0
    %5012 = vmatpush1.msra.mxu0 %v4991
    %5013 = vmatprep.subr.mxu0 0.0
    %5014 = vmatpush1.msra.mxu0 %v4992
    %5015 = vmatprep.subr.mxu0 0.0
    %5016 = vmatpush1.msra.mxu0 %v4993
    %5017 = vmatprep.subr.mxu0 0.0
    %5018 = vmatpush1.msra.mxu0 %v4994
    %5019 = vmatprep.subr.mxu0 0.0
    %5020 = vmatpush1.msra.mxu0 %v4995
    %5021 = vmatprep.subr.mxu0 0.0
    %5022 = vmatpush1.msra.mxu0 %v4996
    %5023 = vmatprep.subr.mxu0 0.0
    %5024 = vmatpush1.msra.mxu0 0.0
    %5025 = vmatprep.subr.mxu0 0.0
    %5026 = vmatpush1.msra.mxu0 0.0
    %5027 = vmatprep.subr.mxu0 0.0
    %5028 = vmatpush1.msra.mxu0 0.0
    %5029 = vmatprep.subr.mxu0 0.0
    %5030 = vmatpush1.msra.mxu0 0.0
    %5031 = vmatprep.subr.mxu0 0.0
    %5032 = vmatpush1.msra.mxu0 0.0
    %5033 = vmatprep.subr.mxu0 0.0
    %5034 = vmatpush1.msra.mxu0 0.0
    %5035 = vmatprep.subr.mxu0 0.0
    %5036 = vmatpush1.msra.mxu0 0.0
    %5037 = vmatprep.subr.mxu0 0.0
    %5038 = vmatpush1.msra.mxu0 0.0
    %5039 = vmatprep.subr.mxu0 0.0
    %5040 = vmatpush1.msra.mxu0 0.0
    %5041 = vmatprep.subr.mxu0 0.0
    %5042 = vmatpush1.msra.mxu0 0.0
    %5043 = vmatprep.subr.mxu0 0.0
    %5044 = vmatpush1.msra.mxu0 0.0
    %5045 = vmatprep.subr.mxu0 0.0
    %5046 = vmatpush1.msra.mxu0 0.0
    %5047 = vmatprep.subr.mxu0 0.0
    %5048 = vmatpush1.msra.mxu0 0.0
    %5049 = vmatprep.subr.mxu0 0.0
    %5050 = vmatpush1.msra.mxu0 0.0
    %5051 = vmatprep.subr.mxu0 0.0
    %5052 = vmatpush1.msra.mxu0 0.0
    %5053 = vmatprep.subr.mxu0 0.0
    %5054 = vmatpush1.msra.mxu0 0.0
    %5055 = vmatprep.subr.mxu0 0.0
    %5056 = vmatpush1.msra.mxu0 0.0
    %5057 = vmatprep.subr.mxu0 0.0
    %5058 = vmatpush1.msra.mxu0 0.0
    %5059 = vmatprep.subr.mxu0 0.0
    %5060 = vmatpush1.msra.mxu0 0.0
    %5061 = vmatprep.subr.mxu0 0.0
    %5062 = vmatpush1.msra.mxu0 0.0
    %5063 = vmatprep.subr.mxu0 0.0
    %5064 = vmatpush1.msra.mxu0 0.0
    %5065 = vmatprep.subr.mxu0 0.0
    %5066 = vmatpush1.msra.mxu0 0.0
    %5067 = vmatprep.subr.mxu0 0.0
    %5068 = vmatpush1.msra.mxu0 0.0
    %5069 = vmatprep.subr.mxu0 0.0
    %5070 = vmatpush1.msra.mxu0 0.0
    %5071 = vmatprep.mubr.f32.mxu0 0.0
    %5072 = vmatmul.mubr.f32.gmra.mrb[0].mxu0 %v5002
    %v5073 = vpop.f32.mrb[0].mxu0
    %v5074 = vadd.f32 %v5000, %v5073
    %v5075 = vpop.f32.mrb[0].mxu0
    %5076 = vmatprep.mubr.f32.mxu0 0.0
    %5077 = vmatmul.mubr.f32.gmra.mrb[0].mxu0 %v5005
    %v5078 = vpop.f32.mrb[0].mxu0
    %v5079 = vadd.f32 %v5000, %v5078
    %v5080 = vpop.f32.mrb[0].mxu0
    %5081 = vdwg.mxu0
    %v5082 = vadd.f32 %v5074, %v4844
    %v5083 = vadd.f32 %v5079, %v4845
    %v5084 = vld [vmem:[%s8] sm:$0x3]
    %v5085 = vsel %vm36, %v5082, 0.0
    %5086 = vadd.xlane.f32.xlu0 %v5085
    %v5087 = vpop.xlane.xlu0 %5086
    %v5088 = vsel %vm36, %v5083, 0.0
    %5089 = vadd.xlane.f32.xlu0 %v5088
    %v5090 = vpop.xlane.xlu0 %5089
    %v5091 = vmul.f32 %v5087, %v43
    %v5092 = vmul.f32 %v5090, %v43
    %v5093 = vsub.f32 %v5082, %v5091
    %v5094 = vsub.f32 %v5083, %v5092
    %v5095 = vmul.f32 %v5093, %v5093
    %v5096 = vmul.f32 %v5094, %v5094
    %v5097 = vsel %vm36, %v5095, 0.0
    %5098 = vadd.xlane.f32.xlu0 %v5097
    %v5099 = vpop.xlane.xlu0 %5098
    %v5100 = vsel %vm36, %v5096, 0.0
    %5101 = vadd.xlane.f32.xlu0 %v5100
    %v5102 = vpop.xlane.xlu0 %5101
    %v5103 = vmul.f32 %v5099, %v43
    %v5104 = vmul.f32 %v5102, %v43
    %v5105 = vadd.f32 %v5103, 1e-06
    %v5106 = vadd.f32 %v5104, 1e-06
    %v5107 = vrsqrt.pop %v5105
    %v5108 = vrsqrt.pop %v5106
    %v5109 = vmul.f32 %v5093, %v5107
    %v5110 = vmul.f32 %v5094, %v5108
    %v5111 = vlaneseq
    %v5112 = vshrl.u32 %v5111, 7
    %v5113 = vsub.s32 0, %v5112
    %v5114 = vrot.slane %v5084, %v5113
    %v5115 = vmul.f32 %v5109, %v5114
    %v5116 = vmul.f32 %v5110, %v5114
    %v5117 = vlaneseq
    %v5118 = vshrl.u32 %v5117, 7
    %v5119 = vsub.s32 1, %v5118
    %v5120 = vrot.slane %v5084, %v5119
    %v5121 = vadd.f32 %v5115, %v5120
    %v5122 = vadd.f32 %v5116, %v5120
    %5123 = vst.msk [vmem:[#allocation2] sm:$0xff] %vm36, %v5121
    %5124 = vst.msk [vmem:[#allocation2 + $0x8] sm:$0xff] %vm36, %v5122
    // Predicated region
    $region38: #{tpu_custom_call.1} parent=1 // pred_check
      _
    $region39: #{tpu_custom_call.1} parent=1 // pred_check_branch
      %5126 = sbr.rel (0) target = $region41
    $region40: #{tpu_custom_call.1} parent=1 // pred_region
      %s5128 = ssub.s32 256, 256
      %5129 = vsyncadd [#allocation3], %s5128
      %s5130 = sshll.u32 [#allocation2], 4
      %s5131 = int_to_ptr.vmem [resolvable:$true] %s5130
      %5136 = dma.vmem_to_hbm [thread:$0]  %s5131, 256, %s9, [#allocation3], 128, 128, 8
    $region41: #{tpu_custom_call.1} parent=1 // pred_fallthru
      _
    // Predicated region
    $region42: #{tpu_custom_call.1} parent=1 // pred_check
      _
    $region43: #{tpu_custom_call.1} parent=1 // pred_check_branch
      %5138 = sbr.rel (0) target = $region45
    $region44: #{tpu_custom_call.1} parent=1 // pred_region
      %5139 = dma.done [#allocation3], 256
    $region45: #{tpu_custom_call.1} parent=1 // pred_fallthru
      _
    %5140 = vsyncpa [#allocation3], 1

</llo_original>
